<compile_context>
chip_gen: v5e
topology: v5e:2x2
jax: 0.10.0
libtpu: 0.0.40
codegen_flags: <defaults>
</compile_context>

<pallas_src>
import functools

import jax
import jax.numpy as jnp
from jax.experimental import pallas as pl
from jax.experimental.pallas import tpu as pltpu  # noqa: F401  (not needed for this fused kernel)


# ---------------- model config (small, consistent with BertModel + Linear(H, 1)) ----
VOCAB = 100
MAX_POS = 64
TYPE_VOCAB = 2
HIDDEN = 32
NUM_HEADS = 4
HEAD_DIM = HIDDEN // NUM_HEADS
INTERMEDIATE = 64
NUM_LAYERS = 2
LN_EPS = 1e-12
MASK_NEG = -1e9


# ---------------- fused forward kernel ------------------------------------------------
def _fused_forward_kernel(ids_ref, tids_ref, mask_ref,
                          word_emb_ref, pos_emb_ref, type_emb_ref,
                          emb_ln_g_ref, emb_ln_b_ref,
                          wqkv_ref, bqkv_ref, wo_ref, bo_ref,
                          ln1_g_ref, ln1_b_ref,
                          wi_ref, bi_ref, wo2_ref, bo2_ref,
                          ln2_g_ref, ln2_b_ref,
                          score_w_ref, score_b_ref,
                          out_ref, *, batch, seq):
    f32 = jnp.float32
    T = batch * seq
    H = HIDDEN
    dh = HEAD_DIM
    scale = 1.0 / (dh ** 0.5)

    def layer_norm(x, g, b):
        mean = jnp.mean(x, axis=-1, keepdims=True)
        cent = x - mean
        var = jnp.mean(cent * cent, axis=-1, keepdims=True)   # biased, like torch
        return cent * jax.lax.rsqrt(var + LN_EPS) * g + b

    def gelu(y):
        # TODO(synk): HF BERT default is exact erf-GELU; tanh approximation used here
        # for guaranteed Mosaic lowering.
        return 0.5 * y * (1.0 + jnp.tanh(0.7978845608028654 * (y + 0.044715 * y * y * y)))

    # ---- embeddings: word (one-hot MXU gather) + token-type (select) + position ----
    ids = ids_ref[...]                                                   # (T, 1) int32
    tids = tids_ref[...]                                                 # (T, 1) int32

    w_onehot = (ids == jax.lax.broadcasted_iota(jnp.int32, (T, VOCAB), 1)).astype(f32)
    emb = jnp.dot(w_onehot, word_emb_ref[...], preferred_element_type=f32)   # (T, H)

    for tv in range(TYPE_VOCAB):
        sel = (tids == tv).astype(f32)                                   # (T, 1)
        emb = emb + sel * type_emb_ref[tv:tv + 1, :]                     # broadcast (1, H)

    pos_block = pos_emb_ref[0:seq, :]                                    # (S, H) static slice
    emb = emb + jnp.concatenate([pos_block] * batch, axis=0)             # (T, H)

    x = layer_norm(emb, emb_ln_g_ref[...], emb_ln_b_ref[...])            # (T, H)

    # ---- HF-style additive attention mask ----
    add_mask = (1.0 - mask_ref[...].astype(f32)) * MASK_NEG              # (B, S)

    # ---- transformer layers (all weights stay VMEM-resident) ----
    for l in range(NUM_LAYERS):
        # fused QKV projection: one (T,H) x (H,3H) MXU op
        qkv = jnp.dot(x, wqkv_ref[l], preferred_element_type=f32) + bqkv_ref[l]  # (T, 3H)

        ctx_rows = []
        for b in range(batch):
            r0 = b * seq
            qb = qkv[r0:r0 + seq, 0:H]                                   # (S, H)
            kb = qkv[r0:r0 + seq, H:2 * H]
            vb = qkv[r0:r0 + seq, 2 * H:3 * H]
            mb = add_mask[b:b + 1, :]                                    # (1, S)

            head_ctx = []
            for h in range(NUM_HEADS):
                c0 = h * dh
                qh = qb[:, c0:c0 + dh]                                   # (S, dh)
                kh = kb[:, c0:c0 + dh]
                vh = vb[:, c0:c0 + dh]
                # q @ k^T without materializing the transpose
                s = jax.lax.dot_general(qh, kh, (((1,), (1,)), ((), ())),
                                        preferred_element_type=f32) * scale
                s = s + mb
                s = s - jnp.max(s, axis=-1, keepdims=True)
                p = jnp.exp(s)
                p = p * pl.reciprocal(jnp.sum(p, axis=-1, keepdims=True), approx=True)
                head_ctx.append(jnp.dot(p, vh, preferred_element_type=f32))   # (S, dh)
            ctx_rows.append(jnp.concatenate(head_ctx, axis=1))           # (S, H) lane-dense
        ctx = jnp.concatenate(ctx_rows, axis=0)                          # (T, H)

        attn_out = jnp.dot(ctx, wo_ref[l], preferred_element_type=f32) + bo_ref[l]
        h1 = layer_norm(attn_out + x, ln1_g_ref[l], ln1_b_ref[l])        # post-attn LN (residual)

        inter = gelu(jnp.dot(h1, wi_ref[l], preferred_element_type=f32) + bi_ref[l])
        ffn = jnp.dot(inter, wo2_ref[l], preferred_element_type=f32) + bo2_ref[l]
        x = layer_norm(ffn + h1, ln2_g_ref[l], ln2_b_ref[l])             # FFN LN (residual)

    # ---- score head on CLS rows (row b*S of the [T, H] slab) ----
    cls = jnp.concatenate([x[b * seq:b * seq + 1, :] for b in range(batch)], axis=0)  # (B, H)
    out_ref[...] = (jnp.dot(cls, score_w_ref[...], preferred_element_type=f32)
                    + score_b_ref[...])                                  # (B, 1)


def cluebert_ranker_forward(params, input_ids, attention_mask, token_type_ids=None):
    B, S = input_ids.shape
    if token_type_ids is None:
        token_type_ids = jnp.zeros_like(input_ids)

    ids = input_ids.reshape(B * S, 1).astype(jnp.int32)
    tids = token_type_ids.reshape(B * S, 1).astype(jnp.int32)
    mask = attention_mask.astype(jnp.int32)

    kernel = functools.partial(_fused_forward_kernel, batch=B, seq=S)
    scores = pl.pallas_call(
        kernel,
        out_shape=jax.ShapeDtypeStruct((B, 1), jnp.float32),
        # no grid / specs: single program, every operand is a whole-array VMEM block
    )(ids, tids, mask,
      params["word_emb"], params["pos_emb"], params["type_emb"],
      params["emb_ln_g"], params["emb_ln_b"],
      params["wqkv"], params["bqkv"], params["wo"], params["bo"],
      params["ln1_g"], params["ln1_b"],
      params["wi"], params["bi"], params["wo2"], params["bo2"],
      params["ln2_g"], params["ln2_b"],
      params["score_w"], params["score_b"])
    return scores[:, 0]                                                  # (B,)


# ---------------- deterministic parameter init (packed for the fused kernel) ---------
def init_params(key):
    keys = iter(jax.random.split(key, 8 + NUM_LAYERS * 16))

    def nrm(shape):
        return jax.random.normal(next(keys), shape, jnp.float32) * 0.02

    word_emb = nrm((VOCAB, HIDDEN))
    pos_emb = nrm((MAX_POS, HIDDEN))
    type_emb = nrm((TYPE_VOCAB, HIDDEN))
    score_w = nrm((HIDDEN, 1))

    layers = []
    for _ in range(NUM_LAYERS):
        layers.append(dict(
            wq=nrm((HIDDEN, HIDDEN)), bq=jnp.zeros((HIDDEN,), jnp.float32),
            wk=nrm((HIDDEN, HIDDEN)), bk=jnp.zeros((HIDDEN,), jnp.float32),
            wv=nrm((HIDDEN, HIDDEN)), bv=jnp.zeros((HIDDEN,), jnp.float32),
            wo=nrm((HIDDEN, HIDDEN)), bo=jnp.zeros((HIDDEN,), jnp.float32),
            ln1_g=jnp.ones((HIDDEN,), jnp.float32), ln1_b=jnp.zeros((HIDDEN,), jnp.float32),
            wi=nrm((HIDDEN, INTERMEDIATE)), bi=jnp.zeros((INTERMEDIATE,), jnp.float32),
            wo2=nrm((INTERMEDIATE, HIDDEN)), bo2=jnp.zeros((HIDDEN,), jnp.float32),
            ln2_g=jnp.ones((HIDDEN,), jnp.float32), ln2_b=jnp.zeros((HIDDEN,), jnp.float32),
        ))

    def stack(fn):
        return jnp.stack([fn(l) for l in layers], axis=0)

    return {
        "word_emb": word_emb,
        "pos_emb": pos_emb,
        "type_emb": type_emb,
        "emb_ln_g": jnp.ones((1, HIDDEN), jnp.float32),
        "emb_ln_b": jnp.zeros((1, HIDDEN), jnp.float32),
        # fused QKV: weights (L, H, 3H), biases (L, 1, 3H)
        "wqkv": stack(lambda l: jnp.concatenate([l["wq"], l["wk"], l["wv"]], axis=1)),
        "bqkv": stack(lambda l: jnp.concatenate([l["bq"], l["bk"], l["bv"]]).reshape(1, 3 * HIDDEN)),
        "wo": stack(lambda l: l["wo"]),
        "bo": stack(lambda l: l["bo"].reshape(1, HIDDEN)),
        "ln1_g": stack(lambda l: l["ln1_g"].reshape(1, HIDDEN)),
        "ln1_b": stack(lambda l: l["ln1_b"].reshape(1, HIDDEN)),
        "wi": stack(lambda l: l["wi"]),
        "bi": stack(lambda l: l["bi"].reshape(1, INTERMEDIATE)),
        "wo2": stack(lambda l: l["wo2"]),
        "bo2": stack(lambda l: l["bo2"].reshape(1, HIDDEN)),
        "ln2_g": stack(lambda l: l["ln2_g"].reshape(1, HIDDEN)),
        "ln2_b": stack(lambda l: l["ln2_b"].reshape(1, HIDDEN)),
        "score_w": score_w,
        "score_b": jnp.zeros((1, 1), jnp.float32),
    }


if __name__ == "__main__":
    B, S = 2, 8
    key = jax.random.PRNGKey(0)
    k_param, k_ids = jax.random.split(key)

    params = init_params(k_param)
    input_ids = jax.random.randint(k_ids, (B, S), 0, VOCAB, dtype=jnp.int32)
    attention_mask = jnp.array([[1, 1, 1, 1, 1, 1, 1, 1],
                                [1, 1, 1, 1, 1, 1, 0, 0]], dtype=jnp.int32)
    token_type_ids = jnp.zeros((B, S), dtype=jnp.int32)

    scores = cluebert_ranker_forward(params, input_ids, attention_mask, token_type_ids)
    scores = jax.block_until_ready(scores)
    assert scores.shape == (B,) and scores.dtype == jnp.float32
    assert bool(jnp.all(jnp.isfinite(scores)))
    print("KERNEL_OK")
</pallas_src>

<mosaic_0001>
module attributes {stable_mosaic.version = 11 : i64} {
  func.func @_fused_forward_kernel(%arg0: memref<16x1xi32, #tpu.memory_space<vmem>>, %arg1: memref<16x1xi32, #tpu.memory_space<vmem>>, %arg2: memref<2x8xi32, #tpu.memory_space<vmem>>, %arg3: memref<100x32xf32, #tpu.memory_space<vmem>>, %arg4: memref<64x32xf32, #tpu.memory_space<vmem>>, %arg5: memref<2x32xf32, #tpu.memory_space<vmem>>, %arg6: memref<1x32xf32, #tpu.memory_space<vmem>>, %arg7: memref<1x32xf32, #tpu.memory_space<vmem>>, %arg8: memref<2x32x96xf32, #tpu.memory_space<vmem>>, %arg9: memref<2x1x96xf32, #tpu.memory_space<vmem>>, %arg10: memref<2x32x32xf32, #tpu.memory_space<vmem>>, %arg11: memref<2x1x32xf32, #tpu.memory_space<vmem>>, %arg12: memref<2x1x32xf32, #tpu.memory_space<vmem>>, %arg13: memref<2x1x32xf32, #tpu.memory_space<vmem>>, %arg14: memref<2x32x64xf32, #tpu.memory_space<vmem>>, %arg15: memref<2x1x64xf32, #tpu.memory_space<vmem>>, %arg16: memref<2x64x32xf32, #tpu.memory_space<vmem>>, %arg17: memref<2x1x32xf32, #tpu.memory_space<vmem>>, %arg18: memref<2x1x32xf32, #tpu.memory_space<vmem>>, %arg19: memref<2x1x32xf32, #tpu.memory_space<vmem>>, %arg20: memref<32x1xf32, #tpu.memory_space<vmem>>, %arg21: memref<1x1xf32, #tpu.memory_space<vmem>>, %arg22: memref<2x1xf32, #tpu.memory_space<vmem>>) attributes {dimension_semantics = [], scalar_prefetch = 0 : i64, scratch_operands = 0 : i64, tpu.core_type = #tpu.core_type<tc>} {
    %c0 = arith.constant 0 : index
    %c0_0 = arith.constant 0 : index
    %0 = vector.load %arg0[%c0, %c0_0] : memref<16x1xi32, #tpu.memory_space<vmem>>, vector<16x1xi32>
    %c0_1 = arith.constant 0 : index
    %c0_2 = arith.constant 0 : index
    %1 = vector.load %arg1[%c0_1, %c0_2] : memref<16x1xi32, #tpu.memory_space<vmem>>, vector<16x1xi32>
    %2 = tpu.iota {dimensions = array<i32: 1>} : vector<16x100xi32>
    %3 = vector.broadcast %0 : vector<16x1xi32> to vector<16x100xi32>
    %4 = arith.cmpi eq, %3, %2 : vector<16x100xi32>
    %5 = arith.extui %4 : vector<16x100xi1> to vector<16x100xi32>
    %6 = arith.sitofp %5 : vector<16x100xi32> to vector<16x100xf32>
    %c0_3 = arith.constant 0 : index
    %c0_4 = arith.constant 0 : index
    %7 = vector.load %arg3[%c0_3, %c0_4] : memref<100x32xf32, #tpu.memory_space<vmem>>, vector<100x32xf32>
    %cst = arith.constant dense<0.000000e+00> : vector<16x32xf32>
    %8 = tpu.matmul %6, %7, %cst {dimension_numbers = #tpu.dot_dimension_numbers<[1], [0], [0], [1], [0, 0, 1, 1], [], []>} : vector<16x100xf32>, vector<100x32xf32>, vector<16x32xf32> -> vector<16x32xf32>
    %c0_i32 = arith.constant 0 : i32
    %9 = vector.broadcast %c0_i32 : i32 to vector<16x1xi32>
    %10 = arith.cmpi eq, %1, %9 : vector<16x1xi32>
    %11 = arith.extui %10 : vector<16x1xi1> to vector<16x1xi32>
    %12 = arith.sitofp %11 : vector<16x1xi32> to vector<16x1xf32>
    %c0_5 = arith.constant 0 : index
    %c0_6 = arith.constant 0 : index
    %13 = vector.load %arg5[%c0_5, %c0_6] : memref<2x32xf32, #tpu.memory_space<vmem>>, vector<1x32xf32>
    %14 = vector.broadcast %12 : vector<16x1xf32> to vector<16x32xf32>
    %15 = vector.broadcast %13 : vector<1x32xf32> to vector<16x32xf32>
    %16 = arith.mulf %14, %15 : vector<16x32xf32>
    %17 = arith.addf %8, %16 : vector<16x32xf32>
    %c1_i32 = arith.constant 1 : i32
    %18 = vector.broadcast %c1_i32 : i32 to vector<16x1xi32>
    %19 = arith.cmpi eq, %1, %18 : vector<16x1xi32>
    %20 = arith.extui %19 : vector<16x1xi1> to vector<16x1xi32>
    %21 = arith.sitofp %20 : vector<16x1xi32> to vector<16x1xf32>
    %c1 = arith.constant 1 : index
    %c0_7 = arith.constant 0 : index
    %22 = vector.load %arg5[%c1, %c0_7] : memref<2x32xf32, #tpu.memory_space<vmem>>, vector<1x32xf32>
    %23 = vector.broadcast %21 : vector<16x1xf32> to vector<16x32xf32>
    %24 = vector.broadcast %22 : vector<1x32xf32> to vector<16x32xf32>
    %25 = arith.mulf %23, %24 : vector<16x32xf32>
    %26 = arith.addf %17, %25 : vector<16x32xf32>
    %c0_8 = arith.constant 0 : index
    %c0_9 = arith.constant 0 : index
    %27 = vector.load %arg4[%c0_8, %c0_9] : memref<64x32xf32, #tpu.memory_space<vmem>>, vector<8x32xf32>
    %28 = tpu.concatenate %27, %27 in 0 : vector<8x32xf32>, vector<8x32xf32> -> vector<16x32xf32>
    %29 = arith.addf %26, %28 : vector<16x32xf32>
    %c0_10 = arith.constant 0 : index
    %c0_11 = arith.constant 0 : index
    %30 = vector.load %arg6[%c0_10, %c0_11] : memref<1x32xf32, #tpu.memory_space<vmem>>, vector<1x32xf32>
    %c0_12 = arith.constant 0 : index
    %c0_13 = arith.constant 0 : index
    %31 = vector.load %arg7[%c0_12, %c0_13] : memref<1x32xf32, #tpu.memory_space<vmem>>, vector<1x32xf32>
    %cst_14 = arith.constant dense<0.000000e+00> : vector<16xf32>
    %32 = vector.multi_reduction <add>, %29, %cst_14 [1] : vector<16x32xf32> to vector<16xf32>
    %33 = vector.shape_cast %32 : vector<16xf32> to vector<16x1xf32>
    %cst_15 = arith.constant 3.200000e+01 : f32
    %34 = vector.broadcast %cst_15 : f32 to vector<16x1xf32>
    %35 = arith.divf %33, %34 : vector<16x1xf32>
    %36 = vector.broadcast %35 : vector<16x1xf32> to vector<16x32xf32>
    %37 = arith.subf %29, %36 : vector<16x32xf32>
    %38 = arith.mulf %37, %37 : vector<16x32xf32>
    %cst_16 = arith.constant dense<0.000000e+00> : vector<16xf32>
    %39 = vector.multi_reduction <add>, %38, %cst_16 [1] : vector<16x32xf32> to vector<16xf32>
    %40 = vector.shape_cast %39 : vector<16xf32> to vector<16x1xf32>
    %cst_17 = arith.constant 3.200000e+01 : f32
    %41 = vector.broadcast %cst_17 : f32 to vector<16x1xf32>
    %42 = arith.divf %40, %41 : vector<16x1xf32>
    %cst_18 = arith.constant 9.99999996E-13 : f32
    %43 = vector.broadcast %cst_18 : f32 to vector<16x1xf32>
    %44 = arith.addf %42, %43 : vector<16x1xf32>
    %45 = math.rsqrt %44 : vector<16x1xf32>
    %46 = vector.broadcast %45 : vector<16x1xf32> to vector<16x32xf32>
    %47 = arith.mulf %37, %46 : vector<16x32xf32>
    %48 = vector.broadcast %30 : vector<1x32xf32> to vector<16x32xf32>
    %49 = arith.mulf %47, %48 : vector<16x32xf32>
    %50 = vector.broadcast %31 : vector<1x32xf32> to vector<16x32xf32>
    %51 = arith.addf %49, %50 : vector<16x32xf32>
    %c0_19 = arith.constant 0 : index
    %c0_20 = arith.constant 0 : index
    %52 = vector.load %arg2[%c0_19, %c0_20] : memref<2x8xi32, #tpu.memory_space<vmem>>, vector<2x8xi32>
    %53 = arith.sitofp %52 : vector<2x8xi32> to vector<2x8xf32>
    %cst_21 = arith.constant 1.000000e+00 : f32
    %54 = vector.broadcast %cst_21 : f32 to vector<2x8xf32>
    %55 = arith.subf %54, %53 : vector<2x8xf32>
    %cst_22 = arith.constant -1.000000e+09 : f32
    %56 = vector.broadcast %cst_22 : f32 to vector<2x8xf32>
    %57 = arith.mulf %55, %56 : vector<2x8xf32>
    %c0_23 = arith.constant 0 : index
    %c0_24 = arith.constant 0 : index
    %c0_25 = arith.constant 0 : index
    %58 = vector.load %arg8[%c0_23, %c0_24, %c0_25] : memref<2x32x96xf32, #tpu.memory_space<vmem>>, vector<1x32x96xf32>
    %59 = vector.shape_cast %58 : vector<1x32x96xf32> to vector<32x96xf32>
    %cst_26 = arith.constant dense<0.000000e+00> : vector<16x96xf32>
    %60 = tpu.matmul %51, %59, %cst_26 {dimension_numbers = #tpu.dot_dimension_numbers<[1], [0], [0], [1], [0, 0, 1, 1], [], []>} : vector<16x32xf32>, vector<32x96xf32>, vector<16x96xf32> -> vector<16x96xf32>
    %c0_27 = arith.constant 0 : index
    %c0_28 = arith.constant 0 : index
    %c0_29 = arith.constant 0 : index
    %61 = vector.load %arg9[%c0_27, %c0_28, %c0_29] : memref<2x1x96xf32, #tpu.memory_space<vmem>>, vector<1x1x96xf32>
    %62 = vector.shape_cast %61 : vector<1x1x96xf32> to vector<1x96xf32>
    %63 = vector.broadcast %62 : vector<1x96xf32> to vector<16x96xf32>
    %64 = arith.addf %60, %63 : vector<16x96xf32>
    %65 = vector.extract_strided_slice %64 {offsets = [0, 0], sizes = [8, 32], strides = [1, 1]} : vector<16x96xf32> to vector<8x32xf32>
    %66 = vector.extract_strided_slice %64 {offsets = [0, 32], sizes = [8, 32], strides = [1, 1]} : vector<16x96xf32> to vector<8x32xf32>
    %67 = vector.extract_strided_slice %64 {offsets = [0, 64], sizes = [8, 32], strides = [1, 1]} : vector<16x96xf32> to vector<8x32xf32>
    %68 = vector.extract_strided_slice %57 {offsets = [0, 0], sizes = [1, 8], strides = [1, 1]} : vector<2x8xf32> to vector<1x8xf32>
    %69 = vector.extract_strided_slice %65 {offsets = [0, 0], sizes = [8, 8], strides = [1, 1]} : vector<8x32xf32> to vector<8x8xf32>
    %70 = vector.extract_strided_slice %66 {offsets = [0, 0], sizes = [8, 8], strides = [1, 1]} : vector<8x32xf32> to vector<8x8xf32>
    %71 = vector.extract_strided_slice %67 {offsets = [0, 0], sizes = [8, 8], strides = [1, 1]} : vector<8x32xf32> to vector<8x8xf32>
    %cst_30 = arith.constant dense<0.000000e+00> : vector<8x8xf32>
    %72 = tpu.matmul %69, %70, %cst_30 {dimension_numbers = #tpu.dot_dimension_numbers<[1], [1], [0], [0], [0, 0, 1, 0], [], []>} : vector<8x8xf32>, vector<8x8xf32>, vector<8x8xf32> -> vector<8x8xf32>
    %cst_31 = arith.constant 0.353553385 : f32
    %73 = vector.broadcast %cst_31 : f32 to vector<8x8xf32>
    %74 = arith.mulf %72, %73 : vector<8x8xf32>
    %75 = vector.broadcast %68 : vector<1x8xf32> to vector<8x8xf32>
    %76 = arith.addf %74, %75 : vector<8x8xf32>
    %cst_32 = arith.constant dense<0xFF800000> : vector<8xf32>
    %77 = vector.multi_reduction <maximumf>, %76, %cst_32 [1] : vector<8x8xf32> to vector<8xf32>
    %78 = vector.shape_cast %77 : vector<8xf32> to vector<8x1xf32>
    %79 = vector.broadcast %78 : vector<8x1xf32> to vector<8x8xf32>
    %80 = arith.subf %76, %79 : vector<8x8xf32>
    %81 = math.exp %80 : vector<8x8xf32>
    %cst_33 = arith.constant dense<0.000000e+00> : vector<8xf32>
    %82 = vector.multi_reduction <add>, %81, %cst_33 [1] : vector<8x8xf32> to vector<8xf32>
    %83 = vector.shape_cast %82 : vector<8xf32> to vector<8x1xf32>
    %84 = tpu.reciprocal %83 {approx = true} : vector<8x1xf32> -> vector<8x1xf32>
    %85 = vector.broadcast %84 : vector<8x1xf32> to vector<8x8xf32>
    %86 = arith.mulf %81, %85 : vector<8x8xf32>
    %cst_34 = arith.constant dense<0.000000e+00> : vector<8x8xf32>
    %87 = tpu.matmul %86, %71, %cst_34 {dimension_numbers = #tpu.dot_dimension_numbers<[1], [0], [0], [1], [0, 0, 1, 1], [], []>} : vector<8x8xf32>, vector<8x8xf32>, vector<8x8xf32> -> vector<8x8xf32>
    %88 = vector.extract_strided_slice %65 {offsets = [0, 8], sizes = [8, 8], strides = [1, 1]} : vector<8x32xf32> to vector<8x8xf32>
    %89 = vector.extract_strided_slice %66 {offsets = [0, 8], sizes = [8, 8], strides = [1, 1]} : vector<8x32xf32> to vector<8x8xf32>
    %90 = vector.extract_strided_slice %67 {offsets = [0, 8], sizes = [8, 8], strides = [1, 1]} : vector<8x32xf32> to vector<8x8xf32>
    %cst_35 = arith.constant dense<0.000000e+00> : vector<8x8xf32>
    %91 = tpu.matmul %88, %89, %cst_35 {dimension_numbers = #tpu.dot_dimension_numbers<[1], [1], [0], [0], [0, 0, 1, 0], [], []>} : vector<8x8xf32>, vector<8x8xf32>, vector<8x8xf32> -> vector<8x8xf32>
    %cst_36 = arith.constant 0.353553385 : f32
    %92 = vector.broadcast %cst_36 : f32 to vector<8x8xf32>
    %93 = arith.mulf %91, %92 : vector<8x8xf32>
    %94 = vector.broadcast %68 : vector<1x8xf32> to vector<8x8xf32>
    %95 = arith.addf %93, %94 : vector<8x8xf32>
    %cst_37 = arith.constant dense<0xFF800000> : vector<8xf32>
    %96 = vector.multi_reduction <maximumf>, %95, %cst_37 [1] : vector<8x8xf32> to vector<8xf32>
    %97 = vector.shape_cast %96 : vector<8xf32> to vector<8x1xf32>
    %98 = vector.broadcast %97 : vector<8x1xf32> to vector<8x8xf32>
    %99 = arith.subf %95, %98 : vector<8x8xf32>
    %100 = math.exp %99 : vector<8x8xf32>
    %cst_38 = arith.constant dense<0.000000e+00> : vector<8xf32>
    %101 = vector.multi_reduction <add>, %100, %cst_38 [1] : vector<8x8xf32> to vector<8xf32>
    %102 = vector.shape_cast %101 : vector<8xf32> to vector<8x1xf32>
    %103 = tpu.reciprocal %102 {approx = true} : vector<8x1xf32> -> vector<8x1xf32>
    %104 = vector.broadcast %103 : vector<8x1xf32> to vector<8x8xf32>
    %105 = arith.mulf %100, %104 : vector<8x8xf32>
    %cst_39 = arith.constant dense<0.000000e+00> : vector<8x8xf32>
    %106 = tpu.matmul %105, %90, %cst_39 {dimension_numbers = #tpu.dot_dimension_numbers<[1], [0], [0], [1], [0, 0, 1, 1], [], []>} : vector<8x8xf32>, vector<8x8xf32>, vector<8x8xf32> -> vector<8x8xf32>
    %107 = vector.extract_strided_slice %65 {offsets = [0, 16], sizes = [8, 8], strides = [1, 1]} : vector<8x32xf32> to vector<8x8xf32>
    %108 = vector.extract_strided_slice %66 {offsets = [0, 16], sizes = [8, 8], strides = [1, 1]} : vector<8x32xf32> to vector<8x8xf32>
    %109 = vector.extract_strided_slice %67 {offsets = [0, 16], sizes = [8, 8], strides = [1, 1]} : vector<8x32xf32> to vector<8x8xf32>
    %cst_40 = arith.constant dense<0.000000e+00> : vector<8x8xf32>
    %110 = tpu.matmul %107, %108, %cst_40 {dimension_numbers = #tpu.dot_dimension_numbers<[1], [1], [0], [0], [0, 0, 1, 0], [], []>} : vector<8x8xf32>, vector<8x8xf32>, vector<8x8xf32> -> vector<8x8xf32>
    %cst_41 = arith.constant 0.353553385 : f32
    %111 = vector.broadcast %cst_41 : f32 to vector<8x8xf32>
    %112 = arith.mulf %110, %111 : vector<8x8xf32>
    %113 = vector.broadcast %68 : vector<1x8xf32> to vector<8x8xf32>
    %114 = arith.addf %112, %113 : vector<8x8xf32>
    %cst_42 = arith.constant dense<0xFF800000> : vector<8xf32>
    %115 = vector.multi_reduction <maximumf>, %114, %cst_42 [1] : vector<8x8xf32> to vector<8xf32>
    %116 = vector.shape_cast %115 : vector<8xf32> to vector<8x1xf32>
    %117 = vector.broadcast %116 : vector<8x1xf32> to vector<8x8xf32>
    %118 = arith.subf %114, %117 : vector<8x8xf32>
    %119 = math.exp %118 : vector<8x8xf32>
    %cst_43 = arith.constant dense<0.000000e+00> : vector<8xf32>
    %120 = vector.multi_reduction <add>, %119, %cst_43 [1] : vector<8x8xf32> to vector<8xf32>
    %121 = vector.shape_cast %120 : vector<8xf32> to vector<8x1xf32>
    %122 = tpu.reciprocal %121 {approx = true} : vector<8x1xf32> -> vector<8x1xf32>
    %123 = vector.broadcast %122 : vector<8x1xf32> to vector<8x8xf32>
    %124 = arith.mulf %119, %123 : vector<8x8xf32>
    %cst_44 = arith.constant dense<0.000000e+00> : vector<8x8xf32>
    %125 = tpu.matmul %124, %109, %cst_44 {dimension_numbers = #tpu.dot_dimension_numbers<[1], [0], [0], [1], [0, 0, 1, 1], [], []>} : vector<8x8xf32>, vector<8x8xf32>, vector<8x8xf32> -> vector<8x8xf32>
    %126 = vector.extract_strided_slice %65 {offsets = [0, 24], sizes = [8, 8], strides = [1, 1]} : vector<8x32xf32> to vector<8x8xf32>
    %127 = vector.extract_strided_slice %66 {offsets = [0, 24], sizes = [8, 8], strides = [1, 1]} : vector<8x32xf32> to vector<8x8xf32>
    %128 = vector.extract_strided_slice %67 {offsets = [0, 24], sizes = [8, 8], strides = [1, 1]} : vector<8x32xf32> to vector<8x8xf32>
    %cst_45 = arith.constant dense<0.000000e+00> : vector<8x8xf32>
    %129 = tpu.matmul %126, %127, %cst_45 {dimension_numbers = #tpu.dot_dimension_numbers<[1], [1], [0], [0], [0, 0, 1, 0], [], []>} : vector<8x8xf32>, vector<8x8xf32>, vector<8x8xf32> -> vector<8x8xf32>
    %cst_46 = arith.constant 0.353553385 : f32
    %130 = vector.broadcast %cst_46 : f32 to vector<8x8xf32>
    %131 = arith.mulf %129, %130 : vector<8x8xf32>
    %132 = vector.broadcast %68 : vector<1x8xf32> to vector<8x8xf32>
    %133 = arith.addf %131, %132 : vector<8x8xf32>
    %cst_47 = arith.constant dense<0xFF800000> : vector<8xf32>
    %134 = vector.multi_reduction <maximumf>, %133, %cst_47 [1] : vector<8x8xf32> to vector<8xf32>
    %135 = vector.shape_cast %134 : vector<8xf32> to vector<8x1xf32>
    %136 = vector.broadcast %135 : vector<8x1xf32> to vector<8x8xf32>
    %137 = arith.subf %133, %136 : vector<8x8xf32>
    %138 = math.exp %137 : vector<8x8xf32>
    %cst_48 = arith.constant dense<0.000000e+00> : vector<8xf32>
    %139 = vector.multi_reduction <add>, %138, %cst_48 [1] : vector<8x8xf32> to vector<8xf32>
    %140 = vector.shape_cast %139 : vector<8xf32> to vector<8x1xf32>
    %141 = tpu.reciprocal %140 {approx = true} : vector<8x1xf32> -> vector<8x1xf32>
    %142 = vector.broadcast %141 : vector<8x1xf32> to vector<8x8xf32>
    %143 = arith.mulf %138, %142 : vector<8x8xf32>
    %cst_49 = arith.constant dense<0.000000e+00> : vector<8x8xf32>
    %144 = tpu.matmul %143, %128, %cst_49 {dimension_numbers = #tpu.dot_dimension_numbers<[1], [0], [0], [1], [0, 0, 1, 1], [], []>} : vector<8x8xf32>, vector<8x8xf32>, vector<8x8xf32> -> vector<8x8xf32>
    %145 = tpu.concatenate %87, %106, %125, %144 in 1 : vector<8x8xf32>, vector<8x8xf32>, vector<8x8xf32>, vector<8x8xf32> -> vector<8x32xf32>
    %146 = vector.extract_strided_slice %64 {offsets = [8, 0], sizes = [8, 32], strides = [1, 1]} : vector<16x96xf32> to vector<8x32xf32>
    %147 = vector.extract_strided_slice %64 {offsets = [8, 32], sizes = [8, 32], strides = [1, 1]} : vector<16x96xf32> to vector<8x32xf32>
    %148 = vector.extract_strided_slice %64 {offsets = [8, 64], sizes = [8, 32], strides = [1, 1]} : vector<16x96xf32> to vector<8x32xf32>
    %149 = vector.extract_strided_slice %57 {offsets = [1, 0], sizes = [1, 8], strides = [1, 1]} : vector<2x8xf32> to vector<1x8xf32>
    %150 = vector.extract_strided_slice %146 {offsets = [0, 0], sizes = [8, 8], strides = [1, 1]} : vector<8x32xf32> to vector<8x8xf32>
    %151 = vector.extract_strided_slice %147 {offsets = [0, 0], sizes = [8, 8], strides = [1, 1]} : vector<8x32xf32> to vector<8x8xf32>
    %152 = vector.extract_strided_slice %148 {offsets = [0, 0], sizes = [8, 8], strides = [1, 1]} : vector<8x32xf32> to vector<8x8xf32>
    %cst_50 = arith.constant dense<0.000000e+00> : vector<8x8xf32>
    %153 = tpu.matmul %150, %151, %cst_50 {dimension_numbers = #tpu.dot_dimension_numbers<[1], [1], [0], [0], [0, 0, 1, 0], [], []>} : vector<8x8xf32>, vector<8x8xf32>, vector<8x8xf32> -> vector<8x8xf32>
    %cst_51 = arith.constant 0.353553385 : f32
    %154 = vector.broadcast %cst_51 : f32 to vector<8x8xf32>
    %155 = arith.mulf %153, %154 : vector<8x8xf32>
    %156 = vector.broadcast %149 : vector<1x8xf32> to vector<8x8xf32>
    %157 = arith.addf %155, %156 : vector<8x8xf32>
    %cst_52 = arith.constant dense<0xFF800000> : vector<8xf32>
    %158 = vector.multi_reduction <maximumf>, %157, %cst_52 [1] : vector<8x8xf32> to vector<8xf32>
    %159 = vector.shape_cast %158 : vector<8xf32> to vector<8x1xf32>
    %160 = vector.broadcast %159 : vector<8x1xf32> to vector<8x8xf32>
    %161 = arith.subf %157, %160 : vector<8x8xf32>
    %162 = math.exp %161 : vector<8x8xf32>
    %cst_53 = arith.constant dense<0.000000e+00> : vector<8xf32>
    %163 = vector.multi_reduction <add>, %162, %cst_53 [1] : vector<8x8xf32> to vector<8xf32>
    %164 = vector.shape_cast %163 : vector<8xf32> to vector<8x1xf32>
    %165 = tpu.reciprocal %164 {approx = true} : vector<8x1xf32> -> vector<8x1xf32>
    %166 = vector.broadcast %165 : vector<8x1xf32> to vector<8x8xf32>
    %167 = arith.mulf %162, %166 : vector<8x8xf32>
    %cst_54 = arith.constant dense<0.000000e+00> : vector<8x8xf32>
    %168 = tpu.matmul %167, %152, %cst_54 {dimension_numbers = #tpu.dot_dimension_numbers<[1], [0], [0], [1], [0, 0, 1, 1], [], []>} : vector<8x8xf32>, vector<8x8xf32>, vector<8x8xf32> -> vector<8x8xf32>
    %169 = vector.extract_strided_slice %146 {offsets = [0, 8], sizes = [8, 8], strides = [1, 1]} : vector<8x32xf32> to vector<8x8xf32>
    %170 = vector.extract_strided_slice %147 {offsets = [0, 8], sizes = [8, 8], strides = [1, 1]} : vector<8x32xf32> to vector<8x8xf32>
    %171 = vector.extract_strided_slice %148 {offsets = [0, 8], sizes = [8, 8], strides = [1, 1]} : vector<8x32xf32> to vector<8x8xf32>
    %cst_55 = arith.constant dense<0.000000e+00> : vector<8x8xf32>
    %172 = tpu.matmul %169, %170, %cst_55 {dimension_numbers = #tpu.dot_dimension_numbers<[1], [1], [0], [0], [0, 0, 1, 0], [], []>} : vector<8x8xf32>, vector<8x8xf32>, vector<8x8xf32> -> vector<8x8xf32>
    %cst_56 = arith.constant 0.353553385 : f32
    %173 = vector.broadcast %cst_56 : f32 to vector<8x8xf32>
    %174 = arith.mulf %172, %173 : vector<8x8xf32>
    %175 = vector.broadcast %149 : vector<1x8xf32> to vector<8x8xf32>
    %176 = arith.addf %174, %175 : vector<8x8xf32>
    %cst_57 = arith.constant dense<0xFF800000> : vector<8xf32>
    %177 = vector.multi_reduction <maximumf>, %176, %cst_57 [1] : vector<8x8xf32> to vector<8xf32>
    %178 = vector.shape_cast %177 : vector<8xf32> to vector<8x1xf32>
    %179 = vector.broadcast %178 : vector<8x1xf32> to vector<8x8xf32>
    %180 = arith.subf %176, %179 : vector<8x8xf32>
    %181 = math.exp %180 : vector<8x8xf32>
    %cst_58 = arith.constant dense<0.000000e+00> : vector<8xf32>
    %182 = vector.multi_reduction <add>, %181, %cst_58 [1] : vector<8x8xf32> to vector<8xf32>
    %183 = vector.shape_cast %182 : vector<8xf32> to vector<8x1xf32>
    %184 = tpu.reciprocal %183 {approx = true} : vector<8x1xf32> -> vector<8x1xf32>
    %185 = vector.broadcast %184 : vector<8x1xf32> to vector<8x8xf32>
    %186 = arith.mulf %181, %185 : vector<8x8xf32>
    %cst_59 = arith.constant dense<0.000000e+00> : vector<8x8xf32>
    %187 = tpu.matmul %186, %171, %cst_59 {dimension_numbers = #tpu.dot_dimension_numbers<[1], [0], [0], [1], [0, 0, 1, 1], [], []>} : vector<8x8xf32>, vector<8x8xf32>, vector<8x8xf32> -> vector<8x8xf32>
    %188 = vector.extract_strided_slice %146 {offsets = [0, 16], sizes = [8, 8], strides = [1, 1]} : vector<8x32xf32> to vector<8x8xf32>
    %189 = vector.extract_strided_slice %147 {offsets = [0, 16], sizes = [8, 8], strides = [1, 1]} : vector<8x32xf32> to vector<8x8xf32>
    %190 = vector.extract_strided_slice %148 {offsets = [0, 16], sizes = [8, 8], strides = [1, 1]} : vector<8x32xf32> to vector<8x8xf32>
    %cst_60 = arith.constant dense<0.000000e+00> : vector<8x8xf32>
    %191 = tpu.matmul %188, %189, %cst_60 {dimension_numbers = #tpu.dot_dimension_numbers<[1], [1], [0], [0], [0, 0, 1, 0], [], []>} : vector<8x8xf32>, vector<8x8xf32>, vector<8x8xf32> -> vector<8x8xf32>
    %cst_61 = arith.constant 0.353553385 : f32
    %192 = vector.broadcast %cst_61 : f32 to vector<8x8xf32>
    %193 = arith.mulf %191, %192 : vector<8x8xf32>
    %194 = vector.broadcast %149 : vector<1x8xf32> to vector<8x8xf32>
    %195 = arith.addf %193, %194 : vector<8x8xf32>
    %cst_62 = arith.constant dense<0xFF800000> : vector<8xf32>
    %196 = vector.multi_reduction <maximumf>, %195, %cst_62 [1] : vector<8x8xf32> to vector<8xf32>
    %197 = vector.shape_cast %196 : vector<8xf32> to vector<8x1xf32>
    %198 = vector.broadcast %197 : vector<8x1xf32> to vector<8x8xf32>
    %199 = arith.subf %195, %198 : vector<8x8xf32>
    %200 = math.exp %199 : vector<8x8xf32>
    %cst_63 = arith.constant dense<0.000000e+00> : vector<8xf32>
    %201 = vector.multi_reduction <add>, %200, %cst_63 [1] : vector<8x8xf32> to vector<8xf32>
    %202 = vector.shape_cast %201 : vector<8xf32> to vector<8x1xf32>
    %203 = tpu.reciprocal %202 {approx = true} : vector<8x1xf32> -> vector<8x1xf32>
    %204 = vector.broadcast %203 : vector<8x1xf32> to vector<8x8xf32>
    %205 = arith.mulf %200, %204 : vector<8x8xf32>
    %cst_64 = arith.constant dense<0.000000e+00> : vector<8x8xf32>
    %206 = tpu.matmul %205, %190, %cst_64 {dimension_numbers = #tpu.dot_dimension_numbers<[1], [0], [0], [1], [0, 0, 1, 1], [], []>} : vector<8x8xf32>, vector<8x8xf32>, vector<8x8xf32> -> vector<8x8xf32>
    %207 = vector.extract_strided_slice %146 {offsets = [0, 24], sizes = [8, 8], strides = [1, 1]} : vector<8x32xf32> to vector<8x8xf32>
    %208 = vector.extract_strided_slice %147 {offsets = [0, 24], sizes = [8, 8], strides = [1, 1]} : vector<8x32xf32> to vector<8x8xf32>
    %209 = vector.extract_strided_slice %148 {offsets = [0, 24], sizes = [8, 8], strides = [1, 1]} : vector<8x32xf32> to vector<8x8xf32>
    %cst_65 = arith.constant dense<0.000000e+00> : vector<8x8xf32>
    %210 = tpu.matmul %207, %208, %cst_65 {dimension_numbers = #tpu.dot_dimension_numbers<[1], [1], [0], [0], [0, 0, 1, 0], [], []>} : vector<8x8xf32>, vector<8x8xf32>, vector<8x8xf32> -> vector<8x8xf32>
    %cst_66 = arith.constant 0.353553385 : f32
    %211 = vector.broadcast %cst_66 : f32 to vector<8x8xf32>
    %212 = arith.mulf %210, %211 : vector<8x8xf32>
    %213 = vector.broadcast %149 : vector<1x8xf32> to vector<8x8xf32>
    %214 = arith.addf %212, %213 : vector<8x8xf32>
    %cst_67 = arith.constant dense<0xFF800000> : vector<8xf32>
    %215 = vector.multi_reduction <maximumf>, %214, %cst_67 [1] : vector<8x8xf32> to vector<8xf32>
    %216 = vector.shape_cast %215 : vector<8xf32> to vector<8x1xf32>
    %217 = vector.broadcast %216 : vector<8x1xf32> to vector<8x8xf32>
    %218 = arith.subf %214, %217 : vector<8x8xf32>
    %219 = math.exp %218 : vector<8x8xf32>
    %cst_68 = arith.constant dense<0.000000e+00> : vector<8xf32>
    %220 = vector.multi_reduction <add>, %219, %cst_68 [1] : vector<8x8xf32> to vector<8xf32>
    %221 = vector.shape_cast %220 : vector<8xf32> to vector<8x1xf32>
    %222 = tpu.reciprocal %221 {approx = true} : vector<8x1xf32> -> vector<8x1xf32>
    %223 = vector.broadcast %222 : vector<8x1xf32> to vector<8x8xf32>
    %224 = arith.mulf %219, %223 : vector<8x8xf32>
    %cst_69 = arith.constant dense<0.000000e+00> : vector<8x8xf32>
    %225 = tpu.matmul %224, %209, %cst_69 {dimension_numbers = #tpu.dot_dimension_numbers<[1], [0], [0], [1], [0, 0, 1, 1], [], []>} : vector<8x8xf32>, vector<8x8xf32>, vector<8x8xf32> -> vector<8x8xf32>
    %226 = tpu.concatenate %168, %187, %206, %225 in 1 : vector<8x8xf32>, vector<8x8xf32>, vector<8x8xf32>, vector<8x8xf32> -> vector<8x32xf32>
    %227 = tpu.concatenate %145, %226 in 0 : vector<8x32xf32>, vector<8x32xf32> -> vector<16x32xf32>
    %c0_70 = arith.constant 0 : index
    %c0_71 = arith.constant 0 : index
    %c0_72 = arith.constant 0 : index
    %228 = vector.load %arg10[%c0_70, %c0_71, %c0_72] : memref<2x32x32xf32, #tpu.memory_space<vmem>>, vector<1x32x32xf32>
    %229 = vector.shape_cast %228 : vector<1x32x32xf32> to vector<32x32xf32>
    %cst_73 = arith.constant dense<0.000000e+00> : vector<16x32xf32>
    %230 = tpu.matmul %227, %229, %cst_73 {dimension_numbers = #tpu.dot_dimension_numbers<[1], [0], [0], [1], [0, 0, 1, 1], [], []>} : vector<16x32xf32>, vector<32x32xf32>, vector<16x32xf32> -> vector<16x32xf32>
    %c0_74 = arith.constant 0 : index
    %c0_75 = arith.constant 0 : index
    %c0_76 = arith.constant 0 : index
    %231 = vector.load %arg11[%c0_74, %c0_75, %c0_76] : memref<2x1x32xf32, #tpu.memory_space<vmem>>, vector<1x1x32xf32>
    %232 = vector.shape_cast %231 : vector<1x1x32xf32> to vector<1x32xf32>
    %233 = vector.broadcast %232 : vector<1x32xf32> to vector<16x32xf32>
    %234 = arith.addf %230, %233 : vector<16x32xf32>
    %235 = arith.addf %234, %51 : vector<16x32xf32>
    %c0_77 = arith.constant 0 : index
    %c0_78 = arith.constant 0 : index
    %c0_79 = arith.constant 0 : index
    %236 = vector.load %arg12[%c0_77, %c0_78, %c0_79] : memref<2x1x32xf32, #tpu.memory_space<vmem>>, vector<1x1x32xf32>
    %237 = vector.shape_cast %236 : vector<1x1x32xf32> to vector<1x32xf32>
    %c0_80 = arith.constant 0 : index
    %c0_81 = arith.constant 0 : index
    %c0_82 = arith.constant 0 : index
    %238 = vector.load %arg13[%c0_80, %c0_81, %c0_82] : memref<2x1x32xf32, #tpu.memory_space<vmem>>, vector<1x1x32xf32>
    %239 = vector.shape_cast %238 : vector<1x1x32xf32> to vector<1x32xf32>
    %cst_83 = arith.constant dense<0.000000e+00> : vector<16xf32>
    %240 = vector.multi_reduction <add>, %235, %cst_83 [1] : vector<16x32xf32> to vector<16xf32>
    %241 = vector.shape_cast %240 : vector<16xf32> to vector<16x1xf32>
    %cst_84 = arith.constant 3.200000e+01 : f32
    %242 = vector.broadcast %cst_84 : f32 to vector<16x1xf32>
    %243 = arith.divf %241, %242 : vector<16x1xf32>
    %244 = vector.broadcast %243 : vector<16x1xf32> to vector<16x32xf32>
    %245 = arith.subf %235, %244 : vector<16x32xf32>
    %246 = arith.mulf %245, %245 : vector<16x32xf32>
    %cst_85 = arith.constant dense<0.000000e+00> : vector<16xf32>
    %247 = vector.multi_reduction <add>, %246, %cst_85 [1] : vector<16x32xf32> to vector<16xf32>
    %248 = vector.shape_cast %247 : vector<16xf32> to vector<16x1xf32>
    %cst_86 = arith.constant 3.200000e+01 : f32
    %249 = vector.broadcast %cst_86 : f32 to vector<16x1xf32>
    %250 = arith.divf %248, %249 : vector<16x1xf32>
    %cst_87 = arith.constant 9.99999996E-13 : f32
    %251 = vector.broadcast %cst_87 : f32 to vector<16x1xf32>
    %252 = arith.addf %250, %251 : vector<16x1xf32>
    %253 = math.rsqrt %252 : vector<16x1xf32>
    %254 = vector.broadcast %253 : vector<16x1xf32> to vector<16x32xf32>
    %255 = arith.mulf %245, %254 : vector<16x32xf32>
    %256 = vector.broadcast %237 : vector<1x32xf32> to vector<16x32xf32>
    %257 = arith.mulf %255, %256 : vector<16x32xf32>
    %258 = vector.broadcast %239 : vector<1x32xf32> to vector<16x32xf32>
    %259 = arith.addf %257, %258 : vector<16x32xf32>
    %c0_88 = arith.constant 0 : index
    %c0_89 = arith.constant 0 : index
    %c0_90 = arith.constant 0 : index
    %260 = vector.load %arg14[%c0_88, %c0_89, %c0_90] : memref<2x32x64xf32, #tpu.memory_space<vmem>>, vector<1x32x64xf32>
    %261 = vector.shape_cast %260 : vector<1x32x64xf32> to vector<32x64xf32>
    %cst_91 = arith.constant dense<0.000000e+00> : vector<16x64xf32>
    %262 = tpu.matmul %259, %261, %cst_91 {dimension_numbers = #tpu.dot_dimension_numbers<[1], [0], [0], [1], [0, 0, 1, 1], [], []>} : vector<16x32xf32>, vector<32x64xf32>, vector<16x64xf32> -> vector<16x64xf32>
    %c0_92 = arith.constant 0 : index
    %c0_93 = arith.constant 0 : index
    %c0_94 = arith.constant 0 : index
    %263 = vector.load %arg15[%c0_92, %c0_93, %c0_94] : memref<2x1x64xf32, #tpu.memory_space<vmem>>, vector<1x1x64xf32>
    %264 = vector.shape_cast %263 : vector<1x1x64xf32> to vector<1x64xf32>
    %265 = vector.broadcast %264 : vector<1x64xf32> to vector<16x64xf32>
    %266 = arith.addf %262, %265 : vector<16x64xf32>
    %cst_95 = arith.constant 5.000000e-01 : f32
    %267 = vector.broadcast %cst_95 : f32 to vector<16x64xf32>
    %268 = arith.mulf %267, %266 : vector<16x64xf32>
    %cst_96 = arith.constant 4.471500e-02 : f32
    %269 = vector.broadcast %cst_96 : f32 to vector<16x64xf32>
    %270 = arith.mulf %269, %266 : vector<16x64xf32>
    %271 = arith.mulf %270, %266 : vector<16x64xf32>
    %272 = arith.mulf %271, %266 : vector<16x64xf32>
    %273 = arith.addf %266, %272 : vector<16x64xf32>
    %cst_97 = arith.constant 0.797884583 : f32
    %274 = vector.broadcast %cst_97 : f32 to vector<16x64xf32>
    %275 = arith.mulf %274, %273 : vector<16x64xf32>
    %276 = math.tanh %275 : vector<16x64xf32>
    %cst_98 = arith.constant 1.000000e+00 : f32
    %277 = vector.broadcast %cst_98 : f32 to vector<16x64xf32>
    %278 = arith.addf %277, %276 : vector<16x64xf32>
    %279 = arith.mulf %268, %278 : vector<16x64xf32>
    %c0_99 = arith.constant 0 : index
    %c0_100 = arith.constant 0 : index
    %c0_101 = arith.constant 0 : index
    %280 = vector.load %arg16[%c0_99, %c0_100, %c0_101] : memref<2x64x32xf32, #tpu.memory_space<vmem>>, vector<1x64x32xf32>
    %281 = vector.shape_cast %280 : vector<1x64x32xf32> to vector<64x32xf32>
    %cst_102 = arith.constant dense<0.000000e+00> : vector<16x32xf32>
    %282 = tpu.matmul %279, %281, %cst_102 {dimension_numbers = #tpu.dot_dimension_numbers<[1], [0], [0], [1], [0, 0, 1, 1], [], []>} : vector<16x64xf32>, vector<64x32xf32>, vector<16x32xf32> -> vector<16x32xf32>
    %c0_103 = arith.constant 0 : index
    %c0_104 = arith.constant 0 : index
    %c0_105 = arith.constant 0 : index
    %283 = vector.load %arg17[%c0_103, %c0_104, %c0_105] : memref<2x1x32xf32, #tpu.memory_space<vmem>>, vector<1x1x32xf32>
    %284 = vector.shape_cast %283 : vector<1x1x32xf32> to vector<1x32xf32>
    %285 = vector.broadcast %284 : vector<1x32xf32> to vector<16x32xf32>
    %286 = arith.addf %282, %285 : vector<16x32xf32>
    %287 = arith.addf %286, %259 : vector<16x32xf32>
    %c0_106 = arith.constant 0 : index
    %c0_107 = arith.constant 0 : index
    %c0_108 = arith.constant 0 : index
    %288 = vector.load %arg18[%c0_106, %c0_107, %c0_108] : memref<2x1x32xf32, #tpu.memory_space<vmem>>, vector<1x1x32xf32>
    %289 = vector.shape_cast %288 : vector<1x1x32xf32> to vector<1x32xf32>
    %c0_109 = arith.constant 0 : index
    %c0_110 = arith.constant 0 : index
    %c0_111 = arith.constant 0 : index
    %290 = vector.load %arg19[%c0_109, %c0_110, %c0_111] : memref<2x1x32xf32, #tpu.memory_space<vmem>>, vector<1x1x32xf32>
    %291 = vector.shape_cast %290 : vector<1x1x32xf32> to vector<1x32xf32>
    %cst_112 = arith.constant dense<0.000000e+00> : vector<16xf32>
    %292 = vector.multi_reduction <add>, %287, %cst_112 [1] : vector<16x32xf32> to vector<16xf32>
    %293 = vector.shape_cast %292 : vector<16xf32> to vector<16x1xf32>
    %cst_113 = arith.constant 3.200000e+01 : f32
    %294 = vector.broadcast %cst_113 : f32 to vector<16x1xf32>
    %295 = arith.divf %293, %294 : vector<16x1xf32>
    %296 = vector.broadcast %295 : vector<16x1xf32> to vector<16x32xf32>
    %297 = arith.subf %287, %296 : vector<16x32xf32>
    %298 = arith.mulf %297, %297 : vector<16x32xf32>
    %cst_114 = arith.constant dense<0.000000e+00> : vector<16xf32>
    %299 = vector.multi_reduction <add>, %298, %cst_114 [1] : vector<16x32xf32> to vector<16xf32>
    %300 = vector.shape_cast %299 : vector<16xf32> to vector<16x1xf32>
    %cst_115 = arith.constant 3.200000e+01 : f32
    %301 = vector.broadcast %cst_115 : f32 to vector<16x1xf32>
    %302 = arith.divf %300, %301 : vector<16x1xf32>
    %cst_116 = arith.constant 9.99999996E-13 : f32
    %303 = vector.broadcast %cst_116 : f32 to vector<16x1xf32>
    %304 = arith.addf %302, %303 : vector<16x1xf32>
    %305 = math.rsqrt %304 : vector<16x1xf32>
    %306 = vector.broadcast %305 : vector<16x1xf32> to vector<16x32xf32>
    %307 = arith.mulf %297, %306 : vector<16x32xf32>
    %308 = vector.broadcast %289 : vector<1x32xf32> to vector<16x32xf32>
    %309 = arith.mulf %307, %308 : vector<16x32xf32>
    %310 = vector.broadcast %291 : vector<1x32xf32> to vector<16x32xf32>
    %311 = arith.addf %309, %310 : vector<16x32xf32>
    %c1_117 = arith.constant 1 : index
    %c0_118 = arith.constant 0 : index
    %c0_119 = arith.constant 0 : index
    %312 = vector.load %arg8[%c1_117, %c0_118, %c0_119] : memref<2x32x96xf32, #tpu.memory_space<vmem>>, vector<1x32x96xf32>
    %313 = vector.shape_cast %312 : vector<1x32x96xf32> to vector<32x96xf32>
    %cst_120 = arith.constant dense<0.000000e+00> : vector<16x96xf32>
    %314 = tpu.matmul %311, %313, %cst_120 {dimension_numbers = #tpu.dot_dimension_numbers<[1], [0], [0], [1], [0, 0, 1, 1], [], []>} : vector<16x32xf32>, vector<32x96xf32>, vector<16x96xf32> -> vector<16x96xf32>
    %c1_121 = arith.constant 1 : index
    %c0_122 = arith.constant 0 : index
    %c0_123 = arith.constant 0 : index
    %315 = vector.load %arg9[%c1_121, %c0_122, %c0_123] : memref<2x1x96xf32, #tpu.memory_space<vmem>>, vector<1x1x96xf32>
    %316 = vector.shape_cast %315 : vector<1x1x96xf32> to vector<1x96xf32>
    %317 = vector.broadcast %316 : vector<1x96xf32> to vector<16x96xf32>
    %318 = arith.addf %314, %317 : vector<16x96xf32>
    %319 = vector.extract_strided_slice %318 {offsets = [0, 0], sizes = [8, 32], strides = [1, 1]} : vector<16x96xf32> to vector<8x32xf32>
    %320 = vector.extract_strided_slice %318 {offsets = [0, 32], sizes = [8, 32], strides = [1, 1]} : vector<16x96xf32> to vector<8x32xf32>
    %321 = vector.extract_strided_slice %318 {offsets = [0, 64], sizes = [8, 32], strides = [1, 1]} : vector<16x96xf32> to vector<8x32xf32>
    %322 = vector.extract_strided_slice %57 {offsets = [0, 0], sizes = [1, 8], strides = [1, 1]} : vector<2x8xf32> to vector<1x8xf32>
    %323 = vector.extract_strided_slice %319 {offsets = [0, 0], sizes = [8, 8], strides = [1, 1]} : vector<8x32xf32> to vector<8x8xf32>
    %324 = vector.extract_strided_slice %320 {offsets = [0, 0], sizes = [8, 8], strides = [1, 1]} : vector<8x32xf32> to vector<8x8xf32>
    %325 = vector.extract_strided_slice %321 {offsets = [0, 0], sizes = [8, 8], strides = [1, 1]} : vector<8x32xf32> to vector<8x8xf32>
    %cst_124 = arith.constant dense<0.000000e+00> : vector<8x8xf32>
    %326 = tpu.matmul %323, %324, %cst_124 {dimension_numbers = #tpu.dot_dimension_numbers<[1], [1], [0], [0], [0, 0, 1, 0], [], []>} : vector<8x8xf32>, vector<8x8xf32>, vector<8x8xf32> -> vector<8x8xf32>
    %cst_125 = arith.constant 0.353553385 : f32
    %327 = vector.broadcast %cst_125 : f32 to vector<8x8xf32>
    %328 = arith.mulf %326, %327 : vector<8x8xf32>
    %329 = vector.broadcast %322 : vector<1x8xf32> to vector<8x8xf32>
    %330 = arith.addf %328, %329 : vector<8x8xf32>
    %cst_126 = arith.constant dense<0xFF800000> : vector<8xf32>
    %331 = vector.multi_reduction <maximumf>, %330, %cst_126 [1] : vector<8x8xf32> to vector<8xf32>
    %332 = vector.shape_cast %331 : vector<8xf32> to vector<8x1xf32>
    %333 = vector.broadcast %332 : vector<8x1xf32> to vector<8x8xf32>
    %334 = arith.subf %330, %333 : vector<8x8xf32>
    %335 = math.exp %334 : vector<8x8xf32>
    %cst_127 = arith.constant dense<0.000000e+00> : vector<8xf32>
    %336 = vector.multi_reduction <add>, %335, %cst_127 [1] : vector<8x8xf32> to vector<8xf32>
    %337 = vector.shape_cast %336 : vector<8xf32> to vector<8x1xf32>
    %338 = tpu.reciprocal %337 {approx = true} : vector<8x1xf32> -> vector<8x1xf32>
    %339 = vector.broadcast %338 : vector<8x1xf32> to vector<8x8xf32>
    %340 = arith.mulf %335, %339 : vector<8x8xf32>
    %cst_128 = arith.constant dense<0.000000e+00> : vector<8x8xf32>
    %341 = tpu.matmul %340, %325, %cst_128 {dimension_numbers = #tpu.dot_dimension_numbers<[1], [0], [0], [1], [0, 0, 1, 1], [], []>} : vector<8x8xf32>, vector<8x8xf32>, vector<8x8xf32> -> vector<8x8xf32>
    %342 = vector.extract_strided_slice %319 {offsets = [0, 8], sizes = [8, 8], strides = [1, 1]} : vector<8x32xf32> to vector<8x8xf32>
    %343 = vector.extract_strided_slice %320 {offsets = [0, 8], sizes = [8, 8], strides = [1, 1]} : vector<8x32xf32> to vector<8x8xf32>
    %344 = vector.extract_strided_slice %321 {offsets = [0, 8], sizes = [8, 8], strides = [1, 1]} : vector<8x32xf32> to vector<8x8xf32>
    %cst_129 = arith.constant dense<0.000000e+00> : vector<8x8xf32>
    %345 = tpu.matmul %342, %343, %cst_129 {dimension_numbers = #tpu.dot_dimension_numbers<[1], [1], [0], [0], [0, 0, 1, 0], [], []>} : vector<8x8xf32>, vector<8x8xf32>, vector<8x8xf32> -> vector<8x8xf32>
    %cst_130 = arith.constant 0.353553385 : f32
    %346 = vector.broadcast %cst_130 : f32 to vector<8x8xf32>
    %347 = arith.mulf %345, %346 : vector<8x8xf32>
    %348 = vector.broadcast %322 : vector<1x8xf32> to vector<8x8xf32>
    %349 = arith.addf %347, %348 : vector<8x8xf32>
    %cst_131 = arith.constant dense<0xFF800000> : vector<8xf32>
    %350 = vector.multi_reduction <maximumf>, %349, %cst_131 [1] : vector<8x8xf32> to vector<8xf32>
    %351 = vector.shape_cast %350 : vector<8xf32> to vector<8x1xf32>
    %352 = vector.broadcast %351 : vector<8x1xf32> to vector<8x8xf32>
    %353 = arith.subf %349, %352 : vector<8x8xf32>
    %354 = math.exp %353 : vector<8x8xf32>
    %cst_132 = arith.constant dense<0.000000e+00> : vector<8xf32>
    %355 = vector.multi_reduction <add>, %354, %cst_132 [1] : vector<8x8xf32> to vector<8xf32>
    %356 = vector.shape_cast %355 : vector<8xf32> to vector<8x1xf32>
    %357 = tpu.reciprocal %356 {approx = true} : vector<8x1xf32> -> vector<8x1xf32>
    %358 = vector.broadcast %357 : vector<8x1xf32> to vector<8x8xf32>
    %359 = arith.mulf %354, %358 : vector<8x8xf32>
    %cst_133 = arith.constant dense<0.000000e+00> : vector<8x8xf32>
    %360 = tpu.matmul %359, %344, %cst_133 {dimension_numbers = #tpu.dot_dimension_numbers<[1], [0], [0], [1], [0, 0, 1, 1], [], []>} : vector<8x8xf32>, vector<8x8xf32>, vector<8x8xf32> -> vector<8x8xf32>
    %361 = vector.extract_strided_slice %319 {offsets = [0, 16], sizes = [8, 8], strides = [1, 1]} : vector<8x32xf32> to vector<8x8xf32>
    %362 = vector.extract_strided_slice %320 {offsets = [0, 16], sizes = [8, 8], strides = [1, 1]} : vector<8x32xf32> to vector<8x8xf32>
    %363 = vector.extract_strided_slice %321 {offsets = [0, 16], sizes = [8, 8], strides = [1, 1]} : vector<8x32xf32> to vector<8x8xf32>
    %cst_134 = arith.constant dense<0.000000e+00> : vector<8x8xf32>
    %364 = tpu.matmul %361, %362, %cst_134 {dimension_numbers = #tpu.dot_dimension_numbers<[1], [1], [0], [0], [0, 0, 1, 0], [], []>} : vector<8x8xf32>, vector<8x8xf32>, vector<8x8xf32> -> vector<8x8xf32>
    %cst_135 = arith.constant 0.353553385 : f32
    %365 = vector.broadcast %cst_135 : f32 to vector<8x8xf32>
    %366 = arith.mulf %364, %365 : vector<8x8xf32>
    %367 = vector.broadcast %322 : vector<1x8xf32> to vector<8x8xf32>
    %368 = arith.addf %366, %367 : vector<8x8xf32>
    %cst_136 = arith.constant dense<0xFF800000> : vector<8xf32>
    %369 = vector.multi_reduction <maximumf>, %368, %cst_136 [1] : vector<8x8xf32> to vector<8xf32>
    %370 = vector.shape_cast %369 : vector<8xf32> to vector<8x1xf32>
    %371 = vector.broadcast %370 : vector<8x1xf32> to vector<8x8xf32>
    %372 = arith.subf %368, %371 : vector<8x8xf32>
    %373 = math.exp %372 : vector<8x8xf32>
    %cst_137 = arith.constant dense<0.000000e+00> : vector<8xf32>
    %374 = vector.multi_reduction <add>, %373, %cst_137 [1] : vector<8x8xf32> to vector<8xf32>
    %375 = vector.shape_cast %374 : vector<8xf32> to vector<8x1xf32>
    %376 = tpu.reciprocal %375 {approx = true} : vector<8x1xf32> -> vector<8x1xf32>
    %377 = vector.broadcast %376 : vector<8x1xf32> to vector<8x8xf32>
    %378 = arith.mulf %373, %377 : vector<8x8xf32>
    %cst_138 = arith.constant dense<0.000000e+00> : vector<8x8xf32>
    %379 = tpu.matmul %378, %363, %cst_138 {dimension_numbers = #tpu.dot_dimension_numbers<[1], [0], [0], [1], [0, 0, 1, 1], [], []>} : vector<8x8xf32>, vector<8x8xf32>, vector<8x8xf32> -> vector<8x8xf32>
    %380 = vector.extract_strided_slice %319 {offsets = [0, 24], sizes = [8, 8], strides = [1, 1]} : vector<8x32xf32> to vector<8x8xf32>
    %381 = vector.extract_strided_slice %320 {offsets = [0, 24], sizes = [8, 8], strides = [1, 1]} : vector<8x32xf32> to vector<8x8xf32>
    %382 = vector.extract_strided_slice %321 {offsets = [0, 24], sizes = [8, 8], strides = [1, 1]} : vector<8x32xf32> to vector<8x8xf32>
    %cst_139 = arith.constant dense<0.000000e+00> : vector<8x8xf32>
    %383 = tpu.matmul %380, %381, %cst_139 {dimension_numbers = #tpu.dot_dimension_numbers<[1], [1], [0], [0], [0, 0, 1, 0], [], []>} : vector<8x8xf32>, vector<8x8xf32>, vector<8x8xf32> -> vector<8x8xf32>
    %cst_140 = arith.constant 0.353553385 : f32
    %384 = vector.broadcast %cst_140 : f32 to vector<8x8xf32>
    %385 = arith.mulf %383, %384 : vector<8x8xf32>
    %386 = vector.broadcast %322 : vector<1x8xf32> to vector<8x8xf32>
    %387 = arith.addf %385, %386 : vector<8x8xf32>
    %cst_141 = arith.constant dense<0xFF800000> : vector<8xf32>
    %388 = vector.multi_reduction <maximumf>, %387, %cst_141 [1] : vector<8x8xf32> to vector<8xf32>
    %389 = vector.shape_cast %388 : vector<8xf32> to vector<8x1xf32>
    %390 = vector.broadcast %389 : vector<8x1xf32> to vector<8x8xf32>
    %391 = arith.subf %387, %390 : vector<8x8xf32>
    %392 = math.exp %391 : vector<8x8xf32>
    %cst_142 = arith.constant dense<0.000000e+00> : vector<8xf32>
    %393 = vector.multi_reduction <add>, %392, %cst_142 [1] : vector<8x8xf32> to vector<8xf32>
    %394 = vector.shape_cast %393 : vector<8xf32> to vector<8x1xf32>
    %395 = tpu.reciprocal %394 {approx = true} : vector<8x1xf32> -> vector<8x1xf32>
    %396 = vector.broadcast %395 : vector<8x1xf32> to vector<8x8xf32>
    %397 = arith.mulf %392, %396 : vector<8x8xf32>
    %cst_143 = arith.constant dense<0.000000e+00> : vector<8x8xf32>
    %398 = tpu.matmul %397, %382, %cst_143 {dimension_numbers = #tpu.dot_dimension_numbers<[1], [0], [0], [1], [0, 0, 1, 1], [], []>} : vector<8x8xf32>, vector<8x8xf32>, vector<8x8xf32> -> vector<8x8xf32>
    %399 = tpu.concatenate %341, %360, %379, %398 in 1 : vector<8x8xf32>, vector<8x8xf32>, vector<8x8xf32>, vector<8x8xf32> -> vector<8x32xf32>
    %400 = vector.extract_strided_slice %318 {offsets = [8, 0], sizes = [8, 32], strides = [1, 1]} : vector<16x96xf32> to vector<8x32xf32>
    %401 = vector.extract_strided_slice %318 {offsets = [8, 32], sizes = [8, 32], strides = [1, 1]} : vector<16x96xf32> to vector<8x32xf32>
    %402 = vector.extract_strided_slice %318 {offsets = [8, 64], sizes = [8, 32], strides = [1, 1]} : vector<16x96xf32> to vector<8x32xf32>
    %403 = vector.extract_strided_slice %57 {offsets = [1, 0], sizes = [1, 8], strides = [1, 1]} : vector<2x8xf32> to vector<1x8xf32>
    %404 = vector.extract_strided_slice %400 {offsets = [0, 0], sizes = [8, 8], strides = [1, 1]} : vector<8x32xf32> to vector<8x8xf32>
    %405 = vector.extract_strided_slice %401 {offsets = [0, 0], sizes = [8, 8], strides = [1, 1]} : vector<8x32xf32> to vector<8x8xf32>
    %406 = vector.extract_strided_slice %402 {offsets = [0, 0], sizes = [8, 8], strides = [1, 1]} : vector<8x32xf32> to vector<8x8xf32>
    %cst_144 = arith.constant dense<0.000000e+00> : vector<8x8xf32>
    %407 = tpu.matmul %404, %405, %cst_144 {dimension_numbers = #tpu.dot_dimension_numbers<[1], [1], [0], [0], [0, 0, 1, 0], [], []>} : vector<8x8xf32>, vector<8x8xf32>, vector<8x8xf32> -> vector<8x8xf32>
    %cst_145 = arith.constant 0.353553385 : f32
    %408 = vector.broadcast %cst_145 : f32 to vector<8x8xf32>
    %409 = arith.mulf %407, %408 : vector<8x8xf32>
    %410 = vector.broadcast %403 : vector<1x8xf32> to vector<8x8xf32>
    %411 = arith.addf %409, %410 : vector<8x8xf32>
    %cst_146 = arith.constant dense<0xFF800000> : vector<8xf32>
    %412 = vector.multi_reduction <maximumf>, %411, %cst_146 [1] : vector<8x8xf32> to vector<8xf32>
    %413 = vector.shape_cast %412 : vector<8xf32> to vector<8x1xf32>
    %414 = vector.broadcast %413 : vector<8x1xf32> to vector<8x8xf32>
    %415 = arith.subf %411, %414 : vector<8x8xf32>
    %416 = math.exp %415 : vector<8x8xf32>
    %cst_147 = arith.constant dense<0.000000e+00> : vector<8xf32>
    %417 = vector.multi_reduction <add>, %416, %cst_147 [1] : vector<8x8xf32> to vector<8xf32>
    %418 = vector.shape_cast %417 : vector<8xf32> to vector<8x1xf32>
    %419 = tpu.reciprocal %418 {approx = true} : vector<8x1xf32> -> vector<8x1xf32>
    %420 = vector.broadcast %419 : vector<8x1xf32> to vector<8x8xf32>
    %421 = arith.mulf %416, %420 : vector<8x8xf32>
    %cst_148 = arith.constant dense<0.000000e+00> : vector<8x8xf32>
    %422 = tpu.matmul %421, %406, %cst_148 {dimension_numbers = #tpu.dot_dimension_numbers<[1], [0], [0], [1], [0, 0, 1, 1], [], []>} : vector<8x8xf32>, vector<8x8xf32>, vector<8x8xf32> -> vector<8x8xf32>
    %423 = vector.extract_strided_slice %400 {offsets = [0, 8], sizes = [8, 8], strides = [1, 1]} : vector<8x32xf32> to vector<8x8xf32>
    %424 = vector.extract_strided_slice %401 {offsets = [0, 8], sizes = [8, 8], strides = [1, 1]} : vector<8x32xf32> to vector<8x8xf32>
    %425 = vector.extract_strided_slice %402 {offsets = [0, 8], sizes = [8, 8], strides = [1, 1]} : vector<8x32xf32> to vector<8x8xf32>
    %cst_149 = arith.constant dense<0.000000e+00> : vector<8x8xf32>
    %426 = tpu.matmul %423, %424, %cst_149 {dimension_numbers = #tpu.dot_dimension_numbers<[1], [1], [0], [0], [0, 0, 1, 0], [], []>} : vector<8x8xf32>, vector<8x8xf32>, vector<8x8xf32> -> vector<8x8xf32>
    %cst_150 = arith.constant 0.353553385 : f32
    %427 = vector.broadcast %cst_150 : f32 to vector<8x8xf32>
    %428 = arith.mulf %426, %427 : vector<8x8xf32>
    %429 = vector.broadcast %403 : vector<1x8xf32> to vector<8x8xf32>
    %430 = arith.addf %428, %429 : vector<8x8xf32>
    %cst_151 = arith.constant dense<0xFF800000> : vector<8xf32>
    %431 = vector.multi_reduction <maximumf>, %430, %cst_151 [1] : vector<8x8xf32> to vector<8xf32>
    %432 = vector.shape_cast %431 : vector<8xf32> to vector<8x1xf32>
    %433 = vector.broadcast %432 : vector<8x1xf32> to vector<8x8xf32>
    %434 = arith.subf %430, %433 : vector<8x8xf32>
    %435 = math.exp %434 : vector<8x8xf32>
    %cst_152 = arith.constant dense<0.000000e+00> : vector<8xf32>
    %436 = vector.multi_reduction <add>, %435, %cst_152 [1] : vector<8x8xf32> to vector<8xf32>
    %437 = vector.shape_cast %436 : vector<8xf32> to vector<8x1xf32>
    %438 = tpu.reciprocal %437 {approx = true} : vector<8x1xf32> -> vector<8x1xf32>
    %439 = vector.broadcast %438 : vector<8x1xf32> to vector<8x8xf32>
    %440 = arith.mulf %435, %439 : vector<8x8xf32>
    %cst_153 = arith.constant dense<0.000000e+00> : vector<8x8xf32>
    %441 = tpu.matmul %440, %425, %cst_153 {dimension_numbers = #tpu.dot_dimension_numbers<[1], [0], [0], [1], [0, 0, 1, 1], [], []>} : vector<8x8xf32>, vector<8x8xf32>, vector<8x8xf32> -> vector<8x8xf32>
    %442 = vector.extract_strided_slice %400 {offsets = [0, 16], sizes = [8, 8], strides = [1, 1]} : vector<8x32xf32> to vector<8x8xf32>
    %443 = vector.extract_strided_slice %401 {offsets = [0, 16], sizes = [8, 8], strides = [1, 1]} : vector<8x32xf32> to vector<8x8xf32>
    %444 = vector.extract_strided_slice %402 {offsets = [0, 16], sizes = [8, 8], strides = [1, 1]} : vector<8x32xf32> to vector<8x8xf32>
    %cst_154 = arith.constant dense<0.000000e+00> : vector<8x8xf32>
    %445 = tpu.matmul %442, %443, %cst_154 {dimension_numbers = #tpu.dot_dimension_numbers<[1], [1], [0], [0], [0, 0, 1, 0], [], []>} : vector<8x8xf32>, vector<8x8xf32>, vector<8x8xf32> -> vector<8x8xf32>
    %cst_155 = arith.constant 0.353553385 : f32
    %446 = vector.broadcast %cst_155 : f32 to vector<8x8xf32>
    %447 = arith.mulf %445, %446 : vector<8x8xf32>
    %448 = vector.broadcast %403 : vector<1x8xf32> to vector<8x8xf32>
    %449 = arith.addf %447, %448 : vector<8x8xf32>
    %cst_156 = arith.constant dense<0xFF800000> : vector<8xf32>
    %450 = vector.multi_reduction <maximumf>, %449, %cst_156 [1] : vector<8x8xf32> to vector<8xf32>
    %451 = vector.shape_cast %450 : vector<8xf32> to vector<8x1xf32>
    %452 = vector.broadcast %451 : vector<8x1xf32> to vector<8x8xf32>
    %453 = arith.subf %449, %452 : vector<8x8xf32>
    %454 = math.exp %453 : vector<8x8xf32>
    %cst_157 = arith.constant dense<0.000000e+00> : vector<8xf32>
    %455 = vector.multi_reduction <add>, %454, %cst_157 [1] : vector<8x8xf32> to vector<8xf32>
    %456 = vector.shape_cast %455 : vector<8xf32> to vector<8x1xf32>
    %457 = tpu.reciprocal %456 {approx = true} : vector<8x1xf32> -> vector<8x1xf32>
    %458 = vector.broadcast %457 : vector<8x1xf32> to vector<8x8xf32>
    %459 = arith.mulf %454, %458 : vector<8x8xf32>
    %cst_158 = arith.constant dense<0.000000e+00> : vector<8x8xf32>
    %460 = tpu.matmul %459, %444, %cst_158 {dimension_numbers = #tpu.dot_dimension_numbers<[1], [0], [0], [1], [0, 0, 1, 1], [], []>} : vector<8x8xf32>, vector<8x8xf32>, vector<8x8xf32> -> vector<8x8xf32>
    %461 = vector.extract_strided_slice %400 {offsets = [0, 24], sizes = [8, 8], strides = [1, 1]} : vector<8x32xf32> to vector<8x8xf32>
    %462 = vector.extract_strided_slice %401 {offsets = [0, 24], sizes = [8, 8], strides = [1, 1]} : vector<8x32xf32> to vector<8x8xf32>
    %463 = vector.extract_strided_slice %402 {offsets = [0, 24], sizes = [8, 8], strides = [1, 1]} : vector<8x32xf32> to vector<8x8xf32>
    %cst_159 = arith.constant dense<0.000000e+00> : vector<8x8xf32>
    %464 = tpu.matmul %461, %462, %cst_159 {dimension_numbers = #tpu.dot_dimension_numbers<[1], [1], [0], [0], [0, 0, 1, 0], [], []>} : vector<8x8xf32>, vector<8x8xf32>, vector<8x8xf32> -> vector<8x8xf32>
    %cst_160 = arith.constant 0.353553385 : f32
    %465 = vector.broadcast %cst_160 : f32 to vector<8x8xf32>
    %466 = arith.mulf %464, %465 : vector<8x8xf32>
    %467 = vector.broadcast %403 : vector<1x8xf32> to vector<8x8xf32>
    %468 = arith.addf %466, %467 : vector<8x8xf32>
    %cst_161 = arith.constant dense<0xFF800000> : vector<8xf32>
    %469 = vector.multi_reduction <maximumf>, %468, %cst_161 [1] : vector<8x8xf32> to vector<8xf32>
    %470 = vector.shape_cast %469 : vector<8xf32> to vector<8x1xf32>
    %471 = vector.broadcast %470 : vector<8x1xf32> to vector<8x8xf32>
    %472 = arith.subf %468, %471 : vector<8x8xf32>
    %473 = math.exp %472 : vector<8x8xf32>
    %cst_162 = arith.constant dense<0.000000e+00> : vector<8xf32>
    %474 = vector.multi_reduction <add>, %473, %cst_162 [1] : vector<8x8xf32> to vector<8xf32>
    %475 = vector.shape_cast %474 : vector<8xf32> to vector<8x1xf32>
    %476 = tpu.reciprocal %475 {approx = true} : vector<8x1xf32> -> vector<8x1xf32>
    %477 = vector.broadcast %476 : vector<8x1xf32> to vector<8x8xf32>
    %478 = arith.mulf %473, %477 : vector<8x8xf32>
    %cst_163 = arith.constant dense<0.000000e+00> : vector<8x8xf32>
    %479 = tpu.matmul %478, %463, %cst_163 {dimension_numbers = #tpu.dot_dimension_numbers<[1], [0], [0], [1], [0, 0, 1, 1], [], []>} : vector<8x8xf32>, vector<8x8xf32>, vector<8x8xf32> -> vector<8x8xf32>
    %480 = tpu.concatenate %422, %441, %460, %479 in 1 : vector<8x8xf32>, vector<8x8xf32>, vector<8x8xf32>, vector<8x8xf32> -> vector<8x32xf32>
    %481 = tpu.concatenate %399, %480 in 0 : vector<8x32xf32>, vector<8x32xf32> -> vector<16x32xf32>
    %c1_164 = arith.constant 1 : index
    %c0_165 = arith.constant 0 : index
    %c0_166 = arith.constant 0 : index
    %482 = vector.load %arg10[%c1_164, %c0_165, %c0_166] : memref<2x32x32xf32, #tpu.memory_space<vmem>>, vector<1x32x32xf32>
    %483 = vector.shape_cast %482 : vector<1x32x32xf32> to vector<32x32xf32>
    %cst_167 = arith.constant dense<0.000000e+00> : vector<16x32xf32>
    %484 = tpu.matmul %481, %483, %cst_167 {dimension_numbers = #tpu.dot_dimension_numbers<[1], [0], [0], [1], [0, 0, 1, 1], [], []>} : vector<16x32xf32>, vector<32x32xf32>, vector<16x32xf32> -> vector<16x32xf32>
    %c1_168 = arith.constant 1 : index
    %c0_169 = arith.constant 0 : index
    %c0_170 = arith.constant 0 : index
    %485 = vector.load %arg11[%c1_168, %c0_169, %c0_170] : memref<2x1x32xf32, #tpu.memory_space<vmem>>, vector<1x1x32xf32>
    %486 = vector.shape_cast %485 : vector<1x1x32xf32> to vector<1x32xf32>
    %487 = vector.broadcast %486 : vector<1x32xf32> to vector<16x32xf32>
    %488 = arith.addf %484, %487 : vector<16x32xf32>
    %489 = arith.addf %488, %311 : vector<16x32xf32>
    %c1_171 = arith.constant 1 : index
    %c0_172 = arith.constant 0 : index
    %c0_173 = arith.constant 0 : index
    %490 = vector.load %arg12[%c1_171, %c0_172, %c0_173] : memref<2x1x32xf32, #tpu.memory_space<vmem>>, vector<1x1x32xf32>
    %491 = vector.shape_cast %490 : vector<1x1x32xf32> to vector<1x32xf32>
    %c1_174 = arith.constant 1 : index
    %c0_175 = arith.constant 0 : index
    %c0_176 = arith.constant 0 : index
    %492 = vector.load %arg13[%c1_174, %c0_175, %c0_176] : memref<2x1x32xf32, #tpu.memory_space<vmem>>, vector<1x1x32xf32>
    %493 = vector.shape_cast %492 : vector<1x1x32xf32> to vector<1x32xf32>
    %cst_177 = arith.constant dense<0.000000e+00> : vector<16xf32>
    %494 = vector.multi_reduction <add>, %489, %cst_177 [1] : vector<16x32xf32> to vector<16xf32>
    %495 = vector.shape_cast %494 : vector<16xf32> to vector<16x1xf32>
    %cst_178 = arith.constant 3.200000e+01 : f32
    %496 = vector.broadcast %cst_178 : f32 to vector<16x1xf32>
    %497 = arith.divf %495, %496 : vector<16x1xf32>
    %498 = vector.broadcast %497 : vector<16x1xf32> to vector<16x32xf32>
    %499 = arith.subf %489, %498 : vector<16x32xf32>
    %500 = arith.mulf %499, %499 : vector<16x32xf32>
    %cst_179 = arith.constant dense<0.000000e+00> : vector<16xf32>
    %501 = vector.multi_reduction <add>, %500, %cst_179 [1] : vector<16x32xf32> to vector<16xf32>
    %502 = vector.shape_cast %501 : vector<16xf32> to vector<16x1xf32>
    %cst_180 = arith.constant 3.200000e+01 : f32
    %503 = vector.broadcast %cst_180 : f32 to vector<16x1xf32>
    %504 = arith.divf %502, %503 : vector<16x1xf32>
    %cst_181 = arith.constant 9.99999996E-13 : f32
    %505 = vector.broadcast %cst_181 : f32 to vector<16x1xf32>
    %506 = arith.addf %504, %505 : vector<16x1xf32>
    %507 = math.rsqrt %506 : vector<16x1xf32>
    %508 = vector.broadcast %507 : vector<16x1xf32> to vector<16x32xf32>
    %509 = arith.mulf %499, %508 : vector<16x32xf32>
    %510 = vector.broadcast %491 : vector<1x32xf32> to vector<16x32xf32>
    %511 = arith.mulf %509, %510 : vector<16x32xf32>
    %512 = vector.broadcast %493 : vector<1x32xf32> to vector<16x32xf32>
    %513 = arith.addf %511, %512 : vector<16x32xf32>
    %c1_182 = arith.constant 1 : index
    %c0_183 = arith.constant 0 : index
    %c0_184 = arith.constant 0 : index
    %514 = vector.load %arg14[%c1_182, %c0_183, %c0_184] : memref<2x32x64xf32, #tpu.memory_space<vmem>>, vector<1x32x64xf32>
    %515 = vector.shape_cast %514 : vector<1x32x64xf32> to vector<32x64xf32>
    %cst_185 = arith.constant dense<0.000000e+00> : vector<16x64xf32>
    %516 = tpu.matmul %513, %515, %cst_185 {dimension_numbers = #tpu.dot_dimension_numbers<[1], [0], [0], [1], [0, 0, 1, 1], [], []>} : vector<16x32xf32>, vector<32x64xf32>, vector<16x64xf32> -> vector<16x64xf32>
    %c1_186 = arith.constant 1 : index
    %c0_187 = arith.constant 0 : index
    %c0_188 = arith.constant 0 : index
    %517 = vector.load %arg15[%c1_186, %c0_187, %c0_188] : memref<2x1x64xf32, #tpu.memory_space<vmem>>, vector<1x1x64xf32>
    %518 = vector.shape_cast %517 : vector<1x1x64xf32> to vector<1x64xf32>
    %519 = vector.broadcast %518 : vector<1x64xf32> to vector<16x64xf32>
    %520 = arith.addf %516, %519 : vector<16x64xf32>
    %cst_189 = arith.constant 5.000000e-01 : f32
    %521 = vector.broadcast %cst_189 : f32 to vector<16x64xf32>
    %522 = arith.mulf %521, %520 : vector<16x64xf32>
    %cst_190 = arith.constant 4.471500e-02 : f32
    %523 = vector.broadcast %cst_190 : f32 to vector<16x64xf32>
    %524 = arith.mulf %523, %520 : vector<16x64xf32>
    %525 = arith.mulf %524, %520 : vector<16x64xf32>
    %526 = arith.mulf %525, %520 : vector<16x64xf32>
    %527 = arith.addf %520, %526 : vector<16x64xf32>
    %cst_191 = arith.constant 0.797884583 : f32
    %528 = vector.broadcast %cst_191 : f32 to vector<16x64xf32>
    %529 = arith.mulf %528, %527 : vector<16x64xf32>
    %530 = math.tanh %529 : vector<16x64xf32>
    %cst_192 = arith.constant 1.000000e+00 : f32
    %531 = vector.broadcast %cst_192 : f32 to vector<16x64xf32>
    %532 = arith.addf %531, %530 : vector<16x64xf32>
    %533 = arith.mulf %522, %532 : vector<16x64xf32>
    %c1_193 = arith.constant 1 : index
    %c0_194 = arith.constant 0 : index
    %c0_195 = arith.constant 0 : index
    %534 = vector.load %arg16[%c1_193, %c0_194, %c0_195] : memref<2x64x32xf32, #tpu.memory_space<vmem>>, vector<1x64x32xf32>
    %535 = vector.shape_cast %534 : vector<1x64x32xf32> to vector<64x32xf32>
    %cst_196 = arith.constant dense<0.000000e+00> : vector<16x32xf32>
    %536 = tpu.matmul %533, %535, %cst_196 {dimension_numbers = #tpu.dot_dimension_numbers<[1], [0], [0], [1], [0, 0, 1, 1], [], []>} : vector<16x64xf32>, vector<64x32xf32>, vector<16x32xf32> -> vector<16x32xf32>
    %c1_197 = arith.constant 1 : index
    %c0_198 = arith.constant 0 : index
    %c0_199 = arith.constant 0 : index
    %537 = vector.load %arg17[%c1_197, %c0_198, %c0_199] : memref<2x1x32xf32, #tpu.memory_space<vmem>>, vector<1x1x32xf32>
    %538 = vector.shape_cast %537 : vector<1x1x32xf32> to vector<1x32xf32>
    %539 = vector.broadcast %538 : vector<1x32xf32> to vector<16x32xf32>
    %540 = arith.addf %536, %539 : vector<16x32xf32>
    %541 = arith.addf %540, %513 : vector<16x32xf32>
    %c1_200 = arith.constant 1 : index
    %c0_201 = arith.constant 0 : index
    %c0_202 = arith.constant 0 : index
    %542 = vector.load %arg18[%c1_200, %c0_201, %c0_202] : memref<2x1x32xf32, #tpu.memory_space<vmem>>, vector<1x1x32xf32>
    %543 = vector.shape_cast %542 : vector<1x1x32xf32> to vector<1x32xf32>
    %c1_203 = arith.constant 1 : index
    %c0_204 = arith.constant 0 : index
    %c0_205 = arith.constant 0 : index
    %544 = vector.load %arg19[%c1_203, %c0_204, %c0_205] : memref<2x1x32xf32, #tpu.memory_space<vmem>>, vector<1x1x32xf32>
    %545 = vector.shape_cast %544 : vector<1x1x32xf32> to vector<1x32xf32>
    %cst_206 = arith.constant dense<0.000000e+00> : vector<16xf32>
    %546 = vector.multi_reduction <add>, %541, %cst_206 [1] : vector<16x32xf32> to vector<16xf32>
    %547 = vector.shape_cast %546 : vector<16xf32> to vector<16x1xf32>
    %cst_207 = arith.constant 3.200000e+01 : f32
    %548 = vector.broadcast %cst_207 : f32 to vector<16x1xf32>
    %549 = arith.divf %547, %548 : vector<16x1xf32>
    %550 = vector.broadcast %549 : vector<16x1xf32> to vector<16x32xf32>
    %551 = arith.subf %541, %550 : vector<16x32xf32>
    %552 = arith.mulf %551, %551 : vector<16x32xf32>
    %cst_208 = arith.constant dense<0.000000e+00> : vector<16xf32>
    %553 = vector.multi_reduction <add>, %552, %cst_208 [1] : vector<16x32xf32> to vector<16xf32>
    %554 = vector.shape_cast %553 : vector<16xf32> to vector<16x1xf32>
    %cst_209 = arith.constant 3.200000e+01 : f32
    %555 = vector.broadcast %cst_209 : f32 to vector<16x1xf32>
    %556 = arith.divf %554, %555 : vector<16x1xf32>
    %cst_210 = arith.constant 9.99999996E-13 : f32
    %557 = vector.broadcast %cst_210 : f32 to vector<16x1xf32>
    %558 = arith.addf %556, %557 : vector<16x1xf32>
    %559 = math.rsqrt %558 : vector<16x1xf32>
    %560 = vector.broadcast %559 : vector<16x1xf32> to vector<16x32xf32>
    %561 = arith.mulf %551, %560 : vector<16x32xf32>
    %562 = vector.broadcast %543 : vector<1x32xf32> to vector<16x32xf32>
    %563 = arith.mulf %561, %562 : vector<16x32xf32>
    %564 = vector.broadcast %545 : vector<1x32xf32> to vector<16x32xf32>
    %565 = arith.addf %563, %564 : vector<16x32xf32>
    %566 = vector.extract_strided_slice %565 {offsets = [0, 0], sizes = [1, 32], strides = [1, 1]} : vector<16x32xf32> to vector<1x32xf32>
    %567 = vector.extract_strided_slice %565 {offsets = [8, 0], sizes = [1, 32], strides = [1, 1]} : vector<16x32xf32> to vector<1x32xf32>
    %568 = tpu.concatenate %566, %567 in 0 : vector<1x32xf32>, vector<1x32xf32> -> vector<2x32xf32>
    %c0_211 = arith.constant 0 : index
    %c0_212 = arith.constant 0 : index
    %569 = vector.load %arg20[%c0_211, %c0_212] : memref<32x1xf32, #tpu.memory_space<vmem>>, vector<32x1xf32>
    %cst_213 = arith.constant dense<0.000000e+00> : vector<2x1xf32>
    %570 = tpu.matmul %568, %569, %cst_213 {dimension_numbers = #tpu.dot_dimension_numbers<[1], [0], [0], [1], [0, 0, 1, 1], [], []>} : vector<2x32xf32>, vector<32x1xf32>, vector<2x1xf32> -> vector<2x1xf32>
    %c0_214 = arith.constant 0 : index
    %c0_215 = arith.constant 0 : index
    %571 = vector.load %arg21[%c0_214, %c0_215] : memref<1x1xf32, #tpu.memory_space<vmem>>, vector<1x1xf32>
    %572 = vector.broadcast %571 : vector<1x1xf32> to vector<2x1xf32>
    %573 = arith.addf %570, %572 : vector<2x1xf32>
    %c0_216 = arith.constant 0 : index
    %c0_217 = arith.constant 0 : index
    %574 = vector.load %arg22[%c0_216, %c0_217] : memref<2x1xf32, #tpu.memory_space<vmem>>, vector<2x1xf32>
    tpu.vector_store %arg22[%c0_216, %c0_217], %573 {strides = array<i32>} : memref<2x1xf32, #tpu.memory_space<vmem>>, vector<2x1xf32>,
    return
  }
}

</mosaic_0001>

<llo_original>
// kernel: tpu_custom_call.1
$region0: #{tpu_custom_call.1}
  #allocation0 [shape = 'u32[]', space=smem, size = 0x4, offset = 0x4, fixed_abs, tag = 'smem constant byte address 0x4 - core index']
  #allocation1 [shape = 'u32[72,128]{1,0:T(1,128)}', space=vmem, size = 0x9000, scoped, tag = 'internal scratch']
  #allocation2 [shape = 'f32[1,1]{1,0:T(1,128)S(1)}', space=vmem, size = 0x200, scoped, tag = 'scoped memory for tpu_custom_call.1']
  %s0 = inlined_call_operand.vmem [shape: s32[16,1], index: 0, kind: input, shape index: {}]
  %s1 = inlined_call_operand.vmem [shape: s32[16,1], index: 1, kind: input, shape index: {}]
  %s2 = inlined_call_operand.vmem [shape: s32[2,8], index: 2, kind: input, shape index: {}]
  %s3 = inlined_call_operand.vmem [shape: f32[100,32], index: 3, kind: input, shape index: {}]
  %s4 = inlined_call_operand.vmem [shape: f32[64,32], index: 4, kind: input, shape index: {}]
  %s5 = inlined_call_operand.vmem [shape: f32[2,32], index: 5, kind: input, shape index: {}]
  %s6 = inlined_call_operand.vmem [shape: f32[1,32], index: 6, kind: input, shape index: {}]
  %s7 = inlined_call_operand.vmem [shape: f32[1,32], index: 7, kind: input, shape index: {}]
  %s8 = inlined_call_operand.vmem [shape: f32[2,32,96], index: 8, kind: input, shape index: {}]
  %s9 = inlined_call_operand.vmem [shape: f32[2,1,96], index: 9, kind: input, shape index: {}]
  %s10 = inlined_call_operand.vmem [shape: f32[2,32,32], index: 10, kind: input, shape index: {}]
  %s11 = inlined_call_operand.vmem [shape: f32[2,1,32], index: 11, kind: input, shape index: {}]
  %s12 = inlined_call_operand.vmem [shape: f32[2,1,32], index: 12, kind: input, shape index: {}]
  %s13 = inlined_call_operand.vmem [shape: f32[2,1,32], index: 13, kind: input, shape index: {}]
  %s14 = inlined_call_operand.vmem [shape: f32[2,32,64], index: 14, kind: input, shape index: {}]
  %s15 = inlined_call_operand.vmem [shape: f32[2,1,64], index: 15, kind: input, shape index: {}]
  %s16 = inlined_call_operand.vmem [shape: f32[2,64,32], index: 16, kind: input, shape index: {}]
  %s17 = inlined_call_operand.vmem [shape: f32[2,1,32], index: 17, kind: input, shape index: {}]
  %s18 = inlined_call_operand.vmem [shape: f32[2,1,32], index: 18, kind: input, shape index: {}]
  %s19 = inlined_call_operand.vmem [shape: f32[2,1,32], index: 19, kind: input, shape index: {}]
  %s20 = inlined_call_operand.vmem [shape: f32[32,1], index: 20, kind: input, shape index: {}]
  %s21 = inlined_call_operand.<no memory space> [shape: f32[1,1], index: 21, kind: input, shape index: {}]
  %s22 = inlined_call_operand.vmem [shape: f32[2,1], index: 22, kind: output, shape index: {}]
  %s23 = sld [smem:[#allocation0]]
  $region98: #{tpu_custom_call.1} parent=0
    _
  %s25 = ssub.s32 1, %s23
  %s26 = scalar_select 0, %s25, %s23
  %v27 = vstv %s21
  %28 = vst [vmem:[#allocation2] sm:$0x1] %v27
  // Predicated region
  $region2: #{tpu_custom_call.1} parent=0 // pred_check
    _
  $region3: #{tpu_custom_call.1} parent=0 // pred_check_branch
    %30 = sbr.rel (0) target = $region5
  $region4: #{tpu_custom_call.1} parent=0 // pred_region
    _
  $region5: #{tpu_custom_call.1} parent=0 // pred_fallthru
    _
  // Predicated region
  $region6: #{tpu_custom_call.1} parent=0 // pred_check
    _
  $region7: #{tpu_custom_call.1} parent=0 // pred_check_branch
    %32 = sbr.rel (0) target = $region9
  $region8: #{tpu_custom_call.1} parent=0 // pred_region
    _
  $region9: #{tpu_custom_call.1} parent=0 // pred_fallthru
    _
  // Predicated region
  $region10: #{tpu_custom_call.1} parent=0 // pred_check
    _
  $region11: #{tpu_custom_call.1} parent=0 // pred_check_branch
    %34 = sbr.rel (0) target = $region13
  $region12: #{tpu_custom_call.1} parent=0 // pred_region
    _
  $region13: #{tpu_custom_call.1} parent=0 // pred_fallthru
    _
  // Predicated region
  $region14: #{tpu_custom_call.1} parent=0 // pred_check
    _
  $region15: #{tpu_custom_call.1} parent=0 // pred_check_branch
    %36 = sbr.rel (0) target = $region17
  $region16: #{tpu_custom_call.1} parent=0 // pred_region
    _
  $region17: #{tpu_custom_call.1} parent=0 // pred_fallthru
    _
  // Predicated region
  $region18: #{tpu_custom_call.1} parent=0 // pred_check
    _
  $region19: #{tpu_custom_call.1} parent=0 // pred_check_branch
    %38 = sbr.rel (0) target = $region21
  $region20: #{tpu_custom_call.1} parent=0 // pred_region
    _
  $region21: #{tpu_custom_call.1} parent=0 // pred_fallthru
    _
  // Predicated region
  $region22: #{tpu_custom_call.1} parent=0 // pred_check
    _
  $region23: #{tpu_custom_call.1} parent=0 // pred_check_branch
    %40 = sbr.rel (0) target = $region25
  $region24: #{tpu_custom_call.1} parent=0 // pred_region
    _
  $region25: #{tpu_custom_call.1} parent=0 // pred_fallthru
    _
  // Predicated region
  $region26: #{tpu_custom_call.1} parent=0 // pred_check
    _
  $region27: #{tpu_custom_call.1} parent=0 // pred_check_branch
    %42 = sbr.rel (0) target = $region29
  $region28: #{tpu_custom_call.1} parent=0 // pred_region
    _
  $region29: #{tpu_custom_call.1} parent=0 // pred_fallthru
    _
  // Predicated region
  $region30: #{tpu_custom_call.1} parent=0 // pred_check
    _
  $region31: #{tpu_custom_call.1} parent=0 // pred_check_branch
    %44 = sbr.rel (0) target = $region33
  $region32: #{tpu_custom_call.1} parent=0 // pred_region
    _
  $region33: #{tpu_custom_call.1} parent=0 // pred_fallthru
    _
  // Predicated region
  $region34: #{tpu_custom_call.1} parent=0 // pred_check
    _
  $region35: #{tpu_custom_call.1} parent=0 // pred_check_branch
    %46 = sbr.rel (0) target = $region37
  $region36: #{tpu_custom_call.1} parent=0 // pred_region
    _
  $region37: #{tpu_custom_call.1} parent=0 // pred_fallthru
    _
  // Predicated region
  $region38: #{tpu_custom_call.1} parent=0 // pred_check
    _
  $region39: #{tpu_custom_call.1} parent=0 // pred_check_branch
    %48 = sbr.rel (0) target = $region41
  $region40: #{tpu_custom_call.1} parent=0 // pred_region
    _
  $region41: #{tpu_custom_call.1} parent=0 // pred_fallthru
    _
  // Predicated region
  $region42: #{tpu_custom_call.1} parent=0 // pred_check
    _
  $region43: #{tpu_custom_call.1} parent=0 // pred_check_branch
    %50 = sbr.rel (0) target = $region45
  $region44: #{tpu_custom_call.1} parent=0 // pred_region
    _
  $region45: #{tpu_custom_call.1} parent=0 // pred_fallthru
    _
  // Predicated region
  $region46: #{tpu_custom_call.1} parent=0 // pred_check
    _
  $region47: #{tpu_custom_call.1} parent=0 // pred_check_branch
    %52 = sbr.rel (0) target = $region49
  $region48: #{tpu_custom_call.1} parent=0 // pred_region
    _
  $region49: #{tpu_custom_call.1} parent=0 // pred_fallthru
    _
  // Predicated region
  $region50: #{tpu_custom_call.1} parent=0 // pred_check
    _
  $region51: #{tpu_custom_call.1} parent=0 // pred_check_branch
    %54 = sbr.rel (0) target = $region53
  $region52: #{tpu_custom_call.1} parent=0 // pred_region
    _
  $region53: #{tpu_custom_call.1} parent=0 // pred_fallthru
    _
  // Predicated region
  $region54: #{tpu_custom_call.1} parent=0 // pred_check
    _
  $region55: #{tpu_custom_call.1} parent=0 // pred_check_branch
    %56 = sbr.rel (0) target = $region57
  $region56: #{tpu_custom_call.1} parent=0 // pred_region
    _
  $region57: #{tpu_custom_call.1} parent=0 // pred_fallthru
    _
  // Predicated region
  $region58: #{tpu_custom_call.1} parent=0 // pred_check
    _
  $region59: #{tpu_custom_call.1} parent=0 // pred_check_branch
    %58 = sbr.rel (0) target = $region61
  $region60: #{tpu_custom_call.1} parent=0 // pred_region
    _
  $region61: #{tpu_custom_call.1} parent=0 // pred_fallthru
    _
  // Predicated region
  $region62: #{tpu_custom_call.1} parent=0 // pred_check
    _
  $region63: #{tpu_custom_call.1} parent=0 // pred_check_branch
    %60 = sbr.rel (0) target = $region65
  $region64: #{tpu_custom_call.1} parent=0 // pred_region
    _
  $region65: #{tpu_custom_call.1} parent=0 // pred_fallthru
    _
  // Predicated region
  $region66: #{tpu_custom_call.1} parent=0 // pred_check
    _
  $region67: #{tpu_custom_call.1} parent=0 // pred_check_branch
    %62 = sbr.rel (0) target = $region69
  $region68: #{tpu_custom_call.1} parent=0 // pred_region
    _
  $region69: #{tpu_custom_call.1} parent=0 // pred_fallthru
    _
  // Predicated region
  $region70: #{tpu_custom_call.1} parent=0 // pred_check
    _
  $region71: #{tpu_custom_call.1} parent=0 // pred_check_branch
    %64 = sbr.rel (0) target = $region73
  $region72: #{tpu_custom_call.1} parent=0 // pred_region
    _
  $region73: #{tpu_custom_call.1} parent=0 // pred_fallthru
    _
  // Predicated region
  $region74: #{tpu_custom_call.1} parent=0 // pred_check
    _
  $region75: #{tpu_custom_call.1} parent=0 // pred_check_branch
    %66 = sbr.rel (0) target = $region77
  $region76: #{tpu_custom_call.1} parent=0 // pred_region
    _
  $region77: #{tpu_custom_call.1} parent=0 // pred_fallthru
    _
  // Predicated region
  $region78: #{tpu_custom_call.1} parent=0 // pred_check
    _
  $region79: #{tpu_custom_call.1} parent=0 // pred_check_branch
    %68 = sbr.rel (0) target = $region81
  $region80: #{tpu_custom_call.1} parent=0 // pred_region
    _
  $region81: #{tpu_custom_call.1} parent=0 // pred_fallthru
    _
  // Predicated region
  $region82: #{tpu_custom_call.1} parent=0 // pred_check
    _
  $region83: #{tpu_custom_call.1} parent=0 // pred_check_branch
    %70 = sbr.rel (0) target = $region85
  $region84: #{tpu_custom_call.1} parent=0 // pred_region
    _
  $region85: #{tpu_custom_call.1} parent=0 // pred_fallthru
    _
  // Predicated region
  $region86: #{tpu_custom_call.1} parent=0 // pred_check
    _
  $region87: #{tpu_custom_call.1} parent=0 // pred_check_branch
    %72 = sbr.rel (0) target = $region89
  $region88: #{tpu_custom_call.1} parent=0 // pred_region
    _
  $region89: #{tpu_custom_call.1} parent=0 // pred_fallthru
    _
  %v73 = vld [vmem:[%s0] sm:$0xff]
  %v74 = vld [vmem:[%s0 + $0x8] sm:$0xff]
  %v75 = vld [vmem:[%s1] sm:$0xff]
  %v76 = vld [vmem:[%s1 + $0x8] sm:$0xff]
  %v77 = vlaneseq
  %v78 = vand.u32 %v77, 127
  %79 = vset.pattern.permute.xlu0 0
  %80 = vperm.xlu0 %79, %v73
  %v81 = vpop.permute.xlu0 %80
  %82 = vset.pattern.permute.xlu0 0
  %83 = vperm.xlu0 %82, %v74
  %v84 = vpop.permute.xlu0 %83
  %vm85 = vcmp.eq.s32.totalorder %v81, %v78
  %vm86 = vcmp.eq.s32.totalorder %v84, %v78
  %v87 = vsel %vm85, 1, 0
  %v88 = vsel %vm86, 1, 0
  %v89 = vcvt.s32.f32 %v87
  %v90 = vcvt.s32.f32 %v88
  %v91 = vld [vmem:[%s3] sm:$0xff]
  %v92 = vld [vmem:[%s3 + $0x8] sm:$0xff]
  %v93 = vld [vmem:[%s3 + $0x10] sm:$0xff]
  %v94 = vld [vmem:[%s3 + $0x18] sm:$0xff]
  %v95 = vld [vmem:[%s3 + $0x20] sm:$0xff]
  %v96 = vld [vmem:[%s3 + $0x28] sm:$0xff]
  %v97 = vld [vmem:[%s3 + $0x30] sm:$0xff]
  %v98 = vld [vmem:[%s3 + $0x38] sm:$0xff]
  %v99 = vld [vmem:[%s3 + $0x40] sm:$0xff]
  %v100 = vld [vmem:[%s3 + $0x48] sm:$0xff]
  %v101 = vld [vmem:[%s3 + $0x50] sm:$0xff]
  %v102 = vld [vmem:[%s3 + $0x58] sm:$0xff]
  %v103 = vld [vmem:[%s3 + $0x60] sm:$0xf]
  %vm104 = vcmp.eq.s32.totalorder %v75, 0
  %vm105 = vcmp.eq.s32.totalorder %v76, 0
  %v106 = vsel %vm104, 1, 0
  %v107 = vsel %vm105, 1, 0
  %v108 = vcvt.s32.f32 %v106
  %v109 = vcvt.s32.f32 %v107
  %v110 = vld [vmem:[%s5] sm:$0x1]
  %112 = vset.pattern.permute.xlu0 0
  %113 = vperm.xlu0 %112, %v108
  %v114 = vpop.permute.xlu0 %113
  %117 = vset.pattern.permute.xlu0 0
  %118 = vperm.xlu0 %117, %v109
  %v119 = vpop.permute.xlu0 %118
  %v121 = vperm.slane %v110, 0
  %v122 = vmul.f32 %v114, %v121
  %v123 = vmul.f32 %v119, %v121
  %vm124 = vcmask 818176
  %v126 = vsel %vm124, %v89, 0
  %v129 = vsel %vm124, %v90, 0
  %vm131 = vcmask 1043456
  %v133 = vsel %vm131, %v103, 0
  %135 = vmatpush.msra.mxu0 0.0
  %136 = vmatpush.msra.mxu0 0.0
  %137 = vmatpush.msra.mxu0 0.0
  %138 = vmatpush.msra.mxu0 %v133
  %139 = vmatpush.msra.mxu0 %v102
  %140 = vmatpush.msra.mxu0 %v101
  %141 = vmatpush.msra.mxu0 %v100
  %142 = vmatpush.msra.mxu0 %v99
  %143 = vmatpush.msra.mxu0 %v98
  %144 = vmatpush.msra.mxu0 %v97
  %145 = vmatpush.msra.mxu0 %v96
  %146 = vmatpush.msra.mxu0 %v95
  %147 = vmatpush.msra.mxu0 %v94
  %148 = vmatpush.msra.mxu0 %v93
  %149 = vmatpush.msra.mxu0 %v92
  %150 = vmatpush.msra.mxu0 %v91
  %151 = vmatmul.f32.gmra.mxu0 %v126
  %v152 = vpop.f32.mrf.mxu0
  %v153 = vadd.f32 %v122, %v152
  %154 = vmatmul.f32.gmra.mxu0 %v129
  %v155 = vpop.f32.mrf.mxu0
  %v156 = vadd.f32 %v123, %v155
  %157 = vdwg.mxu0
  %vm158 = vcmp.eq.s32.totalorder %v75, 1
  %vm159 = vcmp.eq.s32.totalorder %v76, 1
  %v160 = vsel %vm158, 1, 0
  %v161 = vsel %vm159, 1, 0
  %v162 = vcvt.s32.f32 %v160
  %v163 = vcvt.s32.f32 %v161
  %v164 = vld [vmem:[%s5 + $0x1] sm:$0x1]
  %166 = vset.pattern.permute.xlu0 0
  %167 = vperm.xlu0 %166, %v162
  %v168 = vpop.permute.xlu0 %167
  %171 = vset.pattern.permute.xlu0 0
  %172 = vperm.xlu0 %171, %v163
  %v173 = vpop.permute.xlu0 %172
  %v175 = vperm.slane %v164, 0
  %v176 = vmul.f32 %v168, %v175
  %v177 = vmul.f32 %v173, %v175
  %v178 = vadd.f32 %v153, %v176
  %v179 = vadd.f32 %v156, %v177
  %v180 = vld [vmem:[%s4] sm:$0xff]
  %v181 = vadd.f32 %v178, %v180
  %v182 = vadd.f32 %v179, %v180
  %v183 = vld [vmem:[%s6] sm:$0x1]
  %v184 = vld [vmem:[%s7] sm:$0x1]
  %vm185 = vcmask 261120
  %v186 = vsel %vm185, %v181, 0.0
  %187 = vadd.xlane.f32.xlu0 %v186
  %v188 = vpop.xlane.xlu0 %187
  %v189 = vsel %vm185, %v182, 0.0
  %190 = vadd.xlane.f32.xlu0 %v189
  %v191 = vpop.xlane.xlu0 %190
  %v192 = vrcp.pop 32.0
  %v193 = vmul.f32 32.0, %v192
  %v194 = vsub.f32 1.0, %v193
  %v195 = vmul.f32 %v192, %v194
  %v196 = vadd.f32 %v192, %v195
  %vm197 = vweird.f32 %v192
  %v198 = vsel %vm197, %v192, %v196
  %v199 = vmul.f32 %v188, %v198
  %v200 = vmul.f32 %v191, %v198
  %v201 = vsub.f32 %v181, %v199
  %v202 = vsub.f32 %v182, %v200
  %v203 = vmul.f32 %v201, %v201
  %v204 = vmul.f32 %v202, %v202
  %v205 = vsel %vm185, %v203, 0.0
  %206 = vadd.xlane.f32.xlu0 %v205
  %v207 = vpop.xlane.xlu0 %206
  %v208 = vsel %vm185, %v204, 0.0
  %209 = vadd.xlane.f32.xlu0 %v208
  %v210 = vpop.xlane.xlu0 %209
  %v211 = vmul.f32 %v207, %v198
  %v212 = vmul.f32 %v210, %v198
  %v213 = vadd.f32 %v211, 1e-12
  %v214 = vadd.f32 %v212, 1e-12
  %v215 = vrsqrt.pop %v213
  %v216 = vmul.f32 %v215, %v213
  %v217 = vmul.f32 %v216, %v215
  %v218 = vmul.f32 0.5, %v217
  %v219 = vsub.f32 1.5, %v218
  %v220 = vmul.f32 %v215, %v219
  %vm221 = vweird.f32 %v213
  %vm222 = vweird.f32 %v215
  %vm223 = vmor %vm221, %vm222
  %v224 = vsel %vm223, %v215, %v220
  %v225 = vrsqrt.pop %v214
  %v226 = vmul.f32 %v225, %v214
  %v227 = vmul.f32 %v226, %v225
  %v228 = vmul.f32 0.5, %v227
  %v229 = vsub.f32 1.5, %v228
  %v230 = vmul.f32 %v225, %v229
  %vm231 = vweird.f32 %v214
  %vm232 = vweird.f32 %v225
  %vm233 = vmor %vm231, %vm232
  %v234 = vsel %vm233, %v225, %v230
  %v235 = vmul.f32 %v201, %v224
  %v236 = vmul.f32 %v202, %v234
  %v238 = vperm.slane %v183, 0
  %v240 = vmul.f32 %v235, %v238
  %v241 = vmul.f32 %v236, %v238
  %v243 = vperm.slane %v184, 0
  %v245 = vadd.f32 %v240, %v243
  %v246 = vadd.f32 %v241, %v243
  %v247 = vld [vmem:[%s2] sm:$0x3]
  %v248 = vcvt.s32.f32 %v247
  %v249 = vsub.f32 1.0, %v248
  %v250 = vmul.f32 %v249, -1e+09
  %v251 = vld [vmem:[%s8] sm:$0xff]
  %v252 = vld [vmem:[%s8 + $0x8] sm:$0xff]
  %v253 = vld [vmem:[%s8 + $0x10] sm:$0xff]
  %v254 = vld [vmem:[%s8 + $0x18] sm:$0xff]
  %v255 = vld [vmem:[%s9] sm:$0x1]
  %v257 = vperm.slane %v255, 0
  %v260 = vsel %vm185, %v245, 0
  %v263 = vsel %vm185, %v246, 0
  %265 = vmatpush.msra.mxu0 0.0
  %266 = vmatpush.msra.mxu0 0.0
  %267 = vmatpush.msra.mxu0 0.0
  %268 = vmatpush.msra.mxu0 0.0
  %269 = vmatpush.msra.mxu0 0.0
  %270 = vmatpush.msra.mxu0 0.0
  %271 = vmatpush.msra.mxu0 0.0
  %272 = vmatpush.msra.mxu0 0.0
  %273 = vmatpush.msra.mxu0 0.0
  %274 = vmatpush.msra.mxu0 0.0
  %275 = vmatpush.msra.mxu0 0.0
  %276 = vmatpush.msra.mxu0 0.0
  %277 = vmatpush.msra.mxu0 %v254
  %278 = vmatpush.msra.mxu0 %v253
  %279 = vmatpush.msra.mxu0 %v252
  %280 = vmatpush.msra.mxu0 %v251
  %281 = vmatmul.f32.gmra.mxu0 %v260
  %v282 = vpop.f32.mrf.mxu0
  %v283 = vadd.f32 %v257, %v282
  %284 = vmatmul.f32.gmra.mxu0 %v263
  %v285 = vpop.f32.mrf.mxu0
  %v286 = vadd.f32 %v257, %v285
  %287 = vdwg.mxu0
  %289 = vrot.lane.b32.xlu0 %v283, 96
  %v290 = vpop.permute.xlu0 %289
  %vm291 = vcmask 64512
  %v292 = vsel %vm291, %v283, 0
  %v294 = vsel %vm291, %v290, 0
  %296 = vmatpush.xpose.msra.mxu0 0.0
  %297 = vmatpush.xpose.msra.mxu0 0.0
  %298 = vmatpush.xpose.msra.mxu0 0.0
  %299 = vmatpush.xpose.msra.mxu0 0.0
  %300 = vmatpush.xpose.msra.mxu0 0.0
  %301 = vmatpush.xpose.msra.mxu0 0.0
  %302 = vmatpush.xpose.msra.mxu0 0.0
  %303 = vmatpush.xpose.msra.mxu0 0.0
  %304 = vmatpush.xpose.msra.mxu0 0.0
  %305 = vmatpush.xpose.msra.mxu0 0.0
  %306 = vmatpush.xpose.msra.mxu0 0.0
  %307 = vmatpush.xpose.msra.mxu0 0.0
  %308 = vmatpush.xpose.msra.mxu0 0.0
  %309 = vmatpush.xpose.msra.mxu0 0.0
  %310 = vmatpush.xpose.msra.mxu0 0.0
  %311 = vmatpush.xpose.msra.mxu0 %v294
  %312 = vmatmul.f32.gmra.mxu0 %v292
  %v313 = vpop.f32.mrf.mxu0
  %v314 = vadd.f32 0.0, %v313
  %315 = vdwg.mxu0
  %v316 = vmul.f32 %v314, 0.35355338
  %v317 = vperm.slane %v250, 0
  %v318 = vadd.f32 %v316, %v317
  %v319 = vsel %vm291, %v318, -inf
  %320 = vmax.xlane.f32.xlu0 %v319
  %v321 = vpop.xlane.xlu0 %320
  %v322 = vsub.f32 %v318, %v321
  %v323 = vmul.f32 %v322, 1.442695
  %v324 = vpow.pop %v323
  %v325 = vsel %vm291, %v324, 0.0
  %326 = vadd.xlane.f32.xlu0 %v325
  %v327 = vpop.xlane.xlu0 %326
  %v328 = vrcp.pop %v327
  %v329 = vmul.f32 %v324, %v328
  %330 = vrot.lane.b32.xlu0 %v283, 64
  %v331 = vpop.permute.xlu0 %330
  %v334 = vsel %vm291, %v329, 0
  %336 = vmatpush.msra.mxu0 0.0
  %337 = vmatpush.msra.mxu0 0.0
  %338 = vmatpush.msra.mxu0 0.0
  %339 = vmatpush.msra.mxu0 0.0
  %340 = vmatpush.msra.mxu0 0.0
  %341 = vmatpush.msra.mxu0 0.0
  %342 = vmatpush.msra.mxu0 0.0
  %343 = vmatpush.msra.mxu0 0.0
  %344 = vmatpush.msra.mxu0 0.0
  %345 = vmatpush.msra.mxu0 0.0
  %346 = vmatpush.msra.mxu0 0.0
  %347 = vmatpush.msra.mxu0 0.0
  %348 = vmatpush.msra.mxu0 0.0
  %349 = vmatpush.msra.mxu0 0.0
  %350 = vmatpush.msra.mxu0 0.0
  %351 = vmatpush.msra.mxu0 %v331
  %352 = vmatmul.f32.gmra.mxu0 %v334
  %v353 = vpop.f32.mrf.mxu0
  %v354 = vadd.f32 0.0, %v353
  %355 = vdwg.mxu0
  %356 = vrot.lane.b32.xlu0 %v283, 120
  %v357 = vpop.permute.xlu0 %356
  %358 = vrot.lane.b32.xlu0 %v283, 88
  %v359 = vpop.permute.xlu0 %358
  %v360 = vsel %vm291, %v357, 0
  %v362 = vsel %vm291, %v359, 0
  %364 = vmatpush.xpose.msra.mxu0 0.0
  %365 = vmatpush.xpose.msra.mxu0 0.0
  %366 = vmatpush.xpose.msra.mxu0 0.0
  %367 = vmatpush.xpose.msra.mxu0 0.0
  %368 = vmatpush.xpose.msra.mxu0 0.0
  %369 = vmatpush.xpose.msra.mxu0 0.0
  %370 = vmatpush.xpose.msra.mxu0 0.0
  %371 = vmatpush.xpose.msra.mxu0 0.0
  %372 = vmatpush.xpose.msra.mxu0 0.0
  %373 = vmatpush.xpose.msra.mxu0 0.0
  %374 = vmatpush.xpose.msra.mxu0 0.0
  %375 = vmatpush.xpose.msra.mxu0 0.0
  %376 = vmatpush.xpose.msra.mxu0 0.0
  %377 = vmatpush.xpose.msra.mxu0 0.0
  %378 = vmatpush.xpose.msra.mxu0 0.0
  %379 = vmatpush.xpose.msra.mxu0 %v362
  %380 = vmatmul.f32.gmra.mxu0 %v360
  %v381 = vpop.f32.mrf.mxu0
  %v382 = vadd.f32 0.0, %v381
  %383 = vdwg.mxu0
  %v384 = vmul.f32 %v382, 0.35355338
  %v385 = vadd.f32 %v384, %v317
  %v386 = vsel %vm291, %v385, -inf
  %387 = vmax.xlane.f32.xlu0 %v386
  %v388 = vpop.xlane.xlu0 %387
  %v389 = vsub.f32 %v385, %v388
  %v390 = vmul.f32 %v389, 1.442695
  %v391 = vpow.pop %v390
  %v392 = vsel %vm291, %v391, 0.0
  %393 = vadd.xlane.f32.xlu0 %v392
  %v394 = vpop.xlane.xlu0 %393
  %v395 = vrcp.pop %v394
  %v396 = vmul.f32 %v391, %v395
  %397 = vrot.lane.b32.xlu0 %v283, 56
  %v398 = vpop.permute.xlu0 %397
  %v401 = vsel %vm291, %v396, 0
  %403 = vmatpush.msra.mxu0 0.0
  %404 = vmatpush.msra.mxu0 0.0
  %405 = vmatpush.msra.mxu0 0.0
  %406 = vmatpush.msra.mxu0 0.0
  %407 = vmatpush.msra.mxu0 0.0
  %408 = vmatpush.msra.mxu0 0.0
  %409 = vmatpush.msra.mxu0 0.0
  %410 = vmatpush.msra.mxu0 0.0
  %411 = vmatpush.msra.mxu0 0.0
  %412 = vmatpush.msra.mxu0 0.0
  %413 = vmatpush.msra.mxu0 0.0
  %414 = vmatpush.msra.mxu0 0.0
  %415 = vmatpush.msra.mxu0 0.0
  %416 = vmatpush.msra.mxu0 0.0
  %417 = vmatpush.msra.mxu0 0.0
  %418 = vmatpush.msra.mxu0 %v398
  %419 = vmatmul.f32.gmra.mxu0 %v401
  %v420 = vpop.f32.mrf.mxu0
  %v421 = vadd.f32 0.0, %v420
  %422 = vdwg.mxu0
  %423 = vrot.lane.b32.xlu0 %v283, 112
  %v424 = vpop.permute.xlu0 %423
  %425 = vrot.lane.b32.xlu0 %v283, 80
  %v426 = vpop.permute.xlu0 %425
  %v427 = vsel %vm291, %v424, 0
  %v429 = vsel %vm291, %v426, 0
  %431 = vmatpush.xpose.msra.mxu0 0.0
  %432 = vmatpush.xpose.msra.mxu0 0.0
  %433 = vmatpush.xpose.msra.mxu0 0.0
  %434 = vmatpush.xpose.msra.mxu0 0.0
  %435 = vmatpush.xpose.msra.mxu0 0.0
  %436 = vmatpush.xpose.msra.mxu0 0.0
  %437 = vmatpush.xpose.msra.mxu0 0.0
  %438 = vmatpush.xpose.msra.mxu0 0.0
  %439 = vmatpush.xpose.msra.mxu0 0.0
  %440 = vmatpush.xpose.msra.mxu0 0.0
  %441 = vmatpush.xpose.msra.mxu0 0.0
  %442 = vmatpush.xpose.msra.mxu0 0.0
  %443 = vmatpush.xpose.msra.mxu0 0.0
  %444 = vmatpush.xpose.msra.mxu0 0.0
  %445 = vmatpush.xpose.msra.mxu0 0.0
  %446 = vmatpush.xpose.msra.mxu0 %v429
  %447 = vmatmul.f32.gmra.mxu0 %v427
  %v448 = vpop.f32.mrf.mxu0
  %v449 = vadd.f32 0.0, %v448
  %450 = vdwg.mxu0
  %v451 = vmul.f32 %v449, 0.35355338
  %v452 = vadd.f32 %v451, %v317
  %v453 = vsel %vm291, %v452, -inf
  %454 = vmax.xlane.f32.xlu0 %v453
  %v455 = vpop.xlane.xlu0 %454
  %v456 = vsub.f32 %v452, %v455
  %v457 = vmul.f32 %v456, 1.442695
  %v458 = vpow.pop %v457
  %v459 = vsel %vm291, %v458, 0.0
  %460 = vadd.xlane.f32.xlu0 %v459
  %v461 = vpop.xlane.xlu0 %460
  %v462 = vrcp.pop %v461
  %v463 = vmul.f32 %v458, %v462
  %464 = vrot.lane.b32.xlu0 %v283, 48
  %v465 = vpop.permute.xlu0 %464
  %v468 = vsel %vm291, %v463, 0
  %470 = vmatpush.msra.mxu0 0.0
  %471 = vmatpush.msra.mxu0 0.0
  %472 = vmatpush.msra.mxu0 0.0
  %473 = vmatpush.msra.mxu0 0.0
  %474 = vmatpush.msra.mxu0 0.0
  %475 = vmatpush.msra.mxu0 0.0
  %476 = vmatpush.msra.mxu0 0.0
  %477 = vmatpush.msra.mxu0 0.0
  %478 = vmatpush.msra.mxu0 0.0
  %479 = vmatpush.msra.mxu0 0.0
  %480 = vmatpush.msra.mxu0 0.0
  %481 = vmatpush.msra.mxu0 0.0
  %482 = vmatpush.msra.mxu0 0.0
  %483 = vmatpush.msra.mxu0 0.0
  %484 = vmatpush.msra.mxu0 0.0
  %485 = vmatpush.msra.mxu0 %v465
  %486 = vmatmul.f32.gmra.mxu0 %v468
  %v487 = vpop.f32.mrf.mxu0
  %v488 = vadd.f32 0.0, %v487
  %489 = vdwg.mxu0
  %490 = vrot.lane.b32.xlu0 %v283, 104
  %v491 = vpop.permute.xlu0 %490
  %492 = vrot.lane.b32.xlu0 %v283, 72
  %v493 = vpop.permute.xlu0 %492
  %v494 = vsel %vm291, %v491, 0
  %v496 = vsel %vm291, %v493, 0
  %498 = vmatpush.xpose.msra.mxu0 0.0
  %499 = vmatpush.xpose.msra.mxu0 0.0
  %500 = vmatpush.xpose.msra.mxu0 0.0
  %501 = vmatpush.xpose.msra.mxu0 0.0
  %502 = vmatpush.xpose.msra.mxu0 0.0
  %503 = vmatpush.xpose.msra.mxu0 0.0
  %504 = vmatpush.xpose.msra.mxu0 0.0
  %505 = vmatpush.xpose.msra.mxu0 0.0
  %506 = vmatpush.xpose.msra.mxu0 0.0
  %507 = vmatpush.xpose.msra.mxu0 0.0
  %508 = vmatpush.xpose.msra.mxu0 0.0
  %509 = vmatpush.xpose.msra.mxu0 0.0
  %510 = vmatpush.xpose.msra.mxu0 0.0
  %511 = vmatpush.xpose.msra.mxu0 0.0
  %512 = vmatpush.xpose.msra.mxu0 0.0
  %513 = vmatpush.xpose.msra.mxu0 %v496
  %514 = vmatmul.f32.gmra.mxu0 %v494
  %v515 = vpop.f32.mrf.mxu0
  %v516 = vadd.f32 0.0, %v515
  %517 = vdwg.mxu0
  %v518 = vmul.f32 %v516, 0.35355338
  %v519 = vadd.f32 %v518, %v317
  %v520 = vsel %vm291, %v519, -inf
  %521 = vmax.xlane.f32.xlu0 %v520
  %v522 = vpop.xlane.xlu0 %521
  %v523 = vsub.f32 %v519, %v522
  %v524 = vmul.f32 %v523, 1.442695
  %v525 = vpow.pop %v524
  %v526 = vsel %vm291, %v525, 0.0
  %527 = vadd.xlane.f32.xlu0 %v526
  %v528 = vpop.xlane.xlu0 %527
  %v529 = vrcp.pop %v528
  %v530 = vmul.f32 %v525, %v529
  %531 = vrot.lane.b32.xlu0 %v283, 40
  %v532 = vpop.permute.xlu0 %531
  %v535 = vsel %vm291, %v530, 0
  %537 = vmatpush.msra.mxu0 0.0
  %538 = vmatpush.msra.mxu0 0.0
  %539 = vmatpush.msra.mxu0 0.0
  %540 = vmatpush.msra.mxu0 0.0
  %541 = vmatpush.msra.mxu0 0.0
  %542 = vmatpush.msra.mxu0 0.0
  %543 = vmatpush.msra.mxu0 0.0
  %544 = vmatpush.msra.mxu0 0.0
  %545 = vmatpush.msra.mxu0 0.0
  %546 = vmatpush.msra.mxu0 0.0
  %547 = vmatpush.msra.mxu0 0.0
  %548 = vmatpush.msra.mxu0 0.0
  %549 = vmatpush.msra.mxu0 0.0
  %550 = vmatpush.msra.mxu0 0.0
  %551 = vmatpush.msra.mxu0 0.0
  %552 = vmatpush.msra.mxu0 %v532
  %553 = vmatmul.f32.gmra.mxu0 %v535
  %v554 = vpop.f32.mrf.mxu0
  %v555 = vadd.f32 0.0, %v554
  %556 = vdwg.mxu0
  %558 = vrot.lane.b32.xlu0 %v421, 8
  %v559 = vpop.permute.xlu0 %558
  %562 = vrot.lane.b32.xlu0 %v488, 16
  %v563 = vpop.permute.xlu0 %562
  %566 = vrot.lane.b32.xlu0 %v555, 24
  %v567 = vpop.permute.xlu0 %566
  %v569 = vsel %vm291, %v354, %v559
  %vm570 = vcmask 130048
  %v571 = vsel %vm570, %v569, %v563
  %vm572 = vcmask 195584
  %v573 = vsel %vm572, %v571, %v567
  %575 = vrot.lane.b32.xlu0 %v286, 96
  %v576 = vpop.permute.xlu0 %575
  %v577 = vsel %vm291, %v286, 0
  %v579 = vsel %vm291, %v576, 0
  %581 = vmatpush.xpose.msra.mxu0 0.0
  %582 = vmatpush.xpose.msra.mxu0 0.0
  %583 = vmatpush.xpose.msra.mxu0 0.0
  %584 = vmatpush.xpose.msra.mxu0 0.0
  %585 = vmatpush.xpose.msra.mxu0 0.0
  %586 = vmatpush.xpose.msra.mxu0 0.0
  %587 = vmatpush.xpose.msra.mxu0 0.0
  %588 = vmatpush.xpose.msra.mxu0 0.0
  %589 = vmatpush.xpose.msra.mxu0 0.0
  %590 = vmatpush.xpose.msra.mxu0 0.0
  %591 = vmatpush.xpose.msra.mxu0 0.0
  %592 = vmatpush.xpose.msra.mxu0 0.0
  %593 = vmatpush.xpose.msra.mxu0 0.0
  %594 = vmatpush.xpose.msra.mxu0 0.0
  %595 = vmatpush.xpose.msra.mxu0 0.0
  %596 = vmatpush.xpose.msra.mxu0 %v579
  %597 = vmatmul.f32.gmra.mxu0 %v577
  %v598 = vpop.f32.mrf.mxu0
  %v599 = vadd.f32 0.0, %v598
  %600 = vdwg.mxu0
  %v601 = vmul.f32 %v599, 0.35355338
  %v602 = vperm.slane %v250, 1
  %v603 = vadd.f32 %v601, %v602
  %v604 = vsel %vm291, %v603, -inf
  %605 = vmax.xlane.f32.xlu0 %v604
  %v606 = vpop.xlane.xlu0 %605
  %v607 = vsub.f32 %v603, %v606
  %v608 = vmul.f32 %v607, 1.442695
  %v609 = vpow.pop %v608
  %v610 = vsel %vm291, %v609, 0.0
  %611 = vadd.xlane.f32.xlu0 %v610
  %v612 = vpop.xlane.xlu0 %611
  %v613 = vrcp.pop %v612
  %v614 = vmul.f32 %v609, %v613
  %615 = vrot.lane.b32.xlu0 %v286, 64
  %v616 = vpop.permute.xlu0 %615
  %v619 = vsel %vm291, %v614, 0
  %621 = vmatpush.msra.mxu0 0.0
  %622 = vmatpush.msra.mxu0 0.0
  %623 = vmatpush.msra.mxu0 0.0
  %624 = vmatpush.msra.mxu0 0.0
  %625 = vmatpush.msra.mxu0 0.0
  %626 = vmatpush.msra.mxu0 0.0
  %627 = vmatpush.msra.mxu0 0.0
  %628 = vmatpush.msra.mxu0 0.0
  %629 = vmatpush.msra.mxu0 0.0
  %630 = vmatpush.msra.mxu0 0.0
  %631 = vmatpush.msra.mxu0 0.0
  %632 = vmatpush.msra.mxu0 0.0
  %633 = vmatpush.msra.mxu0 0.0
  %634 = vmatpush.msra.mxu0 0.0
  %635 = vmatpush.msra.mxu0 0.0
  %636 = vmatpush.msra.mxu0 %v616
  %637 = vmatmul.f32.gmra.mxu0 %v619
  %v638 = vpop.f32.mrf.mxu0
  %v639 = vadd.f32 0.0, %v638
  %640 = vdwg.mxu0
  %641 = vrot.lane.b32.xlu0 %v286, 120
  %v642 = vpop.permute.xlu0 %641
  %643 = vrot.lane.b32.xlu0 %v286, 88
  %v644 = vpop.permute.xlu0 %643
  %v645 = vsel %vm291, %v642, 0
  %v647 = vsel %vm291, %v644, 0
  %649 = vmatpush.xpose.msra.mxu0 0.0
  %650 = vmatpush.xpose.msra.mxu0 0.0
  %651 = vmatpush.xpose.msra.mxu0 0.0
  %652 = vmatpush.xpose.msra.mxu0 0.0
  %653 = vmatpush.xpose.msra.mxu0 0.0
  %654 = vmatpush.xpose.msra.mxu0 0.0
  %655 = vmatpush.xpose.msra.mxu0 0.0
  %656 = vmatpush.xpose.msra.mxu0 0.0
  %657 = vmatpush.xpose.msra.mxu0 0.0
  %658 = vmatpush.xpose.msra.mxu0 0.0
  %659 = vmatpush.xpose.msra.mxu0 0.0
  %660 = vmatpush.xpose.msra.mxu0 0.0
  %661 = vmatpush.xpose.msra.mxu0 0.0
  %662 = vmatpush.xpose.msra.mxu0 0.0
  %663 = vmatpush.xpose.msra.mxu0 0.0
  %664 = vmatpush.xpose.msra.mxu0 %v647
  %665 = vmatmul.f32.gmra.mxu0 %v645
  %v666 = vpop.f32.mrf.mxu0
  %v667 = vadd.f32 0.0, %v666
  %668 = vdwg.mxu0
  %v669 = vmul.f32 %v667, 0.35355338
  %v670 = vadd.f32 %v669, %v602
  %v671 = vsel %vm291, %v670, -inf
  %672 = vmax.xlane.f32.xlu0 %v671
  %v673 = vpop.xlane.xlu0 %672
  %v674 = vsub.f32 %v670, %v673
  %v675 = vmul.f32 %v674, 1.442695
  %v676 = vpow.pop %v675
  %v677 = vsel %vm291, %v676, 0.0
  %678 = vadd.xlane.f32.xlu0 %v677
  %v679 = vpop.xlane.xlu0 %678
  %v680 = vrcp.pop %v679
  %v681 = vmul.f32 %v676, %v680
  %682 = vrot.lane.b32.xlu0 %v286, 56
  %v683 = vpop.permute.xlu0 %682
  %v686 = vsel %vm291, %v681, 0
  %688 = vmatpush.msra.mxu0 0.0
  %689 = vmatpush.msra.mxu0 0.0
  %690 = vmatpush.msra.mxu0 0.0
  %691 = vmatpush.msra.mxu0 0.0
  %692 = vmatpush.msra.mxu0 0.0
  %693 = vmatpush.msra.mxu0 0.0
  %694 = vmatpush.msra.mxu0 0.0
  %695 = vmatpush.msra.mxu0 0.0
  %696 = vmatpush.msra.mxu0 0.0
  %697 = vmatpush.msra.mxu0 0.0
  %698 = vmatpush.msra.mxu0 0.0
  %699 = vmatpush.msra.mxu0 0.0
  %700 = vmatpush.msra.mxu0 0.0
  %701 = vmatpush.msra.mxu0 0.0
  %702 = vmatpush.msra.mxu0 0.0
  %703 = vmatpush.msra.mxu0 %v683
  %704 = vmatmul.f32.gmra.mxu0 %v686
  %v705 = vpop.f32.mrf.mxu0
  %v706 = vadd.f32 0.0, %v705
  %707 = vdwg.mxu0
  %708 = vrot.lane.b32.xlu0 %v286, 112
  %v709 = vpop.permute.xlu0 %708
  %710 = vrot.lane.b32.xlu0 %v286, 80
  %v711 = vpop.permute.xlu0 %710
  %v712 = vsel %vm291, %v709, 0
  %v714 = vsel %vm291, %v711, 0
  %716 = vmatpush.xpose.msra.mxu0 0.0
  %717 = vmatpush.xpose.msra.mxu0 0.0
  %718 = vmatpush.xpose.msra.mxu0 0.0
  %719 = vmatpush.xpose.msra.mxu0 0.0
  %720 = vmatpush.xpose.msra.mxu0 0.0
  %721 = vmatpush.xpose.msra.mxu0 0.0
  %722 = vmatpush.xpose.msra.mxu0 0.0
  %723 = vmatpush.xpose.msra.mxu0 0.0
  %724 = vmatpush.xpose.msra.mxu0 0.0
  %725 = vmatpush.xpose.msra.mxu0 0.0
  %726 = vmatpush.xpose.msra.mxu0 0.0
  %727 = vmatpush.xpose.msra.mxu0 0.0
  %728 = vmatpush.xpose.msra.mxu0 0.0
  %729 = vmatpush.xpose.msra.mxu0 0.0
  %730 = vmatpush.xpose.msra.mxu0 0.0
  %731 = vmatpush.xpose.msra.mxu0 %v714
  %732 = vmatmul.f32.gmra.mxu0 %v712
  %v733 = vpop.f32.mrf.mxu0
  %v734 = vadd.f32 0.0, %v733
  %735 = vdwg.mxu0
  %v736 = vmul.f32 %v734, 0.35355338
  %v737 = vadd.f32 %v736, %v602
  %v738 = vsel %vm291, %v737, -inf
  %739 = vmax.xlane.f32.xlu0 %v738
  %v740 = vpop.xlane.xlu0 %739
  %v741 = vsub.f32 %v737, %v740
  %v742 = vmul.f32 %v741, 1.442695
  %v743 = vpow.pop %v742
  %v744 = vsel %vm291, %v743, 0.0
  %745 = vadd.xlane.f32.xlu0 %v744
  %v746 = vpop.xlane.xlu0 %745
  %v747 = vrcp.pop %v746
  %v748 = vmul.f32 %v743, %v747
  %749 = vrot.lane.b32.xlu0 %v286, 48
  %v750 = vpop.permute.xlu0 %749
  %v753 = vsel %vm291, %v748, 0
  %755 = vmatpush.msra.mxu0 0.0
  %756 = vmatpush.msra.mxu0 0.0
  %757 = vmatpush.msra.mxu0 0.0
  %758 = vmatpush.msra.mxu0 0.0
  %759 = vmatpush.msra.mxu0 0.0
  %760 = vmatpush.msra.mxu0 0.0
  %761 = vmatpush.msra.mxu0 0.0
  %762 = vmatpush.msra.mxu0 0.0
  %763 = vmatpush.msra.mxu0 0.0
  %764 = vmatpush.msra.mxu0 0.0
  %765 = vmatpush.msra.mxu0 0.0
  %766 = vmatpush.msra.mxu0 0.0
  %767 = vmatpush.msra.mxu0 0.0
  %768 = vmatpush.msra.mxu0 0.0
  %769 = vmatpush.msra.mxu0 0.0
  %770 = vmatpush.msra.mxu0 %v750
  %771 = vmatmul.f32.gmra.mxu0 %v753
  %v772 = vpop.f32.mrf.mxu0
  %v773 = vadd.f32 0.0, %v772
  %774 = vdwg.mxu0
  %775 = vrot.lane.b32.xlu0 %v286, 104
  %v776 = vpop.permute.xlu0 %775
  %777 = vrot.lane.b32.xlu0 %v286, 72
  %v778 = vpop.permute.xlu0 %777
  %v779 = vsel %vm291, %v776, 0
  %v781 = vsel %vm291, %v778, 0
  %783 = vmatpush.xpose.msra.mxu0 0.0
  %784 = vmatpush.xpose.msra.mxu0 0.0
  %785 = vmatpush.xpose.msra.mxu0 0.0
  %786 = vmatpush.xpose.msra.mxu0 0.0
  %787 = vmatpush.xpose.msra.mxu0 0.0
  %788 = vmatpush.xpose.msra.mxu0 0.0
  %789 = vmatpush.xpose.msra.mxu0 0.0
  %790 = vmatpush.xpose.msra.mxu0 0.0
  %791 = vmatpush.xpose.msra.mxu0 0.0
  %792 = vmatpush.xpose.msra.mxu0 0.0
  %793 = vmatpush.xpose.msra.mxu0 0.0
  %794 = vmatpush.xpose.msra.mxu0 0.0
  %795 = vmatpush.xpose.msra.mxu0 0.0
  %796 = vmatpush.xpose.msra.mxu0 0.0
  %797 = vmatpush.xpose.msra.mxu0 0.0
  %798 = vmatpush.xpose.msra.mxu0 %v781
  %799 = vmatmul.f32.gmra.mxu0 %v779
  %v800 = vpop.f32.mrf.mxu0
  %v801 = vadd.f32 0.0, %v800
  %802 = vdwg.mxu0
  %v803 = vmul.f32 %v801, 0.35355338
  %v804 = vadd.f32 %v803, %v602
  %v805 = vsel %vm291, %v804, -inf
  %806 = vmax.xlane.f32.xlu0 %v805
  %v807 = vpop.xlane.xlu0 %806
  %v808 = vsub.f32 %v804, %v807
  %v809 = vmul.f32 %v808, 1.442695
  %v810 = vpow.pop %v809
  %v811 = vsel %vm291, %v810, 0.0
  %812 = vadd.xlane.f32.xlu0 %v811
  %v813 = vpop.xlane.xlu0 %812
  %v814 = vrcp.pop %v813
  %v815 = vmul.f32 %v810, %v814
  %816 = vrot.lane.b32.xlu0 %v286, 40
  %v817 = vpop.permute.xlu0 %816
  %v820 = vsel %vm291, %v815, 0
  %822 = vmatpush.msra.mxu0 0.0
  %823 = vmatpush.msra.mxu0 0.0
  %824 = vmatpush.msra.mxu0 0.0
  %825 = vmatpush.msra.mxu0 0.0
  %826 = vmatpush.msra.mxu0 0.0
  %827 = vmatpush.msra.mxu0 0.0
  %828 = vmatpush.msra.mxu0 0.0
  %829 = vmatpush.msra.mxu0 0.0
  %830 = vmatpush.msra.mxu0 0.0
  %831 = vmatpush.msra.mxu0 0.0
  %832 = vmatpush.msra.mxu0 0.0
  %833 = vmatpush.msra.mxu0 0.0
  %834 = vmatpush.msra.mxu0 0.0
  %835 = vmatpush.msra.mxu0 0.0
  %836 = vmatpush.msra.mxu0 0.0
  %837 = vmatpush.msra.mxu0 %v817
  %838 = vmatmul.f32.gmra.mxu0 %v820
  %v839 = vpop.f32.mrf.mxu0
  %v840 = vadd.f32 0.0, %v839
  %841 = vdwg.mxu0
  %843 = vrot.lane.b32.xlu0 %v706, 8
  %v844 = vpop.permute.xlu0 %843
  %847 = vrot.lane.b32.xlu0 %v773, 16
  %v848 = vpop.permute.xlu0 %847
  %851 = vrot.lane.b32.xlu0 %v840, 24
  %v852 = vpop.permute.xlu0 %851
  %v854 = vsel %vm291, %v639, %v844
  %v855 = vsel %vm570, %v854, %v848
  %v856 = vsel %vm572, %v855, %v852
  %v857 = vld [vmem:[%s10] sm:$0xff]
  %v858 = vld [vmem:[%s10 + $0x8] sm:$0xff]
  %v859 = vld [vmem:[%s10 + $0x10] sm:$0xff]
  %v860 = vld [vmem:[%s10 + $0x18] sm:$0xff]
  %v861 = vld [vmem:[%s11] sm:$0x1]
  %v863 = vperm.slane %v861, 0
  %v866 = vsel %vm185, %v573, 0
  %v869 = vsel %vm185, %v856, 0
  %871 = vmatpush.msra.mxu0 0.0
  %872 = vmatpush.msra.mxu0 0.0
  %873 = vmatpush.msra.mxu0 0.0
  %874 = vmatpush.msra.mxu0 0.0
  %875 = vmatpush.msra.mxu0 0.0
  %876 = vmatpush.msra.mxu0 0.0
  %877 = vmatpush.msra.mxu0 0.0
  %878 = vmatpush.msra.mxu0 0.0
  %879 = vmatpush.msra.mxu0 0.0
  %880 = vmatpush.msra.mxu0 0.0
  %881 = vmatpush.msra.mxu0 0.0
  %882 = vmatpush.msra.mxu0 0.0
  %883 = vmatpush.msra.mxu0 %v860
  %884 = vmatpush.msra.mxu0 %v859
  %885 = vmatpush.msra.mxu0 %v858
  %886 = vmatpush.msra.mxu0 %v857
  %887 = vmatmul.f32.gmra.mxu0 %v866
  %v888 = vpop.f32.mrf.mxu0
  %v889 = vadd.f32 %v863, %v888
  %890 = vmatmul.f32.gmra.mxu0 %v869
  %v891 = vpop.f32.mrf.mxu0
  %v892 = vadd.f32 %v863, %v891
  %893 = vdwg.mxu0
  %v894 = vadd.f32 %v889, %v245
  %v895 = vadd.f32 %v892, %v246
  %v896 = vld [vmem:[%s12] sm:$0x1]
  %v897 = vld [vmem:[%s13] sm:$0x1]
  %v898 = vsel %vm185, %v894, 0.0
  %899 = vadd.xlane.f32.xlu0 %v898
  %v900 = vpop.xlane.xlu0 %899
  %v901 = vsel %vm185, %v895, 0.0
  %902 = vadd.xlane.f32.xlu0 %v901
  %v903 = vpop.xlane.xlu0 %902
  %v904 = vmul.f32 %v900, %v198
  %v905 = vmul.f32 %v903, %v198
  %v906 = vsub.f32 %v894, %v904
  %v907 = vsub.f32 %v895, %v905
  %v908 = vmul.f32 %v906, %v906
  %v909 = vmul.f32 %v907, %v907
  %v910 = vsel %vm185, %v908, 0.0
  %911 = vadd.xlane.f32.xlu0 %v910
  %v912 = vpop.xlane.xlu0 %911
  %v913 = vsel %vm185, %v909, 0.0
  %914 = vadd.xlane.f32.xlu0 %v913
  %v915 = vpop.xlane.xlu0 %914
  %v916 = vmul.f32 %v912, %v198
  %v917 = vmul.f32 %v915, %v198
  %v918 = vadd.f32 %v916, 1e-12
  %v919 = vadd.f32 %v917, 1e-12
  %v920 = vrsqrt.pop %v918
  %v921 = vmul.f32 %v920, %v918
  %v922 = vmul.f32 %v921, %v920
  %v923 = vmul.f32 0.5, %v922
  %v924 = vsub.f32 1.5, %v923
  %v925 = vmul.f32 %v920, %v924
  %vm926 = vweird.f32 %v918
  %vm927 = vweird.f32 %v920
  %vm928 = vmor %vm926, %vm927
  %v929 = vsel %vm928, %v920, %v925
  %v930 = vrsqrt.pop %v919
  %v931 = vmul.f32 %v930, %v919
  %v932 = vmul.f32 %v931, %v930
  %v933 = vmul.f32 0.5, %v932
  %v934 = vsub.f32 1.5, %v933
  %v935 = vmul.f32 %v930, %v934
  %vm936 = vweird.f32 %v919
  %vm937 = vweird.f32 %v930
  %vm938 = vmor %vm936, %vm937
  %v939 = vsel %vm938, %v930, %v935
  %v940 = vmul.f32 %v906, %v929
  %v941 = vmul.f32 %v907, %v939
  %v943 = vperm.slane %v896, 0
  %v945 = vmul.f32 %v940, %v943
  %v946 = vmul.f32 %v941, %v943
  %v948 = vperm.slane %v897, 0
  %v950 = vadd.f32 %v945, %v948
  %v951 = vadd.f32 %v946, %v948
  %v952 = vld [vmem:[%s14] sm:$0xff]
  %v953 = vld [vmem:[%s14 + $0x8] sm:$0xff]
  %v954 = vld [vmem:[%s14 + $0x10] sm:$0xff]
  %v955 = vld [vmem:[%s14 + $0x18] sm:$0xff]
  %v956 = vld [vmem:[%s15] sm:$0x1]
  %v958 = vperm.slane %v956, 0
  %v961 = vsel %vm185, %v950, 0
  %v964 = vsel %vm185, %v951, 0
  %966 = vmatpush.msra.mxu0 0.0
  %967 = vmatpush.msra.mxu0 0.0
  %968 = vmatpush.msra.mxu0 0.0
  %969 = vmatpush.msra.mxu0 0.0
  %970 = vmatpush.msra.mxu0 0.0
  %971 = vmatpush.msra.mxu0 0.0
  %972 = vmatpush.msra.mxu0 0.0
  %973 = vmatpush.msra.mxu0 0.0
  %974 = vmatpush.msra.mxu0 0.0
  %975 = vmatpush.msra.mxu0 0.0
  %976 = vmatpush.msra.mxu0 0.0
  %977 = vmatpush.msra.mxu0 0.0
  %978 = vmatpush.msra.mxu0 %v955
  %979 = vmatpush.msra.mxu0 %v954
  %980 = vmatpush.msra.mxu0 %v953
  %981 = vmatpush.msra.mxu0 %v952
  %982 = vmatmul.f32.gmra.mxu0 %v961
  %v983 = vpop.f32.mrf.mxu0
  %v984 = vadd.f32 %v958, %v983
  %985 = vmatmul.f32.gmra.mxu0 %v964
  %v986 = vpop.f32.mrf.mxu0
  %v987 = vadd.f32 %v958, %v986
  %988 = vdwg.mxu0
  %v989 = vmul.f32 %v984, 0.5
  %v990 = vmul.f32 %v987, 0.5
  %v991 = vmul.f32 %v984, 0.044715
  %v992 = vmul.f32 %v987, 0.044715
  %v993 = vmul.f32 %v991, %v984
  %v994 = vmul.f32 %v992, %v987
  %v995 = vmul.f32 %v993, %v984
  %v996 = vmul.f32 %v994, %v987
  %v997 = vadd.f32 %v984, %v995
  %v998 = vadd.f32 %v987, %v996
  %v999 = vmul.f32 %v997, 0.7978846
  %v1000 = vmul.f32 %v998, 0.7978846
  %v1001 = vtanh.pop %v999
  %v1002 = vtanh.pop %v1000
  %v1003 = vadd.f32 %v1001, 1.0
  %v1004 = vadd.f32 %v1002, 1.0
  %v1005 = vmul.f32 %v989, %v1003
  %v1006 = vmul.f32 %v990, %v1004
  %v1007 = vld [vmem:[%s16] sm:$0xff]
  %v1008 = vld [vmem:[%s16 + $0x8] sm:$0xff]
  %v1009 = vld [vmem:[%s16 + $0x10] sm:$0xff]
  %v1010 = vld [vmem:[%s16 + $0x18] sm:$0xff]
  %v1011 = vld [vmem:[%s16 + $0x20] sm:$0xff]
  %v1012 = vld [vmem:[%s16 + $0x28] sm:$0xff]
  %v1013 = vld [vmem:[%s16 + $0x30] sm:$0xff]
  %v1014 = vld [vmem:[%s16 + $0x38] sm:$0xff]
  %v1015 = vld [vmem:[%s17] sm:$0x1]
  %v1017 = vperm.slane %v1015, 0
  %vm1019 = vcmask 523264
  %v1021 = vsel %vm1019, %v1005, 0
  %v1024 = vsel %vm1019, %v1006, 0
  %1026 = vmatpush.msra.mxu0 0.0
  %1027 = vmatpush.msra.mxu0 0.0
  %1028 = vmatpush.msra.mxu0 0.0
  %1029 = vmatpush.msra.mxu0 0.0
  %1030 = vmatpush.msra.mxu0 0.0
  %1031 = vmatpush.msra.mxu0 0.0
  %1032 = vmatpush.msra.mxu0 0.0
  %1033 = vmatpush.msra.mxu0 0.0
  %1034 = vmatpush.msra.mxu0 %v1014
  %1035 = vmatpush.msra.mxu0 %v1013
  %1036 = vmatpush.msra.mxu0 %v1012
  %1037 = vmatpush.msra.mxu0 %v1011
  %1038 = vmatpush.msra.mxu0 %v1010
  %1039 = vmatpush.msra.mxu0 %v1009
  %1040 = vmatpush.msra.mxu0 %v1008
  %1041 = vmatpush.msra.mxu0 %v1007
  %1042 = vmatmul.f32.gmra.mxu0 %v1021
  %v1043 = vpop.f32.mrf.mxu0
  %v1044 = vadd.f32 %v1017, %v1043
  %1045 = vmatmul.f32.gmra.mxu0 %v1024
  %v1046 = vpop.f32.mrf.mxu0
  %v1047 = vadd.f32 %v1017, %v1046
  %1048 = vdwg.mxu0
  %v1049 = vadd.f32 %v1044, %v950
  %v1050 = vadd.f32 %v1047, %v951
  %v1051 = vld [vmem:[%s18] sm:$0x1]
  %v1052 = vld [vmem:[%s19] sm:$0x1]
  %v1053 = vsel %vm185, %v1049, 0.0
  %1054 = vadd.xlane.f32.xlu0 %v1053
  %v1055 = vpop.xlane.xlu0 %1054
  %v1056 = vsel %vm185, %v1050, 0.0
  %1057 = vadd.xlane.f32.xlu0 %v1056
  %v1058 = vpop.xlane.xlu0 %1057
  %v1059 = vmul.f32 %v1055, %v198
  %v1060 = vmul.f32 %v1058, %v198
  %v1061 = vsub.f32 %v1049, %v1059
  %v1062 = vsub.f32 %v1050, %v1060
  %v1063 = vmul.f32 %v1061, %v1061
  %v1064 = vmul.f32 %v1062, %v1062
  %v1065 = vsel %vm185, %v1063, 0.0
  %1066 = vadd.xlane.f32.xlu0 %v1065
  %v1067 = vpop.xlane.xlu0 %1066
  %v1068 = vsel %vm185, %v1064, 0.0
  %1069 = vadd.xlane.f32.xlu0 %v1068
  %v1070 = vpop.xlane.xlu0 %1069
  %v1071 = vmul.f32 %v1067, %v198
  %v1072 = vmul.f32 %v1070, %v198
  %v1073 = vadd.f32 %v1071, 1e-12
  %v1074 = vadd.f32 %v1072, 1e-12
  %v1075 = vrsqrt.pop %v1073
  %v1076 = vmul.f32 %v1075, %v1073
  %v1077 = vmul.f32 %v1076, %v1075
  %v1078 = vmul.f32 0.5, %v1077
  %v1079 = vsub.f32 1.5, %v1078
  %v1080 = vmul.f32 %v1075, %v1079
  %vm1081 = vweird.f32 %v1073
  %vm1082 = vweird.f32 %v1075
  %vm1083 = vmor %vm1081, %vm1082
  %v1084 = vsel %vm1083, %v1075, %v1080
  %v1085 = vrsqrt.pop %v1074
  %v1086 = vmul.f32 %v1085, %v1074
  %v1087 = vmul.f32 %v1086, %v1085
  %v1088 = vmul.f32 0.5, %v1087
  %v1089 = vsub.f32 1.5, %v1088
  %v1090 = vmul.f32 %v1085, %v1089
  %vm1091 = vweird.f32 %v1074
  %vm1092 = vweird.f32 %v1085
  %vm1093 = vmor %vm1091, %vm1092
  %v1094 = vsel %vm1093, %v1085, %v1090
  %v1095 = vmul.f32 %v1061, %v1084
  %v1096 = vmul.f32 %v1062, %v1094
  %v1098 = vperm.slane %v1051, 0
  %v1100 = vmul.f32 %v1095, %v1098
  %v1101 = vmul.f32 %v1096, %v1098
  %v1103 = vperm.slane %v1052, 0
  %v1105 = vadd.f32 %v1100, %v1103
  %v1106 = vadd.f32 %v1101, %v1103
  %s1107 = scalar_lea.vmem %s8, 32
  %v1108 = vld [vmem:[%s1107] sm:$0xff]
  %v1109 = vld [vmem:[%s1107 + $0x8] sm:$0xff]
  %v1110 = vld [vmem:[%s1107 + $0x10] sm:$0xff]
  %v1111 = vld [vmem:[%s1107 + $0x18] sm:$0xff]
  %s1112 = scalar_lea.vmem %s9, 1
  %v1113 = vld [vmem:[%s1112] sm:$0x1]
  %v1115 = vperm.slane %v1113, 0
  %v1118 = vsel %vm185, %v1105, 0
  %v1121 = vsel %vm185, %v1106, 0
  %1123 = vmatpush.msra.mxu0 0.0
  %1124 = vmatpush.msra.mxu0 0.0
  %1125 = vmatpush.msra.mxu0 0.0
  %1126 = vmatpush.msra.mxu0 0.0
  %1127 = vmatpush.msra.mxu0 0.0
  %1128 = vmatpush.msra.mxu0 0.0
  %1129 = vmatpush.msra.mxu0 0.0
  %1130 = vmatpush.msra.mxu0 0.0
  %1131 = vmatpush.msra.mxu0 0.0
  %1132 = vmatpush.msra.mxu0 0.0
  %1133 = vmatpush.msra.mxu0 0.0
  %1134 = vmatpush.msra.mxu0 0.0
  %1135 = vmatpush.msra.mxu0 %v1111
  %1136 = vmatpush.msra.mxu0 %v1110
  %1137 = vmatpush.msra.mxu0 %v1109
  %1138 = vmatpush.msra.mxu0 %v1108
  %1139 = vmatmul.f32.gmra.mxu0 %v1118
  %v1140 = vpop.f32.mrf.mxu0
  %v1141 = vadd.f32 %v1115, %v1140
  %1142 = vmatmul.f32.gmra.mxu0 %v1121
  %v1143 = vpop.f32.mrf.mxu0
  %v1144 = vadd.f32 %v1115, %v1143
  %1145 = vdwg.mxu0
  %1147 = vrot.lane.b32.xlu0 %v1141, 96
  %v1148 = vpop.permute.xlu0 %1147
  %v1149 = vsel %vm291, %v1141, 0
  %v1151 = vsel %vm291, %v1148, 0
  %1153 = vmatpush.xpose.msra.mxu0 0.0
  %1154 = vmatpush.xpose.msra.mxu0 0.0
  %1155 = vmatpush.xpose.msra.mxu0 0.0
  %1156 = vmatpush.xpose.msra.mxu0 0.0
  %1157 = vmatpush.xpose.msra.mxu0 0.0
  %1158 = vmatpush.xpose.msra.mxu0 0.0
  %1159 = vmatpush.xpose.msra.mxu0 0.0
  %1160 = vmatpush.xpose.msra.mxu0 0.0
  %1161 = vmatpush.xpose.msra.mxu0 0.0
  %1162 = vmatpush.xpose.msra.mxu0 0.0
  %1163 = vmatpush.xpose.msra.mxu0 0.0
  %1164 = vmatpush.xpose.msra.mxu0 0.0
  %1165 = vmatpush.xpose.msra.mxu0 0.0
  %1166 = vmatpush.xpose.msra.mxu0 0.0
  %1167 = vmatpush.xpose.msra.mxu0 0.0
  %1168 = vmatpush.xpose.msra.mxu0 %v1151
  %1169 = vmatmul.f32.gmra.mxu0 %v1149
  %v1170 = vpop.f32.mrf.mxu0
  %v1171 = vadd.f32 0.0, %v1170
  %1172 = vdwg.mxu0
  %v1173 = vmul.f32 %v1171, 0.35355338
  %v1174 = vadd.f32 %v1173, %v317
  %v1175 = vsel %vm291, %v1174, -inf
  %1176 = vmax.xlane.f32.xlu0 %v1175
  %v1177 = vpop.xlane.xlu0 %1176
  %v1178 = vsub.f32 %v1174, %v1177
  %v1179 = vmul.f32 %v1178, 1.442695
  %v1180 = vpow.pop %v1179
  %v1181 = vsel %vm291, %v1180, 0.0
  %1182 = vadd.xlane.f32.xlu0 %v1181
  %v1183 = vpop.xlane.xlu0 %1182
  %v1184 = vrcp.pop %v1183
  %v1185 = vmul.f32 %v1180, %v1184
  %1186 = vrot.lane.b32.xlu0 %v1141, 64
  %v1187 = vpop.permute.xlu0 %1186
  %v1190 = vsel %vm291, %v1185, 0
  %1192 = vmatpush.msra.mxu0 0.0
  %1193 = vmatpush.msra.mxu0 0.0
  %1194 = vmatpush.msra.mxu0 0.0
  %1195 = vmatpush.msra.mxu0 0.0
  %1196 = vmatpush.msra.mxu0 0.0
  %1197 = vmatpush.msra.mxu0 0.0
  %1198 = vmatpush.msra.mxu0 0.0
  %1199 = vmatpush.msra.mxu0 0.0
  %1200 = vmatpush.msra.mxu0 0.0
  %1201 = vmatpush.msra.mxu0 0.0
  %1202 = vmatpush.msra.mxu0 0.0
  %1203 = vmatpush.msra.mxu0 0.0
  %1204 = vmatpush.msra.mxu0 0.0
  %1205 = vmatpush.msra.mxu0 0.0
  %1206 = vmatpush.msra.mxu0 0.0
  %1207 = vmatpush.msra.mxu0 %v1187
  %1208 = vmatmul.f32.gmra.mxu0 %v1190
  %v1209 = vpop.f32.mrf.mxu0
  %v1210 = vadd.f32 0.0, %v1209
  %1211 = vdwg.mxu0
  %1212 = vrot.lane.b32.xlu0 %v1141, 120
  %v1213 = vpop.permute.xlu0 %1212
  %1214 = vrot.lane.b32.xlu0 %v1141, 88
  %v1215 = vpop.permute.xlu0 %1214
  %v1216 = vsel %vm291, %v1213, 0
  %v1218 = vsel %vm291, %v1215, 0
  %1220 = vmatpush.xpose.msra.mxu0 0.0
  %1221 = vmatpush.xpose.msra.mxu0 0.0
  %1222 = vmatpush.xpose.msra.mxu0 0.0
  %1223 = vmatpush.xpose.msra.mxu0 0.0
  %1224 = vmatpush.xpose.msra.mxu0 0.0
  %1225 = vmatpush.xpose.msra.mxu0 0.0
  %1226 = vmatpush.xpose.msra.mxu0 0.0
  %1227 = vmatpush.xpose.msra.mxu0 0.0
  %1228 = vmatpush.xpose.msra.mxu0 0.0
  %1229 = vmatpush.xpose.msra.mxu0 0.0
  %1230 = vmatpush.xpose.msra.mxu0 0.0
  %1231 = vmatpush.xpose.msra.mxu0 0.0
  %1232 = vmatpush.xpose.msra.mxu0 0.0
  %1233 = vmatpush.xpose.msra.mxu0 0.0
  %1234 = vmatpush.xpose.msra.mxu0 0.0
  %1235 = vmatpush.xpose.msra.mxu0 %v1218
  %1236 = vmatmul.f32.gmra.mxu0 %v1216
  %v1237 = vpop.f32.mrf.mxu0
  %v1238 = vadd.f32 0.0, %v1237
  %1239 = vdwg.mxu0
  %v1240 = vmul.f32 %v1238, 0.35355338
  %v1241 = vadd.f32 %v1240, %v317
  %v1242 = vsel %vm291, %v1241, -inf
  %1243 = vmax.xlane.f32.xlu0 %v1242
  %v1244 = vpop.xlane.xlu0 %1243
  %v1245 = vsub.f32 %v1241, %v1244
  %v1246 = vmul.f32 %v1245, 1.442695
  %v1247 = vpow.pop %v1246
  %v1248 = vsel %vm291, %v1247, 0.0
  %1249 = vadd.xlane.f32.xlu0 %v1248
  %v1250 = vpop.xlane.xlu0 %1249
  %v1251 = vrcp.pop %v1250
  %v1252 = vmul.f32 %v1247, %v1251
  %1253 = vrot.lane.b32.xlu0 %v1141, 56
  %v1254 = vpop.permute.xlu0 %1253
  %v1257 = vsel %vm291, %v1252, 0
  %1259 = vmatpush.msra.mxu0 0.0
  %1260 = vmatpush.msra.mxu0 0.0
  %1261 = vmatpush.msra.mxu0 0.0
  %1262 = vmatpush.msra.mxu0 0.0
  %1263 = vmatpush.msra.mxu0 0.0
  %1264 = vmatpush.msra.mxu0 0.0
  %1265 = vmatpush.msra.mxu0 0.0
  %1266 = vmatpush.msra.mxu0 0.0
  %1267 = vmatpush.msra.mxu0 0.0
  %1268 = vmatpush.msra.mxu0 0.0
  %1269 = vmatpush.msra.mxu0 0.0
  %1270 = vmatpush.msra.mxu0 0.0
  %1271 = vmatpush.msra.mxu0 0.0
  %1272 = vmatpush.msra.mxu0 0.0
  %1273 = vmatpush.msra.mxu0 0.0
  %1274 = vmatpush.msra.mxu0 %v1254
  %1275 = vmatmul.f32.gmra.mxu0 %v1257
  %v1276 = vpop.f32.mrf.mxu0
  %v1277 = vadd.f32 0.0, %v1276
  %1278 = vdwg.mxu0
  %1279 = vrot.lane.b32.xlu0 %v1141, 112
  %v1280 = vpop.permute.xlu0 %1279
  %1281 = vrot.lane.b32.xlu0 %v1141, 80
  %v1282 = vpop.permute.xlu0 %1281
  %v1283 = vsel %vm291, %v1280, 0
  %v1285 = vsel %vm291, %v1282, 0
  %1287 = vmatpush.xpose.msra.mxu0 0.0
  %1288 = vmatpush.xpose.msra.mxu0 0.0
  %1289 = vmatpush.xpose.msra.mxu0 0.0
  %1290 = vmatpush.xpose.msra.mxu0 0.0
  %1291 = vmatpush.xpose.msra.mxu0 0.0
  %1292 = vmatpush.xpose.msra.mxu0 0.0
  %1293 = vmatpush.xpose.msra.mxu0 0.0
  %1294 = vmatpush.xpose.msra.mxu0 0.0
  %1295 = vmatpush.xpose.msra.mxu0 0.0
  %1296 = vmatpush.xpose.msra.mxu0 0.0
  %1297 = vmatpush.xpose.msra.mxu0 0.0
  %1298 = vmatpush.xpose.msra.mxu0 0.0
  %1299 = vmatpush.xpose.msra.mxu0 0.0
  %1300 = vmatpush.xpose.msra.mxu0 0.0
  %1301 = vmatpush.xpose.msra.mxu0 0.0
  %1302 = vmatpush.xpose.msra.mxu0 %v1285
  %1303 = vmatmul.f32.gmra.mxu0 %v1283
  %v1304 = vpop.f32.mrf.mxu0
  %v1305 = vadd.f32 0.0, %v1304
  %1306 = vdwg.mxu0
  %v1307 = vmul.f32 %v1305, 0.35355338
  %v1308 = vadd.f32 %v1307, %v317
  %v1309 = vsel %vm291, %v1308, -inf
  %1310 = vmax.xlane.f32.xlu0 %v1309
  %v1311 = vpop.xlane.xlu0 %1310
  %v1312 = vsub.f32 %v1308, %v1311
  %v1313 = vmul.f32 %v1312, 1.442695
  %v1314 = vpow.pop %v1313
  %v1315 = vsel %vm291, %v1314, 0.0
  %1316 = vadd.xlane.f32.xlu0 %v1315
  %v1317 = vpop.xlane.xlu0 %1316
  %v1318 = vrcp.pop %v1317
  %v1319 = vmul.f32 %v1314, %v1318
  %1320 = vrot.lane.b32.xlu0 %v1141, 48
  %v1321 = vpop.permute.xlu0 %1320
  %v1324 = vsel %vm291, %v1319, 0
  %1326 = vmatpush.msra.mxu0 0.0
  %1327 = vmatpush.msra.mxu0 0.0
  %1328 = vmatpush.msra.mxu0 0.0
  %1329 = vmatpush.msra.mxu0 0.0
  %1330 = vmatpush.msra.mxu0 0.0
  %1331 = vmatpush.msra.mxu0 0.0
  %1332 = vmatpush.msra.mxu0 0.0
  %1333 = vmatpush.msra.mxu0 0.0
  %1334 = vmatpush.msra.mxu0 0.0
  %1335 = vmatpush.msra.mxu0 0.0
  %1336 = vmatpush.msra.mxu0 0.0
  %1337 = vmatpush.msra.mxu0 0.0
  %1338 = vmatpush.msra.mxu0 0.0
  %1339 = vmatpush.msra.mxu0 0.0
  %1340 = vmatpush.msra.mxu0 0.0
  %1341 = vmatpush.msra.mxu0 %v1321
  %1342 = vmatmul.f32.gmra.mxu0 %v1324
  %v1343 = vpop.f32.mrf.mxu0
  %v1344 = vadd.f32 0.0, %v1343
  %1345 = vdwg.mxu0
  %1346 = vrot.lane.b32.xlu0 %v1141, 104
  %v1347 = vpop.permute.xlu0 %1346
  %1348 = vrot.lane.b32.xlu0 %v1141, 72
  %v1349 = vpop.permute.xlu0 %1348
  %v1350 = vsel %vm291, %v1347, 0
  %v1352 = vsel %vm291, %v1349, 0
  %1354 = vmatpush.xpose.msra.mxu0 0.0
  %1355 = vmatpush.xpose.msra.mxu0 0.0
  %1356 = vmatpush.xpose.msra.mxu0 0.0
  %1357 = vmatpush.xpose.msra.mxu0 0.0
  %1358 = vmatpush.xpose.msra.mxu0 0.0
  %1359 = vmatpush.xpose.msra.mxu0 0.0
  %1360 = vmatpush.xpose.msra.mxu0 0.0
  %1361 = vmatpush.xpose.msra.mxu0 0.0
  %1362 = vmatpush.xpose.msra.mxu0 0.0
  %1363 = vmatpush.xpose.msra.mxu0 0.0
  %1364 = vmatpush.xpose.msra.mxu0 0.0
  %1365 = vmatpush.xpose.msra.mxu0 0.0
  %1366 = vmatpush.xpose.msra.mxu0 0.0
  %1367 = vmatpush.xpose.msra.mxu0 0.0
  %1368 = vmatpush.xpose.msra.mxu0 0.0
  %1369 = vmatpush.xpose.msra.mxu0 %v1352
  %1370 = vmatmul.f32.gmra.mxu0 %v1350
  %v1371 = vpop.f32.mrf.mxu0
  %v1372 = vadd.f32 0.0, %v1371
  %1373 = vdwg.mxu0
  %v1374 = vmul.f32 %v1372, 0.35355338
  %v1375 = vadd.f32 %v1374, %v317
  %v1376 = vsel %vm291, %v1375, -inf
  %1377 = vmax.xlane.f32.xlu0 %v1376
  %v1378 = vpop.xlane.xlu0 %1377
  %v1379 = vsub.f32 %v1375, %v1378
  %v1380 = vmul.f32 %v1379, 1.442695
  %v1381 = vpow.pop %v1380
  %v1382 = vsel %vm291, %v1381, 0.0
  %1383 = vadd.xlane.f32.xlu0 %v1382
  %v1384 = vpop.xlane.xlu0 %1383
  %v1385 = vrcp.pop %v1384
  %v1386 = vmul.f32 %v1381, %v1385
  %1387 = vrot.lane.b32.xlu0 %v1141, 40
  %v1388 = vpop.permute.xlu0 %1387
  %v1391 = vsel %vm291, %v1386, 0
  %1393 = vmatpush.msra.mxu0 0.0
  %1394 = vmatpush.msra.mxu0 0.0
  %1395 = vmatpush.msra.mxu0 0.0
  %1396 = vmatpush.msra.mxu0 0.0
  %1397 = vmatpush.msra.mxu0 0.0
  %1398 = vmatpush.msra.mxu0 0.0
  %1399 = vmatpush.msra.mxu0 0.0
  %1400 = vmatpush.msra.mxu0 0.0
  %1401 = vmatpush.msra.mxu0 0.0
  %1402 = vmatpush.msra.mxu0 0.0
  %1403 = vmatpush.msra.mxu0 0.0
  %1404 = vmatpush.msra.mxu0 0.0
  %1405 = vmatpush.msra.mxu0 0.0
  %1406 = vmatpush.msra.mxu0 0.0
  %1407 = vmatpush.msra.mxu0 0.0
  %1408 = vmatpush.msra.mxu0 %v1388
  %1409 = vmatmul.f32.gmra.mxu0 %v1391
  %v1410 = vpop.f32.mrf.mxu0
  %v1411 = vadd.f32 0.0, %v1410
  %1412 = vdwg.mxu0
  %1414 = vrot.lane.b32.xlu0 %v1277, 8
  %v1415 = vpop.permute.xlu0 %1414
  %1418 = vrot.lane.b32.xlu0 %v1344, 16
  %v1419 = vpop.permute.xlu0 %1418
  %1422 = vrot.lane.b32.xlu0 %v1411, 24
  %v1423 = vpop.permute.xlu0 %1422
  %v1425 = vsel %vm291, %v1210, %v1415
  %v1426 = vsel %vm570, %v1425, %v1419
  %v1427 = vsel %vm572, %v1426, %v1423
  %1429 = vrot.lane.b32.xlu0 %v1144, 96
  %v1430 = vpop.permute.xlu0 %1429
  %v1431 = vsel %vm291, %v1144, 0
  %v1433 = vsel %vm291, %v1430, 0
  %1435 = vmatpush.xpose.msra.mxu0 0.0
  %1436 = vmatpush.xpose.msra.mxu0 0.0
  %1437 = vmatpush.xpose.msra.mxu0 0.0
  %1438 = vmatpush.xpose.msra.mxu0 0.0
  %1439 = vmatpush.xpose.msra.mxu0 0.0
  %1440 = vmatpush.xpose.msra.mxu0 0.0
  %1441 = vmatpush.xpose.msra.mxu0 0.0
  %1442 = vmatpush.xpose.msra.mxu0 0.0
  %1443 = vmatpush.xpose.msra.mxu0 0.0
  %1444 = vmatpush.xpose.msra.mxu0 0.0
  %1445 = vmatpush.xpose.msra.mxu0 0.0
  %1446 = vmatpush.xpose.msra.mxu0 0.0
  %1447 = vmatpush.xpose.msra.mxu0 0.0
  %1448 = vmatpush.xpose.msra.mxu0 0.0
  %1449 = vmatpush.xpose.msra.mxu0 0.0
  %1450 = vmatpush.xpose.msra.mxu0 %v1433
  %1451 = vmatmul.f32.gmra.mxu0 %v1431
  %v1452 = vpop.f32.mrf.mxu0
  %v1453 = vadd.f32 0.0, %v1452
  %1454 = vdwg.mxu0
  %v1455 = vmul.f32 %v1453, 0.35355338
  %v1456 = vadd.f32 %v1455, %v602
  %v1457 = vsel %vm291, %v1456, -inf
  %1458 = vmax.xlane.f32.xlu0 %v1457
  %v1459 = vpop.xlane.xlu0 %1458
  %v1460 = vsub.f32 %v1456, %v1459
  %v1461 = vmul.f32 %v1460, 1.442695
  %v1462 = vpow.pop %v1461
  %v1463 = vsel %vm291, %v1462, 0.0
  %1464 = vadd.xlane.f32.xlu0 %v1463
  %v1465 = vpop.xlane.xlu0 %1464
  %v1466 = vrcp.pop %v1465
  %v1467 = vmul.f32 %v1462, %v1466
  %1468 = vrot.lane.b32.xlu0 %v1144, 64
  %v1469 = vpop.permute.xlu0 %1468
  %v1472 = vsel %vm291, %v1467, 0
  %1474 = vmatpush.msra.mxu0 0.0
  %1475 = vmatpush.msra.mxu0 0.0
  %1476 = vmatpush.msra.mxu0 0.0
  %1477 = vmatpush.msra.mxu0 0.0
  %1478 = vmatpush.msra.mxu0 0.0
  %1479 = vmatpush.msra.mxu0 0.0
  %1480 = vmatpush.msra.mxu0 0.0
  %1481 = vmatpush.msra.mxu0 0.0
  %1482 = vmatpush.msra.mxu0 0.0
  %1483 = vmatpush.msra.mxu0 0.0
  %1484 = vmatpush.msra.mxu0 0.0
  %1485 = vmatpush.msra.mxu0 0.0
  %1486 = vmatpush.msra.mxu0 0.0
  %1487 = vmatpush.msra.mxu0 0.0
  %1488 = vmatpush.msra.mxu0 0.0
  %1489 = vmatpush.msra.mxu0 %v1469
  %1490 = vmatmul.f32.gmra.mxu0 %v1472
  %v1491 = vpop.f32.mrf.mxu0
  %v1492 = vadd.f32 0.0, %v1491
  %1493 = vdwg.mxu0
  %1494 = vrot.lane.b32.xlu0 %v1144, 120
  %v1495 = vpop.permute.xlu0 %1494
  %1496 = vrot.lane.b32.xlu0 %v1144, 88
  %v1497 = vpop.permute.xlu0 %1496
  %v1498 = vsel %vm291, %v1495, 0
  %v1500 = vsel %vm291, %v1497, 0
  %1502 = vmatpush.xpose.msra.mxu0 0.0
  %1503 = vmatpush.xpose.msra.mxu0 0.0
  %1504 = vmatpush.xpose.msra.mxu0 0.0
  %1505 = vmatpush.xpose.msra.mxu0 0.0
  %1506 = vmatpush.xpose.msra.mxu0 0.0
  %1507 = vmatpush.xpose.msra.mxu0 0.0
  %1508 = vmatpush.xpose.msra.mxu0 0.0
  %1509 = vmatpush.xpose.msra.mxu0 0.0
  %1510 = vmatpush.xpose.msra.mxu0 0.0
  %1511 = vmatpush.xpose.msra.mxu0 0.0
  %1512 = vmatpush.xpose.msra.mxu0 0.0
  %1513 = vmatpush.xpose.msra.mxu0 0.0
  %1514 = vmatpush.xpose.msra.mxu0 0.0
  %1515 = vmatpush.xpose.msra.mxu0 0.0
  %1516 = vmatpush.xpose.msra.mxu0 0.0
  %1517 = vmatpush.xpose.msra.mxu0 %v1500
  %1518 = vmatmul.f32.gmra.mxu0 %v1498
  %v1519 = vpop.f32.mrf.mxu0
  %v1520 = vadd.f32 0.0, %v1519
  %1521 = vdwg.mxu0
  %v1522 = vmul.f32 %v1520, 0.35355338
  %v1523 = vadd.f32 %v1522, %v602
  %v1524 = vsel %vm291, %v1523, -inf
  %1525 = vmax.xlane.f32.xlu0 %v1524
  %v1526 = vpop.xlane.xlu0 %1525
  %v1527 = vsub.f32 %v1523, %v1526
  %v1528 = vmul.f32 %v1527, 1.442695
  %v1529 = vpow.pop %v1528
  %v1530 = vsel %vm291, %v1529, 0.0
  %1531 = vadd.xlane.f32.xlu0 %v1530
  %v1532 = vpop.xlane.xlu0 %1531
  %v1533 = vrcp.pop %v1532
  %v1534 = vmul.f32 %v1529, %v1533
  %1535 = vrot.lane.b32.xlu0 %v1144, 56
  %v1536 = vpop.permute.xlu0 %1535
  %v1539 = vsel %vm291, %v1534, 0
  %1541 = vmatpush.msra.mxu0 0.0
  %1542 = vmatpush.msra.mxu0 0.0
  %1543 = vmatpush.msra.mxu0 0.0
  %1544 = vmatpush.msra.mxu0 0.0
  %1545 = vmatpush.msra.mxu0 0.0
  %1546 = vmatpush.msra.mxu0 0.0
  %1547 = vmatpush.msra.mxu0 0.0
  %1548 = vmatpush.msra.mxu0 0.0
  %1549 = vmatpush.msra.mxu0 0.0
  %1550 = vmatpush.msra.mxu0 0.0
  %1551 = vmatpush.msra.mxu0 0.0
  %1552 = vmatpush.msra.mxu0 0.0
  %1553 = vmatpush.msra.mxu0 0.0
  %1554 = vmatpush.msra.mxu0 0.0
  %1555 = vmatpush.msra.mxu0 0.0
  %1556 = vmatpush.msra.mxu0 %v1536
  %1557 = vmatmul.f32.gmra.mxu0 %v1539
  %v1558 = vpop.f32.mrf.mxu0
  %v1559 = vadd.f32 0.0, %v1558
  %1560 = vdwg.mxu0
  %1561 = vrot.lane.b32.xlu0 %v1144, 112
  %v1562 = vpop.permute.xlu0 %1561
  %1563 = vrot.lane.b32.xlu0 %v1144, 80
  %v1564 = vpop.permute.xlu0 %1563
  %v1565 = vsel %vm291, %v1562, 0
  %v1567 = vsel %vm291, %v1564, 0
  %1569 = vmatpush.xpose.msra.mxu0 0.0
  %1570 = vmatpush.xpose.msra.mxu0 0.0
  %1571 = vmatpush.xpose.msra.mxu0 0.0
  %1572 = vmatpush.xpose.msra.mxu0 0.0
  %1573 = vmatpush.xpose.msra.mxu0 0.0
  %1574 = vmatpush.xpose.msra.mxu0 0.0
  %1575 = vmatpush.xpose.msra.mxu0 0.0
  %1576 = vmatpush.xpose.msra.mxu0 0.0
  %1577 = vmatpush.xpose.msra.mxu0 0.0
  %1578 = vmatpush.xpose.msra.mxu0 0.0
  %1579 = vmatpush.xpose.msra.mxu0 0.0
  %1580 = vmatpush.xpose.msra.mxu0 0.0
  %1581 = vmatpush.xpose.msra.mxu0 0.0
  %1582 = vmatpush.xpose.msra.mxu0 0.0
  %1583 = vmatpush.xpose.msra.mxu0 0.0
  %1584 = vmatpush.xpose.msra.mxu0 %v1567
  %1585 = vmatmul.f32.gmra.mxu0 %v1565
  %v1586 = vpop.f32.mrf.mxu0
  %v1587 = vadd.f32 0.0, %v1586
  %1588 = vdwg.mxu0
  %v1589 = vmul.f32 %v1587, 0.35355338
  %v1590 = vadd.f32 %v1589, %v602
  %v1591 = vsel %vm291, %v1590, -inf
  %1592 = vmax.xlane.f32.xlu0 %v1591
  %v1593 = vpop.xlane.xlu0 %1592
  %v1594 = vsub.f32 %v1590, %v1593
  %v1595 = vmul.f32 %v1594, 1.442695
  %v1596 = vpow.pop %v1595
  %v1597 = vsel %vm291, %v1596, 0.0
  %1598 = vadd.xlane.f32.xlu0 %v1597
  %v1599 = vpop.xlane.xlu0 %1598
  %v1600 = vrcp.pop %v1599
  %v1601 = vmul.f32 %v1596, %v1600
  %1602 = vrot.lane.b32.xlu0 %v1144, 48
  %v1603 = vpop.permute.xlu0 %1602
  %v1606 = vsel %vm291, %v1601, 0
  %1608 = vmatpush.msra.mxu0 0.0
  %1609 = vmatpush.msra.mxu0 0.0
  %1610 = vmatpush.msra.mxu0 0.0
  %1611 = vmatpush.msra.mxu0 0.0
  %1612 = vmatpush.msra.mxu0 0.0
  %1613 = vmatpush.msra.mxu0 0.0
  %1614 = vmatpush.msra.mxu0 0.0
  %1615 = vmatpush.msra.mxu0 0.0
  %1616 = vmatpush.msra.mxu0 0.0
  %1617 = vmatpush.msra.mxu0 0.0
  %1618 = vmatpush.msra.mxu0 0.0
  %1619 = vmatpush.msra.mxu0 0.0
  %1620 = vmatpush.msra.mxu0 0.0
  %1621 = vmatpush.msra.mxu0 0.0
  %1622 = vmatpush.msra.mxu0 0.0
  %1623 = vmatpush.msra.mxu0 %v1603
  %1624 = vmatmul.f32.gmra.mxu0 %v1606
  %v1625 = vpop.f32.mrf.mxu0
  %v1626 = vadd.f32 0.0, %v1625
  %1627 = vdwg.mxu0
  %1628 = vrot.lane.b32.xlu0 %v1144, 104
  %v1629 = vpop.permute.xlu0 %1628
  %1630 = vrot.lane.b32.xlu0 %v1144, 72
  %v1631 = vpop.permute.xlu0 %1630
  %v1632 = vsel %vm291, %v1629, 0
  %v1634 = vsel %vm291, %v1631, 0
  %1636 = vmatpush.xpose.msra.mxu0 0.0
  %1637 = vmatpush.xpose.msra.mxu0 0.0
  %1638 = vmatpush.xpose.msra.mxu0 0.0
  %1639 = vmatpush.xpose.msra.mxu0 0.0
  %1640 = vmatpush.xpose.msra.mxu0 0.0
  %1641 = vmatpush.xpose.msra.mxu0 0.0
  %1642 = vmatpush.xpose.msra.mxu0 0.0
  %1643 = vmatpush.xpose.msra.mxu0 0.0
  %1644 = vmatpush.xpose.msra.mxu0 0.0
  %1645 = vmatpush.xpose.msra.mxu0 0.0
  %1646 = vmatpush.xpose.msra.mxu0 0.0
  %1647 = vmatpush.xpose.msra.mxu0 0.0
  %1648 = vmatpush.xpose.msra.mxu0 0.0
  %1649 = vmatpush.xpose.msra.mxu0 0.0
  %1650 = vmatpush.xpose.msra.mxu0 0.0
  %1651 = vmatpush.xpose.msra.mxu0 %v1634
  %1652 = vmatmul.f32.gmra.mxu0 %v1632
  %v1653 = vpop.f32.mrf.mxu0
  %v1654 = vadd.f32 0.0, %v1653
  %1655 = vdwg.mxu0
  %v1656 = vmul.f32 %v1654, 0.35355338
  %v1657 = vadd.f32 %v1656, %v602
  %v1658 = vsel %vm291, %v1657, -inf
  %1659 = vmax.xlane.f32.xlu0 %v1658
  %v1660 = vpop.xlane.xlu0 %1659
  %v1661 = vsub.f32 %v1657, %v1660
  %v1662 = vmul.f32 %v1661, 1.442695
  %v1663 = vpow.pop %v1662
  %v1664 = vsel %vm291, %v1663, 0.0
  %1665 = vadd.xlane.f32.xlu0 %v1664
  %v1666 = vpop.xlane.xlu0 %1665
  %v1667 = vrcp.pop %v1666
  %v1668 = vmul.f32 %v1663, %v1667
  %1669 = vrot.lane.b32.xlu0 %v1144, 40
  %v1670 = vpop.permute.xlu0 %1669
  %v1673 = vsel %vm291, %v1668, 0
  %1675 = vmatpush.msra.mxu0 0.0
  %1676 = vmatpush.msra.mxu0 0.0
  %1677 = vmatpush.msra.mxu0 0.0
  %1678 = vmatpush.msra.mxu0 0.0
  %1679 = vmatpush.msra.mxu0 0.0
  %1680 = vmatpush.msra.mxu0 0.0
  %1681 = vmatpush.msra.mxu0 0.0
  %1682 = vmatpush.msra.mxu0 0.0
  %1683 = vmatpush.msra.mxu0 0.0
  %1684 = vmatpush.msra.mxu0 0.0
  %1685 = vmatpush.msra.mxu0 0.0
  %1686 = vmatpush.msra.mxu0 0.0
  %1687 = vmatpush.msra.mxu0 0.0
  %1688 = vmatpush.msra.mxu0 0.0
  %1689 = vmatpush.msra.mxu0 0.0
  %1690 = vmatpush.msra.mxu0 %v1670
  %1691 = vmatmul.f32.gmra.mxu0 %v1673
  %v1692 = vpop.f32.mrf.mxu0
  %v1693 = vadd.f32 0.0, %v1692
  %1694 = vdwg.mxu0
  %1696 = vrot.lane.b32.xlu0 %v1559, 8
  %v1697 = vpop.permute.xlu0 %1696
  %1700 = vrot.lane.b32.xlu0 %v1626, 16
  %v1701 = vpop.permute.xlu0 %1700
  %1704 = vrot.lane.b32.xlu0 %v1693, 24
  %v1705 = vpop.permute.xlu0 %1704
  %v1707 = vsel %vm291, %v1492, %v1697
  %v1708 = vsel %vm570, %v1707, %v1701
  %v1709 = vsel %vm572, %v1708, %v1705
  %s1710 = scalar_lea.vmem %s10, 32
  %v1711 = vld [vmem:[%s1710] sm:$0xff]
  %v1712 = vld [vmem:[%s1710 + $0x8] sm:$0xff]
  %v1713 = vld [vmem:[%s1710 + $0x10] sm:$0xff]
  %v1714 = vld [vmem:[%s1710 + $0x18] sm:$0xff]
  %s1715 = scalar_lea.vmem %s11, 1
  %v1716 = vld [vmem:[%s1715] sm:$0x1]
  %v1718 = vperm.slane %v1716, 0
  %v1721 = vsel %vm185, %v1427, 0
  %v1724 = vsel %vm185, %v1709, 0
  %1726 = vmatpush.msra.mxu0 0.0
  %1727 = vmatpush.msra.mxu0 0.0
  %1728 = vmatpush.msra.mxu0 0.0
  %1729 = vmatpush.msra.mxu0 0.0
  %1730 = vmatpush.msra.mxu0 0.0
  %1731 = vmatpush.msra.mxu0 0.0
  %1732 = vmatpush.msra.mxu0 0.0
  %1733 = vmatpush.msra.mxu0 0.0
  %1734 = vmatpush.msra.mxu0 0.0
  %1735 = vmatpush.msra.mxu0 0.0
  %1736 = vmatpush.msra.mxu0 0.0
  %1737 = vmatpush.msra.mxu0 0.0
  %1738 = vmatpush.msra.mxu0 %v1714
  %1739 = vmatpush.msra.mxu0 %v1713
  %1740 = vmatpush.msra.mxu0 %v1712
  %1741 = vmatpush.msra.mxu0 %v1711
  %1742 = vmatmul.f32.gmra.mxu0 %v1721
  %v1743 = vpop.f32.mrf.mxu0
  %v1744 = vadd.f32 %v1718, %v1743
  %1745 = vmatmul.f32.gmra.mxu0 %v1724
  %v1746 = vpop.f32.mrf.mxu0
  %v1747 = vadd.f32 %v1718, %v1746
  %1748 = vdwg.mxu0
  %v1749 = vadd.f32 %v1744, %v1105
  %v1750 = vadd.f32 %v1747, %v1106
  %s1751 = scalar_lea.vmem %s12, 1
  %v1752 = vld [vmem:[%s1751] sm:$0x1]
  %s1753 = scalar_lea.vmem %s13, 1
  %v1754 = vld [vmem:[%s1753] sm:$0x1]
  %v1755 = vsel %vm185, %v1749, 0.0
  %1756 = vadd.xlane.f32.xlu0 %v1755
  %v1757 = vpop.xlane.xlu0 %1756
  %v1758 = vsel %vm185, %v1750, 0.0
  %1759 = vadd.xlane.f32.xlu0 %v1758
  %v1760 = vpop.xlane.xlu0 %1759
  %v1761 = vmul.f32 %v1757, %v198
  %v1762 = vmul.f32 %v1760, %v198
  %v1763 = vsub.f32 %v1749, %v1761
  %v1764 = vsub.f32 %v1750, %v1762
  %v1765 = vmul.f32 %v1763, %v1763
  %v1766 = vmul.f32 %v1764, %v1764
  %v1767 = vsel %vm185, %v1765, 0.0
  %1768 = vadd.xlane.f32.xlu0 %v1767
  %v1769 = vpop.xlane.xlu0 %1768
  %v1770 = vsel %vm185, %v1766, 0.0
  %1771 = vadd.xlane.f32.xlu0 %v1770
  %v1772 = vpop.xlane.xlu0 %1771
  %v1773 = vmul.f32 %v1769, %v198
  %v1774 = vmul.f32 %v1772, %v198
  %v1775 = vadd.f32 %v1773, 1e-12
  %v1776 = vadd.f32 %v1774, 1e-12
  %v1777 = vrsqrt.pop %v1775
  %v1778 = vmul.f32 %v1777, %v1775
  %v1779 = vmul.f32 %v1778, %v1777
  %v1780 = vmul.f32 0.5, %v1779
  %v1781 = vsub.f32 1.5, %v1780
  %v1782 = vmul.f32 %v1777, %v1781
  %vm1783 = vweird.f32 %v1775
  %vm1784 = vweird.f32 %v1777
  %vm1785 = vmor %vm1783, %vm1784
  %v1786 = vsel %vm1785, %v1777, %v1782
  %v1787 = vrsqrt.pop %v1776
  %v1788 = vmul.f32 %v1787, %v1776
  %v1789 = vmul.f32 %v1788, %v1787
  %v1790 = vmul.f32 0.5, %v1789
  %v1791 = vsub.f32 1.5, %v1790
  %v1792 = vmul.f32 %v1787, %v1791
  %vm1793 = vweird.f32 %v1776
  %vm1794 = vweird.f32 %v1787
  %vm1795 = vmor %vm1793, %vm1794
  %v1796 = vsel %vm1795, %v1787, %v1792
  %v1797 = vmul.f32 %v1763, %v1786
  %v1798 = vmul.f32 %v1764, %v1796
  %v1800 = vperm.slane %v1752, 0
  %v1802 = vmul.f32 %v1797, %v1800
  %v1803 = vmul.f32 %v1798, %v1800
  %v1805 = vperm.slane %v1754, 0
  %v1807 = vadd.f32 %v1802, %v1805
  %v1808 = vadd.f32 %v1803, %v1805
  %s1809 = scalar_lea.vmem %s14, 32
  %v1810 = vld [vmem:[%s1809] sm:$0xff]
  %v1811 = vld [vmem:[%s1809 + $0x8] sm:$0xff]
  %v1812 = vld [vmem:[%s1809 + $0x10] sm:$0xff]
  %v1813 = vld [vmem:[%s1809 + $0x18] sm:$0xff]
  %s1814 = scalar_lea.vmem %s15, 1
  %v1815 = vld [vmem:[%s1814] sm:$0x1]
  %v1817 = vperm.slane %v1815, 0
  %v1820 = vsel %vm185, %v1807, 0
  %v1823 = vsel %vm185, %v1808, 0
  %1825 = vmatpush.msra.mxu0 0.0
  %1826 = vmatpush.msra.mxu0 0.0
  %1827 = vmatpush.msra.mxu0 0.0
  %1828 = vmatpush.msra.mxu0 0.0
  %1829 = vmatpush.msra.mxu0 0.0
  %1830 = vmatpush.msra.mxu0 0.0
  %1831 = vmatpush.msra.mxu0 0.0
  %1832 = vmatpush.msra.mxu0 0.0
  %1833 = vmatpush.msra.mxu0 0.0
  %1834 = vmatpush.msra.mxu0 0.0
  %1835 = vmatpush.msra.mxu0 0.0
  %1836 = vmatpush.msra.mxu0 0.0
  %1837 = vmatpush.msra.mxu0 %v1813
  %1838 = vmatpush.msra.mxu0 %v1812
  %1839 = vmatpush.msra.mxu0 %v1811
  %1840 = vmatpush.msra.mxu0 %v1810
  %1841 = vmatmul.f32.gmra.mxu0 %v1820
  %v1842 = vpop.f32.mrf.mxu0
  %v1843 = vadd.f32 %v1817, %v1842
  %1844 = vmatmul.f32.gmra.mxu0 %v1823
  %v1845 = vpop.f32.mrf.mxu0
  %v1846 = vadd.f32 %v1817, %v1845
  %1847 = vdwg.mxu0
  %v1848 = vmul.f32 %v1843, 0.5
  %v1849 = vmul.f32 %v1846, 0.5
  %v1850 = vmul.f32 %v1843, 0.044715
  %v1851 = vmul.f32 %v1846, 0.044715
  %v1852 = vmul.f32 %v1850, %v1843
  %v1853 = vmul.f32 %v1851, %v1846
  %v1854 = vmul.f32 %v1852, %v1843
  %v1855 = vmul.f32 %v1853, %v1846
  %v1856 = vadd.f32 %v1843, %v1854
  %v1857 = vadd.f32 %v1846, %v1855
  %v1858 = vmul.f32 %v1856, 0.7978846
  %v1859 = vmul.f32 %v1857, 0.7978846
  %v1860 = vtanh.pop %v1858
  %v1861 = vtanh.pop %v1859
  %v1862 = vadd.f32 %v1860, 1.0
  %v1863 = vadd.f32 %v1861, 1.0
  %v1864 = vmul.f32 %v1848, %v1862
  %v1865 = vmul.f32 %v1849, %v1863
  %s1866 = scalar_lea.vmem %s16, 64
  %v1867 = vld [vmem:[%s1866] sm:$0xff]
  %v1868 = vld [vmem:[%s1866 + $0x8] sm:$0xff]
  %v1869 = vld [vmem:[%s1866 + $0x10] sm:$0xff]
  %v1870 = vld [vmem:[%s1866 + $0x18] sm:$0xff]
  %v1871 = vld [vmem:[%s1866 + $0x20] sm:$0xff]
  %v1872 = vld [vmem:[%s1866 + $0x28] sm:$0xff]
  %v1873 = vld [vmem:[%s1866 + $0x30] sm:$0xff]
  %v1874 = vld [vmem:[%s1866 + $0x38] sm:$0xff]
  %s1875 = scalar_lea.vmem %s17, 1
  %v1876 = vld [vmem:[%s1875] sm:$0x1]
  %v1878 = vperm.slane %v1876, 0
  %v1881 = vsel %vm1019, %v1864, 0
  %v1884 = vsel %vm1019, %v1865, 0
  %1886 = vmatpush.msra.mxu0 0.0
  %1887 = vmatpush.msra.mxu0 0.0
  %1888 = vmatpush.msra.mxu0 0.0
  %1889 = vmatpush.msra.mxu0 0.0
  %1890 = vmatpush.msra.mxu0 0.0
  %1891 = vmatpush.msra.mxu0 0.0
  %1892 = vmatpush.msra.mxu0 0.0
  %1893 = vmatpush.msra.mxu0 0.0
  %1894 = vmatpush.msra.mxu0 %v1874
  %1895 = vmatpush.msra.mxu0 %v1873
  %1896 = vmatpush.msra.mxu0 %v1872
  %1897 = vmatpush.msra.mxu0 %v1871
  %1898 = vmatpush.msra.mxu0 %v1870
  %1899 = vmatpush.msra.mxu0 %v1869
  %1900 = vmatpush.msra.mxu0 %v1868
  %1901 = vmatpush.msra.mxu0 %v1867
  %1902 = vmatmul.f32.gmra.mxu0 %v1881
  %v1903 = vpop.f32.mrf.mxu0
  %v1904 = vadd.f32 %v1878, %v1903
  %1905 = vmatmul.f32.gmra.mxu0 %v1884
  %v1906 = vpop.f32.mrf.mxu0
  %v1907 = vadd.f32 %v1878, %v1906
  %1908 = vdwg.mxu0
  %v1909 = vadd.f32 %v1904, %v1807
  %v1910 = vadd.f32 %v1907, %v1808
  %s1911 = scalar_lea.vmem %s18, 1
  %v1912 = vld [vmem:[%s1911] sm:$0x1]
  %s1913 = scalar_lea.vmem %s19, 1
  %v1914 = vld [vmem:[%s1913] sm:$0x1]
  %v1915 = vsel %vm185, %v1909, 0.0
  %1916 = vadd.xlane.f32.xlu0 %v1915
  %v1917 = vpop.xlane.xlu0 %1916
  %v1918 = vsel %vm185, %v1910, 0.0
  %1919 = vadd.xlane.f32.xlu0 %v1918
  %v1920 = vpop.xlane.xlu0 %1919
  %v1921 = vmul.f32 %v1917, %v198
  %v1922 = vmul.f32 %v1920, %v198
  %v1923 = vsub.f32 %v1909, %v1921
  %v1924 = vsub.f32 %v1910, %v1922
  %v1925 = vmul.f32 %v1923, %v1923
  %v1926 = vmul.f32 %v1924, %v1924
  %v1927 = vsel %vm185, %v1925, 0.0
  %1928 = vadd.xlane.f32.xlu0 %v1927
  %v1929 = vpop.xlane.xlu0 %1928
  %v1930 = vsel %vm185, %v1926, 0.0
  %1931 = vadd.xlane.f32.xlu0 %v1930
  %v1932 = vpop.xlane.xlu0 %1931
  %v1933 = vmul.f32 %v1929, %v198
  %v1934 = vmul.f32 %v1932, %v198
  %v1935 = vadd.f32 %v1933, 1e-12
  %v1936 = vadd.f32 %v1934, 1e-12
  %v1937 = vrsqrt.pop %v1935
  %v1938 = vmul.f32 %v1937, %v1935
  %v1939 = vmul.f32 %v1938, %v1937
  %v1940 = vmul.f32 0.5, %v1939
  %v1941 = vsub.f32 1.5, %v1940
  %v1942 = vmul.f32 %v1937, %v1941
  %vm1943 = vweird.f32 %v1935
  %vm1944 = vweird.f32 %v1937
  %vm1945 = vmor %vm1943, %vm1944
  %v1946 = vsel %vm1945, %v1937, %v1942
  %v1947 = vrsqrt.pop %v1936
  %v1948 = vmul.f32 %v1947, %v1936
  %v1949 = vmul.f32 %v1948, %v1947
  %v1950 = vmul.f32 0.5, %v1949
  %v1951 = vsub.f32 1.5, %v1950
  %v1952 = vmul.f32 %v1947, %v1951
  %vm1953 = vweird.f32 %v1936
  %vm1954 = vweird.f32 %v1947
  %vm1955 = vmor %vm1953, %vm1954
  %v1956 = vsel %vm1955, %v1947, %v1952
  %v1957 = vmul.f32 %v1923, %v1946
  %v1958 = vmul.f32 %v1924, %v1956
  %v1960 = vperm.slane %v1912, 0
  %v1962 = vmul.f32 %v1957, %v1960
  %v1963 = vmul.f32 %v1958, %v1960
  %v1965 = vperm.slane %v1914, 0
  %v1967 = vadd.f32 %v1962, %v1965
  %v1968 = vadd.f32 %v1963, %v1965
  %v1970 = vrot.slane %v1968, 7
  %vm1972 = vcmask 1040384
  %v1973 = vsel %vm1972, %v1967, %v1970
  %v1974 = vld [vmem:[%s20] sm:$0xff]
  %v1975 = vld [vmem:[%s20 + $0x8] sm:$0xff]
  %v1976 = vld [vmem:[%s20 + $0x10] sm:$0xff]
  %v1977 = vld [vmem:[%s20 + $0x18] sm:$0xff]
  %v1978 = vld [vmem:[#allocation2] sm:$0x1]
  %v1980 = vperm.slane %v1978, 0
  %v1983 = vsel %vm185, %v1973, 0
  %1985 = vmatpush.msra.mxu0 0.0
  %1986 = vmatpush.msra.mxu0 0.0
  %1987 = vmatpush.msra.mxu0 0.0
  %1988 = vmatpush.msra.mxu0 0.0
  %1989 = vmatpush.msra.mxu0 0.0
  %1990 = vmatpush.msra.mxu0 0.0
  %1991 = vmatpush.msra.mxu0 0.0
  %1992 = vmatpush.msra.mxu0 0.0
  %1993 = vmatpush.msra.mxu0 0.0
  %1994 = vmatpush.msra.mxu0 0.0
  %1995 = vmatpush.msra.mxu0 0.0
  %1996 = vmatpush.msra.mxu0 0.0
  %1997 = vmatpush.msra.mxu0 %v1977
  %1998 = vmatpush.msra.mxu0 %v1976
  %1999 = vmatpush.msra.mxu0 %v1975
  %2000 = vmatpush.msra.mxu0 %v1974
  %2001 = vmatmul.f32.gmra.mxu0 %v1983
  %v2002 = vpop.f32.mrf.mxu0
  %v2003 = vadd.f32 %v1980, %v2002
  %2004 = vdwg.mxu0
  %vm2005 = vcmask 1024
  %2006 = vst.msk [vmem:[%s22] sm:$0x3] %vm2005, %v2003
  // Predicated region
  $region90: #{tpu_custom_call.1} parent=0 // pred_check
    _
  $region91: #{tpu_custom_call.1} parent=0 // pred_check_branch
    %2008 = sbr.rel (0) target = $region93
  $region92: #{tpu_custom_call.1} parent=0 // pred_region
    _
  $region93: #{tpu_custom_call.1} parent=0 // pred_fallthru
    _
  // Predicated region
  $region94: #{tpu_custom_call.1} parent=0 // pred_check
    _
  $region95: #{tpu_custom_call.1} parent=0 // pred_check_branch
    %2010 = sbr.rel (0) target = $region97
  $region96: #{tpu_custom_call.1} parent=0 // pred_region
    _
  $region97: #{tpu_custom_call.1} parent=0 // pred_fallthru
    _

</llo_original>
